<compile_context>
chip_gen: v5e
topology: v5e:2x2
jax: 0.10.0
libtpu: 0.0.40
codegen_flags: <defaults>
</compile_context>

<pallas_src>
import numpy as np
import jax
import jax.numpy as jnp
from jax import lax
from jax.experimental import pallas as pl
from jax.experimental.pallas import tpu as pltpu

# ---- small shapes consistent with the module's forward -----------------------
B   = 4      # batch_size
T   = 8      # sequence length (x.size(1))
IN  = 1      # input_dim
HD  = 32     # hidden_dim
MD  = 64     # memory_dim
NH  = 4      # num_heads
OD  = 10     # output_dim
K   = int(np.sqrt(NH * MD))   # fc_v_* output is 2*K ; K = 16
RPH = MD // K                 # rows of the KxK outer product per head = 4
assert K * K == NH * MD, "num_heads * memory_dim must be a perfect square"

EPS     = 1e-12
SLAB    = 4 * K + 2 * MD      # fused slab width: [alpha_k|beta_k|ua0|ub0|ua1~|ub1~] = 192
C_U0    = 2 * K               # column offset of [ua0|ub0]
C_U1    = 4 * K               # column offset of [ua1_tiled|ub1_tiled]
INV_NH  = 1.0 / NH
INV_RPH = 1.0 / RPH


# ------------------------------- Pallas kernel --------------------------------
def nru_kernel(xw_ref, hm0_ref, wh_ref, wm_ref, qr_ref, bias_ref, wout_ref, out_ref):
    f32 = jnp.float32

    # --- one-time loads / slices, hoisted out of the recurrence (~40 KB) -----
    Wh = wh_ref[...]                         # (HD, HD + SLAB): [Wpre_h | Wslab_h]
    Wm = wm_ref[...]                         # (MD, HD + SLAB): [Wpre_m | Wslab_m]
    Wpre_h, Wslab_h = Wh[:, :HD], Wh[:, HD:]
    Wpre_m, Wslab_m = Wm[:, :HD], Wm[:, HD:]
    QR = qr_ref[...]                         # (2K, 2K + 2MD): [Q2 | R2], 0/1 matrices
    Q2, R2 = QR[:, :2 * K], QR[:, 2 * K:]
    bS  = jnp.broadcast_to(bias_ref[...], (B, SLAB))   # bias pre-broadcast once
    hm0 = hm0_ref[...]
    h, m = hm0[:, :HD], hm0[:, HD:]
    Wout = wout_ref[...]                     # (HD + 1, OD): [W_h2o ; b_o]
    lane2k = lax.broadcasted_iota(jnp.int32, (B, 2 * K), 1)

    # --- T is tiny & static: full unroll gives the scheduler cross-step view --
    for t in range(T):
        # h_t = relu(h @ W2h_h + m @ W2h_m + (x_t @ W2h_x + b2h))   (xw precomputed)
        pre = (jnp.dot(h, Wpre_h, preferred_element_type=f32)
               + jnp.dot(m, Wpre_m, preferred_element_type=f32)
               + xw_ref[t])
        h = jnp.maximum(pre, 0.0)

        # all six gate/value linears as one fused slab (split per operand h / m)
        z = (jnp.dot(h, Wslab_h, preferred_element_type=f32)
             + jnp.dot(m, Wslab_m, preferred_element_type=f32)
             + bS)
        ab_k  = z[:, :C_U0]          # (B, 2K)  alpha/beta already expanded per k-col
        u0    = z[:, C_U0:C_U1]      # (B, 2K)  [u_alpha[0] | u_beta[0]]
        u1_md = z[:, C_U1:]          # (B, 2MD) [u_alpha[1] tiled x4 | u_beta[1] tiled x4]

        # factorized L5 norm of each head's outer product (||v_q||_5^5 = A_q * Bn)
        a = jnp.abs(u0);    a2 = a * a;  a5 = a2 * a2 * a     # |u0|^5  (VPU only)
        c = jnp.abs(u1_md); c2 = c * c;  c5 = c2 * c2 * c     # |u1|^5  (tiled)
        A_k = jnp.dot(a5, Q2, preferred_element_type=f32,
                      precision=lax.Precision.HIGHEST)        # per-head sums; 0/1 wts -> exact
        Bn_a = jnp.sum(c5[:, :MD], axis=1, keepdims=True) * INV_RPH
        Bn_b = jnp.sum(c5[:, MD:], axis=1, keepdims=True) * INV_RPH
        Bn   = jnp.where(lane2k < K, Bn_a, Bn_b)              # (B, 2K)
        nrm  = jnp.exp(0.2 * jnp.log(A_k * Bn))               # fifth root (EUP)

        # memory delta:  m += mean_q(alpha_q * v_q / max(||v_q||_5, eps)) - (beta side)
        g    = ab_k * (INV_NH * pl.reciprocal(jnp.maximum(nrm, EPS), approx=True))
        dmd  = jnp.dot(g * u0, R2, preferred_element_type=f32,
                       precision=lax.Precision.HIGHEST)       # (B, 2MD) head-summed, tiled
        delta = dmd * u1_md
        m = m + delta[:, :MD] - delta[:, MD:]

    out_ref[...] = jnp.dot(h, Wout[:HD], preferred_element_type=f32) + Wout[HD:]


# ------------------------------ host-side packing -------------------------------
def _selectors():
    i = np.arange(2 * K)
    side_i = i // K
    head_i = (i % K) // RPH
    r_i    = (i % K) % RPH
    p = np.arange(2 * MD)
    side_p = p // MD
    r_p    = (p % MD) // K
    Q2 = ((side_i[:, None] == side_i[None, :]) &
          (head_i[:, None] == head_i[None, :])).astype(np.float32)   # (2K, 2K)
    R2 = ((side_i[:, None] == side_p[None, :]) &
          (r_i[:, None] == r_p[None, :])).astype(np.float32)         # (2K, 2MD)
    return jnp.asarray(Q2), jnp.asarray(R2)


def pack_kernel_inputs(p):
    """Fuse the six per-step linears into one (96, SLAB) slab (alpha/beta head
    expansion and u1 tiling folded into the weights) and consolidate all
    parameters into a handful of arrays."""
    W2h, Wa, Wb, Wva, Wvb = p['W2h'], p['Wa'], p['Wb'], p['Wva'], p['Wvb']
    Wslab = jnp.concatenate([
        jnp.repeat(Wa, RPH, axis=1), jnp.repeat(Wb, RPH, axis=1),
        Wva[:, :K], Wvb[:, :K],
        jnp.tile(Wva[:, K:], (1, RPH)), jnp.tile(Wvb[:, K:], (1, RPH))], axis=1)
    bslab = jnp.concatenate([
        jnp.repeat(p['ba'], RPH, axis=1), jnp.repeat(p['bb'], RPH, axis=1),
        p['bva'][:, :K], p['bvb'][:, :K],
        jnp.tile(p['bva'][:, K:], (1, RPH)), jnp.tile(p['bvb'][:, K:], (1, RPH))],
        axis=1)                                                       # (1, SLAB)
    Wpre = jnp.concatenate([W2h[:HD], W2h[HD + IN:]], axis=0)         # (HD+MD, HD)
    Wh_slab = jnp.concatenate([Wpre[:HD], Wslab[:HD]], axis=1)        # (HD, HD+SLAB)
    Wm_slab = jnp.concatenate([Wpre[HD:], Wslab[HD:]], axis=1)        # (MD, HD+SLAB)
    Q2, R2 = _selectors()
    QR   = jnp.concatenate([Q2, R2], axis=1)                          # (2K, 2K+2MD)
    Wout = jnp.concatenate([p['Who'], p['bo']], axis=0)               # (HD+1, OD)
    hm0  = jnp.concatenate([p['h0'], p['m0']], axis=1)                # (B, HD+MD)
    return hm0, Wh_slab, Wm_slab, QR, bslab, Wout


def _full_spec(a):
    nd = a.ndim
    return pl.BlockSpec(a.shape, lambda i, _nd=nd: (0,) * _nd)


@jax.jit
def nru_forward(x_btf, params):
    # Precompute the per-step input contribution (+ fc_to_h bias) outside the
    # serial recurrence: xw[t] = x[:, t, :] @ W2h_x + b2h          -> (T, B, HD)
    xw = jnp.einsum('bti,ih->bth', x_btf, params['W2h'][HD:HD + IN]) + params['b2h']
    xw = jnp.transpose(xw, (1, 0, 2)).astype(jnp.float32)
    inputs = [xw, *pack_kernel_inputs(params)]
    return pl.pallas_call(
        nru_kernel,
        out_shape=jax.ShapeDtypeStruct((B, OD), jnp.float32),
        grid=(1,),
        in_specs=[_full_spec(a) for a in inputs],
        out_specs=pl.BlockSpec((B, OD), lambda i: (0, 0)),
        compiler_params=pltpu.CompilerParams(dimension_semantics=("arbitrary",)),
    )(*inputs)


# ------------------------- deterministic parameter init -------------------------
def init_params(key):
    ks = jax.random.split(key, 12)

    def rn(k, shape, fan_in):
        return (jax.random.normal(k, shape, jnp.float32)
                / np.sqrt(float(fan_in))).astype(jnp.float32)

    return dict(
        W2h=rn(ks[0], (HD + IN + MD, HD), HD + IN + MD),
        b2h=0.1 * rn(ks[1], (1, HD), 1),
        Wa =rn(ks[2], (HD + MD, NH), HD + MD),
        ba =0.1 * rn(ks[3], (1, NH), 1),
        Wb =rn(ks[4], (HD + MD, NH), HD + MD),
        bb =0.1 * rn(ks[5], (1, NH), 1),
        Wva=rn(ks[6], (HD + MD, 2 * K), HD + MD),
        bva=0.1 * rn(ks[7], (1, 2 * K), 1),
        Wvb=rn(ks[8], (HD + MD, 2 * K), HD + MD),
        bvb=0.1 * rn(ks[9], (1, 2 * K), 1),
        Who=rn(ks[10], (HD, OD), HD),
        bo =jnp.zeros((1, OD), jnp.float32),
        h0 =rn(ks[11], (B, HD), HD),
        m0 =rn(jax.random.fold_in(key, 99), (B, MD), MD),
    )


# -------------------------- plain-JAX reference (torch semantics) ---------------
def reference_forward(x, p):
    h, m = p['h0'], p['m0']
    for t in range(x.shape[1]):
        cat1 = jnp.concatenate([h, x[:, t, :], m], axis=1)
        h = jax.nn.relu(cat1 @ p['W2h'] + p['b2h'])
        inp1 = jnp.concatenate([h, m], axis=1)
        alpha = inp1 @ p['Wa'] + p['ba']
        beta  = inp1 @ p['Wb'] + p['bb']

        def v_norm(u):
            u0, u1 = u[:, :K], u[:, K:]
            v = (u0[:, :, None] * u1[:, None, :]).reshape(x.shape[0], NH, MD)
            nrm = jnp.sum(jnp.abs(v) ** 5, axis=2, keepdims=True) ** 0.2
            return v / jnp.maximum(nrm, EPS)

        va = v_norm(inp1 @ p['Wva'] + p['bva'])
        vb = v_norm(inp1 @ p['Wvb'] + p['bvb'])
        m = m + jnp.mean(alpha[:, :, None] * va - beta[:, :, None] * vb, axis=1)
    return h @ p['Who'] + p['bo']


# ------------------------------------ main --------------------------------------
if __name__ == "__main__":
    key = jax.random.PRNGKey(0)
    kx, kp = jax.random.split(key)
    x = jax.random.normal(kx, (B, T, IN), jnp.float32)   # (batch, seq, input_dim)

    params = init_params(kp)
    out = jax.block_until_ready(nru_forward(x, params))
    ref = jax.block_until_ready(reference_forward(x, params))

    out_np, ref_np = np.asarray(out), np.asarray(ref)
    assert out_np.shape == (B, OD)
    assert np.all(np.isfinite(out_np))
    # Tolerance sized for single-pass bf16 MXU matmuls (default precision, per
    # perf review) propagated through the 8-step recurrence; a structural bug
    # produces O(1) deviations, far above this band.
    assert np.allclose(out_np, ref_np, rtol=2e-2, atol=2e-2), \
        f"max abs diff {np.max(np.abs(out_np - ref_np))}"
    print("KERNEL_OK")
</pallas_src>

<mosaic_0001>
module attributes {stable_mosaic.version = 11 : i64} {
  func.func @nru_kernel(%arg0: i32, %arg1: memref<8x4x32xf32, #tpu.memory_space<vmem>>, %arg2: memref<4x96xf32, #tpu.memory_space<vmem>>, %arg3: memref<32x224xf32, #tpu.memory_space<vmem>>, %arg4: memref<64x224xf32, #tpu.memory_space<vmem>>, %arg5: memref<32x160xf32, #tpu.memory_space<vmem>>, %arg6: memref<1x192xf32, #tpu.memory_space<vmem>>, %arg7: memref<33x10xf32, #tpu.memory_space<vmem>>, %arg8: memref<4x10xf32, #tpu.memory_space<vmem>>) attributes {dimension_semantics = [#tpu.dimension_semantics<arbitrary>], iteration_bounds = array<i64: 1>, scalar_prefetch = 0 : i64, scratch_operands = 0 : i64, tpu.core_type = #tpu.core_type<tc>, window_params = [{pipeline_mode = #tpu.pipeline_mode<synchronous>, transform_indices = @transform_0, window_bounds = array<i64: 8, 4, 32>}, {pipeline_mode = #tpu.pipeline_mode<synchronous>, transform_indices = @transform_1, window_bounds = array<i64: 4, 96>}, {pipeline_mode = #tpu.pipeline_mode<synchronous>, transform_indices = @transform_2, window_bounds = array<i64: 32, 224>}, {pipeline_mode = #tpu.pipeline_mode<synchronous>, transform_indices = @transform_3, window_bounds = array<i64: 64, 224>}, {pipeline_mode = #tpu.pipeline_mode<synchronous>, transform_indices = @transform_4, window_bounds = array<i64: 32, 160>}, {pipeline_mode = #tpu.pipeline_mode<synchronous>, transform_indices = @transform_5, window_bounds = array<i64: 1, 192>}, {pipeline_mode = #tpu.pipeline_mode<synchronous>, transform_indices = @transform_6, window_bounds = array<i64: 33, 10>}, {pipeline_mode = #tpu.pipeline_mode<synchronous>, transform_indices = @transform_7, window_bounds = array<i64: 4, 10>}]} {
    %c0 = arith.constant 0 : index
    %c0_0 = arith.constant 0 : index
    %0 = vector.load %arg3[%c0, %c0_0] : memref<32x224xf32, #tpu.memory_space<vmem>>, vector<32x224xf32>
    %c0_1 = arith.constant 0 : index
    %c0_2 = arith.constant 0 : index
    %1 = vector.load %arg4[%c0_1, %c0_2] : memref<64x224xf32, #tpu.memory_space<vmem>>, vector<64x224xf32>
    %2 = vector.extract_strided_slice %0 {offsets = [0, 0], sizes = [32, 32], strides = [1, 1]} : vector<32x224xf32> to vector<32x32xf32>
    %3 = vector.extract_strided_slice %0 {offsets = [0, 32], sizes = [32, 192], strides = [1, 1]} : vector<32x224xf32> to vector<32x192xf32>
    %4 = vector.extract_strided_slice %1 {offsets = [0, 0], sizes = [64, 32], strides = [1, 1]} : vector<64x224xf32> to vector<64x32xf32>
    %5 = vector.extract_strided_slice %1 {offsets = [0, 32], sizes = [64, 192], strides = [1, 1]} : vector<64x224xf32> to vector<64x192xf32>
    %c0_3 = arith.constant 0 : index
    %c0_4 = arith.constant 0 : index
    %6 = vector.load %arg5[%c0_3, %c0_4] : memref<32x160xf32, #tpu.memory_space<vmem>>, vector<32x160xf32>
    %7 = vector.extract_strided_slice %6 {offsets = [0, 0], sizes = [32, 32], strides = [1, 1]} : vector<32x160xf32> to vector<32x32xf32>
    %8 = vector.extract_strided_slice %6 {offsets = [0, 32], sizes = [32, 128], strides = [1, 1]} : vector<32x160xf32> to vector<32x128xf32>
    %c0_5 = arith.constant 0 : index
    %c0_6 = arith.constant 0 : index
    %9 = vector.load %arg6[%c0_5, %c0_6] : memref<1x192xf32, #tpu.memory_space<vmem>>, vector<1x192xf32>
    %10 = vector.shape_cast %9 : vector<1x192xf32> to vector<1x192xf32>
    %11 = vector.broadcast %10 : vector<1x192xf32> to vector<4x192xf32>
    %c0_7 = arith.constant 0 : index
    %c0_8 = arith.constant 0 : index
    %12 = vector.load %arg2[%c0_7, %c0_8] : memref<4x96xf32, #tpu.memory_space<vmem>>, vector<4x96xf32>
    %13 = vector.extract_strided_slice %12 {offsets = [0, 0], sizes = [4, 32], strides = [1, 1]} : vector<4x96xf32> to vector<4x32xf32>
    %14 = vector.extract_strided_slice %12 {offsets = [0, 32], sizes = [4, 64], strides = [1, 1]} : vector<4x96xf32> to vector<4x64xf32>
    %c0_9 = arith.constant 0 : index
    %c0_10 = arith.constant 0 : index
    %15 = vector.load %arg7[%c0_9, %c0_10] : memref<33x10xf32, #tpu.memory_space<vmem>>, vector<33x10xf32>
    %16 = tpu.iota {dimensions = array<i32: 1>} : vector<4x32xi32>
    %cst = arith.constant dense<0.000000e+00> : vector<4x32xf32>
    %17 = tpu.matmul %13, %2, %cst {dimension_numbers = #tpu.dot_dimension_numbers<[1], [0], [0], [1], [0, 0, 1, 1], [], []>} : vector<4x32xf32>, vector<32x32xf32>, vector<4x32xf32> -> vector<4x32xf32>
    %cst_11 = arith.constant dense<0.000000e+00> : vector<4x32xf32>
    %18 = tpu.matmul %14, %4, %cst_11 {dimension_numbers = #tpu.dot_dimension_numbers<[1], [0], [0], [1], [0, 0, 1, 1], [], []>} : vector<4x64xf32>, vector<64x32xf32>, vector<4x32xf32> -> vector<4x32xf32>
    %19 = arith.addf %17, %18 : vector<4x32xf32>
    %c0_12 = arith.constant 0 : index
    %c0_13 = arith.constant 0 : index
    %c0_14 = arith.constant 0 : index
    %20 = vector.load %arg1[%c0_12, %c0_13, %c0_14] : memref<8x4x32xf32, #tpu.memory_space<vmem>>, vector<1x4x32xf32>
    %21 = vector.shape_cast %20 : vector<1x4x32xf32> to vector<4x32xf32>
    %22 = arith.addf %19, %21 : vector<4x32xf32>
    %cst_15 = arith.constant 0.000000e+00 : f32
    %23 = vector.broadcast %cst_15 : f32 to vector<4x32xf32>
    %24 = arith.maximumf %22, %23 : vector<4x32xf32>
    %cst_16 = arith.constant dense<0.000000e+00> : vector<4x192xf32>
    %25 = tpu.matmul %24, %3, %cst_16 {dimension_numbers = #tpu.dot_dimension_numbers<[1], [0], [0], [1], [0, 0, 1, 1], [], []>} : vector<4x32xf32>, vector<32x192xf32>, vector<4x192xf32> -> vector<4x192xf32>
    %cst_17 = arith.constant dense<0.000000e+00> : vector<4x192xf32>
    %26 = tpu.matmul %14, %5, %cst_17 {dimension_numbers = #tpu.dot_dimension_numbers<[1], [0], [0], [1], [0, 0, 1, 1], [], []>} : vector<4x64xf32>, vector<64x192xf32>, vector<4x192xf32> -> vector<4x192xf32>
    %27 = arith.addf %25, %26 : vector<4x192xf32>
    %28 = arith.addf %27, %11 : vector<4x192xf32>
    %29 = vector.extract_strided_slice %28 {offsets = [0, 0], sizes = [4, 32], strides = [1, 1]} : vector<4x192xf32> to vector<4x32xf32>
    %30 = vector.extract_strided_slice %28 {offsets = [0, 32], sizes = [4, 32], strides = [1, 1]} : vector<4x192xf32> to vector<4x32xf32>
    %31 = vector.extract_strided_slice %28 {offsets = [0, 64], sizes = [4, 128], strides = [1, 1]} : vector<4x192xf32> to vector<4x128xf32>
    %32 = math.absf %30 : vector<4x32xf32>
    %33 = arith.mulf %32, %32 : vector<4x32xf32>
    %34 = arith.mulf %33, %33 : vector<4x32xf32>
    %35 = arith.mulf %34, %32 : vector<4x32xf32>
    %36 = math.absf %31 : vector<4x128xf32>
    %37 = arith.mulf %36, %36 : vector<4x128xf32>
    %38 = arith.mulf %37, %37 : vector<4x128xf32>
    %39 = arith.mulf %38, %36 : vector<4x128xf32>
    %cst_18 = arith.constant dense<0.000000e+00> : vector<4x32xf32>
    %40 = tpu.matmul %35, %7, %cst_18 {dimension_numbers = #tpu.dot_dimension_numbers<[1], [0], [0], [1], [0, 0, 1, 1], [], []>, precision = #tpu.contract_precision<fp32>} : vector<4x32xf32>, vector<32x32xf32>, vector<4x32xf32> -> vector<4x32xf32>
    %41 = vector.extract_strided_slice %39 {offsets = [0, 0], sizes = [4, 64], strides = [1, 1]} : vector<4x128xf32> to vector<4x64xf32>
    %cst_19 = arith.constant dense<0.000000e+00> : vector<4xf32>
    %42 = vector.multi_reduction <add>, %41, %cst_19 [1] : vector<4x64xf32> to vector<4xf32>
    %43 = vector.shape_cast %42 : vector<4xf32> to vector<4x1xf32>
    %cst_20 = arith.constant 2.500000e-01 : f32
    %44 = vector.broadcast %cst_20 : f32 to vector<4x1xf32>
    %45 = arith.mulf %43, %44 : vector<4x1xf32>
    %46 = vector.extract_strided_slice %39 {offsets = [0, 64], sizes = [4, 64], strides = [1, 1]} : vector<4x128xf32> to vector<4x64xf32>
    %cst_21 = arith.constant dense<0.000000e+00> : vector<4xf32>
    %47 = vector.multi_reduction <add>, %46, %cst_21 [1] : vector<4x64xf32> to vector<4xf32>
    %48 = vector.shape_cast %47 : vector<4xf32> to vector<4x1xf32>
    %cst_22 = arith.constant 2.500000e-01 : f32
    %49 = vector.broadcast %cst_22 : f32 to vector<4x1xf32>
    %50 = arith.mulf %48, %49 : vector<4x1xf32>
    %c16_i32 = arith.constant 16 : i32
    %51 = vector.broadcast %c16_i32 : i32 to vector<4x32xi32>
    %52 = arith.cmpi slt, %16, %51 : vector<4x32xi32>
    %53 = vector.shape_cast %45 : vector<4x1xf32> to vector<4x1xf32>
    %54 = vector.broadcast %53 : vector<4x1xf32> to vector<4x32xf32>
    %55 = vector.shape_cast %50 : vector<4x1xf32> to vector<4x1xf32>
    %56 = vector.broadcast %55 : vector<4x1xf32> to vector<4x32xf32>
    %57 = arith.select %52, %54, %56 : vector<4x32xi1>, vector<4x32xf32>
    %58 = arith.mulf %40, %57 : vector<4x32xf32>
    %59 = math.log %58 : vector<4x32xf32>
    %cst_23 = arith.constant 2.000000e-01 : f32
    %60 = vector.broadcast %cst_23 : f32 to vector<4x32xf32>
    %61 = arith.mulf %60, %59 : vector<4x32xf32>
    %62 = math.exp %61 : vector<4x32xf32>
    %cst_24 = arith.constant 9.99999996E-13 : f32
    %63 = vector.broadcast %cst_24 : f32 to vector<4x32xf32>
    %64 = arith.maximumf %62, %63 : vector<4x32xf32>
    %65 = tpu.reciprocal %64 {approx = true} : vector<4x32xf32> -> vector<4x32xf32>
    %cst_25 = arith.constant 2.500000e-01 : f32
    %66 = vector.broadcast %cst_25 : f32 to vector<4x32xf32>
    %67 = arith.mulf %66, %65 : vector<4x32xf32>
    %68 = arith.mulf %29, %67 : vector<4x32xf32>
    %69 = arith.mulf %68, %30 : vector<4x32xf32>
    %cst_26 = arith.constant dense<0.000000e+00> : vector<4x128xf32>
    %70 = tpu.matmul %69, %8, %cst_26 {dimension_numbers = #tpu.dot_dimension_numbers<[1], [0], [0], [1], [0, 0, 1, 1], [], []>, precision = #tpu.contract_precision<fp32>} : vector<4x32xf32>, vector<32x128xf32>, vector<4x128xf32> -> vector<4x128xf32>
    %71 = arith.mulf %70, %31 : vector<4x128xf32>
    %72 = vector.extract_strided_slice %71 {offsets = [0, 0], sizes = [4, 64], strides = [1, 1]} : vector<4x128xf32> to vector<4x64xf32>
    %73 = arith.addf %14, %72 : vector<4x64xf32>
    %74 = vector.extract_strided_slice %71 {offsets = [0, 64], sizes = [4, 64], strides = [1, 1]} : vector<4x128xf32> to vector<4x64xf32>
    %75 = arith.subf %73, %74 : vector<4x64xf32>
    %cst_27 = arith.constant dense<0.000000e+00> : vector<4x32xf32>
    %76 = tpu.matmul %24, %2, %cst_27 {dimension_numbers = #tpu.dot_dimension_numbers<[1], [0], [0], [1], [0, 0, 1, 1], [], []>} : vector<4x32xf32>, vector<32x32xf32>, vector<4x32xf32> -> vector<4x32xf32>
    %cst_28 = arith.constant dense<0.000000e+00> : vector<4x32xf32>
    %77 = tpu.matmul %75, %4, %cst_28 {dimension_numbers = #tpu.dot_dimension_numbers<[1], [0], [0], [1], [0, 0, 1, 1], [], []>} : vector<4x64xf32>, vector<64x32xf32>, vector<4x32xf32> -> vector<4x32xf32>
    %78 = arith.addf %76, %77 : vector<4x32xf32>
    %c1 = arith.constant 1 : index
    %c0_29 = arith.constant 0 : index
    %c0_30 = arith.constant 0 : index
    %79 = vector.load %arg1[%c1, %c0_29, %c0_30] : memref<8x4x32xf32, #tpu.memory_space<vmem>>, vector<1x4x32xf32>
    %80 = vector.shape_cast %79 : vector<1x4x32xf32> to vector<4x32xf32>
    %81 = arith.addf %78, %80 : vector<4x32xf32>
    %cst_31 = arith.constant 0.000000e+00 : f32
    %82 = vector.broadcast %cst_31 : f32 to vector<4x32xf32>
    %83 = arith.maximumf %81, %82 : vector<4x32xf32>
    %cst_32 = arith.constant dense<0.000000e+00> : vector<4x192xf32>
    %84 = tpu.matmul %83, %3, %cst_32 {dimension_numbers = #tpu.dot_dimension_numbers<[1], [0], [0], [1], [0, 0, 1, 1], [], []>} : vector<4x32xf32>, vector<32x192xf32>, vector<4x192xf32> -> vector<4x192xf32>
    %cst_33 = arith.constant dense<0.000000e+00> : vector<4x192xf32>
    %85 = tpu.matmul %75, %5, %cst_33 {dimension_numbers = #tpu.dot_dimension_numbers<[1], [0], [0], [1], [0, 0, 1, 1], [], []>} : vector<4x64xf32>, vector<64x192xf32>, vector<4x192xf32> -> vector<4x192xf32>
    %86 = arith.addf %84, %85 : vector<4x192xf32>
    %87 = arith.addf %86, %11 : vector<4x192xf32>
    %88 = vector.extract_strided_slice %87 {offsets = [0, 0], sizes = [4, 32], strides = [1, 1]} : vector<4x192xf32> to vector<4x32xf32>
    %89 = vector.extract_strided_slice %87 {offsets = [0, 32], sizes = [4, 32], strides = [1, 1]} : vector<4x192xf32> to vector<4x32xf32>
    %90 = vector.extract_strided_slice %87 {offsets = [0, 64], sizes = [4, 128], strides = [1, 1]} : vector<4x192xf32> to vector<4x128xf32>
    %91 = math.absf %89 : vector<4x32xf32>
    %92 = arith.mulf %91, %91 : vector<4x32xf32>
    %93 = arith.mulf %92, %92 : vector<4x32xf32>
    %94 = arith.mulf %93, %91 : vector<4x32xf32>
    %95 = math.absf %90 : vector<4x128xf32>
    %96 = arith.mulf %95, %95 : vector<4x128xf32>
    %97 = arith.mulf %96, %96 : vector<4x128xf32>
    %98 = arith.mulf %97, %95 : vector<4x128xf32>
    %cst_34 = arith.constant dense<0.000000e+00> : vector<4x32xf32>
    %99 = tpu.matmul %94, %7, %cst_34 {dimension_numbers = #tpu.dot_dimension_numbers<[1], [0], [0], [1], [0, 0, 1, 1], [], []>, precision = #tpu.contract_precision<fp32>} : vector<4x32xf32>, vector<32x32xf32>, vector<4x32xf32> -> vector<4x32xf32>
    %100 = vector.extract_strided_slice %98 {offsets = [0, 0], sizes = [4, 64], strides = [1, 1]} : vector<4x128xf32> to vector<4x64xf32>
    %cst_35 = arith.constant dense<0.000000e+00> : vector<4xf32>
    %101 = vector.multi_reduction <add>, %100, %cst_35 [1] : vector<4x64xf32> to vector<4xf32>
    %102 = vector.shape_cast %101 : vector<4xf32> to vector<4x1xf32>
    %cst_36 = arith.constant 2.500000e-01 : f32
    %103 = vector.broadcast %cst_36 : f32 to vector<4x1xf32>
    %104 = arith.mulf %102, %103 : vector<4x1xf32>
    %105 = vector.extract_strided_slice %98 {offsets = [0, 64], sizes = [4, 64], strides = [1, 1]} : vector<4x128xf32> to vector<4x64xf32>
    %cst_37 = arith.constant dense<0.000000e+00> : vector<4xf32>
    %106 = vector.multi_reduction <add>, %105, %cst_37 [1] : vector<4x64xf32> to vector<4xf32>
    %107 = vector.shape_cast %106 : vector<4xf32> to vector<4x1xf32>
    %cst_38 = arith.constant 2.500000e-01 : f32
    %108 = vector.broadcast %cst_38 : f32 to vector<4x1xf32>
    %109 = arith.mulf %107, %108 : vector<4x1xf32>
    %c16_i32_39 = arith.constant 16 : i32
    %110 = vector.broadcast %c16_i32_39 : i32 to vector<4x32xi32>
    %111 = arith.cmpi slt, %16, %110 : vector<4x32xi32>
    %112 = vector.shape_cast %104 : vector<4x1xf32> to vector<4x1xf32>
    %113 = vector.broadcast %112 : vector<4x1xf32> to vector<4x32xf32>
    %114 = vector.shape_cast %109 : vector<4x1xf32> to vector<4x1xf32>
    %115 = vector.broadcast %114 : vector<4x1xf32> to vector<4x32xf32>
    %116 = arith.select %111, %113, %115 : vector<4x32xi1>, vector<4x32xf32>
    %117 = arith.mulf %99, %116 : vector<4x32xf32>
    %118 = math.log %117 : vector<4x32xf32>
    %cst_40 = arith.constant 2.000000e-01 : f32
    %119 = vector.broadcast %cst_40 : f32 to vector<4x32xf32>
    %120 = arith.mulf %119, %118 : vector<4x32xf32>
    %121 = math.exp %120 : vector<4x32xf32>
    %cst_41 = arith.constant 9.99999996E-13 : f32
    %122 = vector.broadcast %cst_41 : f32 to vector<4x32xf32>
    %123 = arith.maximumf %121, %122 : vector<4x32xf32>
    %124 = tpu.reciprocal %123 {approx = true} : vector<4x32xf32> -> vector<4x32xf32>
    %cst_42 = arith.constant 2.500000e-01 : f32
    %125 = vector.broadcast %cst_42 : f32 to vector<4x32xf32>
    %126 = arith.mulf %125, %124 : vector<4x32xf32>
    %127 = arith.mulf %88, %126 : vector<4x32xf32>
    %128 = arith.mulf %127, %89 : vector<4x32xf32>
    %cst_43 = arith.constant dense<0.000000e+00> : vector<4x128xf32>
    %129 = tpu.matmul %128, %8, %cst_43 {dimension_numbers = #tpu.dot_dimension_numbers<[1], [0], [0], [1], [0, 0, 1, 1], [], []>, precision = #tpu.contract_precision<fp32>} : vector<4x32xf32>, vector<32x128xf32>, vector<4x128xf32> -> vector<4x128xf32>
    %130 = arith.mulf %129, %90 : vector<4x128xf32>
    %131 = vector.extract_strided_slice %130 {offsets = [0, 0], sizes = [4, 64], strides = [1, 1]} : vector<4x128xf32> to vector<4x64xf32>
    %132 = arith.addf %75, %131 : vector<4x64xf32>
    %133 = vector.extract_strided_slice %130 {offsets = [0, 64], sizes = [4, 64], strides = [1, 1]} : vector<4x128xf32> to vector<4x64xf32>
    %134 = arith.subf %132, %133 : vector<4x64xf32>
    %cst_44 = arith.constant dense<0.000000e+00> : vector<4x32xf32>
    %135 = tpu.matmul %83, %2, %cst_44 {dimension_numbers = #tpu.dot_dimension_numbers<[1], [0], [0], [1], [0, 0, 1, 1], [], []>} : vector<4x32xf32>, vector<32x32xf32>, vector<4x32xf32> -> vector<4x32xf32>
    %cst_45 = arith.constant dense<0.000000e+00> : vector<4x32xf32>
    %136 = tpu.matmul %134, %4, %cst_45 {dimension_numbers = #tpu.dot_dimension_numbers<[1], [0], [0], [1], [0, 0, 1, 1], [], []>} : vector<4x64xf32>, vector<64x32xf32>, vector<4x32xf32> -> vector<4x32xf32>
    %137 = arith.addf %135, %136 : vector<4x32xf32>
    %c2 = arith.constant 2 : index
    %c0_46 = arith.constant 0 : index
    %c0_47 = arith.constant 0 : index
    %138 = vector.load %arg1[%c2, %c0_46, %c0_47] : memref<8x4x32xf32, #tpu.memory_space<vmem>>, vector<1x4x32xf32>
    %139 = vector.shape_cast %138 : vector<1x4x32xf32> to vector<4x32xf32>
    %140 = arith.addf %137, %139 : vector<4x32xf32>
    %cst_48 = arith.constant 0.000000e+00 : f32
    %141 = vector.broadcast %cst_48 : f32 to vector<4x32xf32>
    %142 = arith.maximumf %140, %141 : vector<4x32xf32>
    %cst_49 = arith.constant dense<0.000000e+00> : vector<4x192xf32>
    %143 = tpu.matmul %142, %3, %cst_49 {dimension_numbers = #tpu.dot_dimension_numbers<[1], [0], [0], [1], [0, 0, 1, 1], [], []>} : vector<4x32xf32>, vector<32x192xf32>, vector<4x192xf32> -> vector<4x192xf32>
    %cst_50 = arith.constant dense<0.000000e+00> : vector<4x192xf32>
    %144 = tpu.matmul %134, %5, %cst_50 {dimension_numbers = #tpu.dot_dimension_numbers<[1], [0], [0], [1], [0, 0, 1, 1], [], []>} : vector<4x64xf32>, vector<64x192xf32>, vector<4x192xf32> -> vector<4x192xf32>
    %145 = arith.addf %143, %144 : vector<4x192xf32>
    %146 = arith.addf %145, %11 : vector<4x192xf32>
    %147 = vector.extract_strided_slice %146 {offsets = [0, 0], sizes = [4, 32], strides = [1, 1]} : vector<4x192xf32> to vector<4x32xf32>
    %148 = vector.extract_strided_slice %146 {offsets = [0, 32], sizes = [4, 32], strides = [1, 1]} : vector<4x192xf32> to vector<4x32xf32>
    %149 = vector.extract_strided_slice %146 {offsets = [0, 64], sizes = [4, 128], strides = [1, 1]} : vector<4x192xf32> to vector<4x128xf32>
    %150 = math.absf %148 : vector<4x32xf32>
    %151 = arith.mulf %150, %150 : vector<4x32xf32>
    %152 = arith.mulf %151, %151 : vector<4x32xf32>
    %153 = arith.mulf %152, %150 : vector<4x32xf32>
    %154 = math.absf %149 : vector<4x128xf32>
    %155 = arith.mulf %154, %154 : vector<4x128xf32>
    %156 = arith.mulf %155, %155 : vector<4x128xf32>
    %157 = arith.mulf %156, %154 : vector<4x128xf32>
    %cst_51 = arith.constant dense<0.000000e+00> : vector<4x32xf32>
    %158 = tpu.matmul %153, %7, %cst_51 {dimension_numbers = #tpu.dot_dimension_numbers<[1], [0], [0], [1], [0, 0, 1, 1], [], []>, precision = #tpu.contract_precision<fp32>} : vector<4x32xf32>, vector<32x32xf32>, vector<4x32xf32> -> vector<4x32xf32>
    %159 = vector.extract_strided_slice %157 {offsets = [0, 0], sizes = [4, 64], strides = [1, 1]} : vector<4x128xf32> to vector<4x64xf32>
    %cst_52 = arith.constant dense<0.000000e+00> : vector<4xf32>
    %160 = vector.multi_reduction <add>, %159, %cst_52 [1] : vector<4x64xf32> to vector<4xf32>
    %161 = vector.shape_cast %160 : vector<4xf32> to vector<4x1xf32>
    %cst_53 = arith.constant 2.500000e-01 : f32
    %162 = vector.broadcast %cst_53 : f32 to vector<4x1xf32>
    %163 = arith.mulf %161, %162 : vector<4x1xf32>
    %164 = vector.extract_strided_slice %157 {offsets = [0, 64], sizes = [4, 64], strides = [1, 1]} : vector<4x128xf32> to vector<4x64xf32>
    %cst_54 = arith.constant dense<0.000000e+00> : vector<4xf32>
    %165 = vector.multi_reduction <add>, %164, %cst_54 [1] : vector<4x64xf32> to vector<4xf32>
    %166 = vector.shape_cast %165 : vector<4xf32> to vector<4x1xf32>
    %cst_55 = arith.constant 2.500000e-01 : f32
    %167 = vector.broadcast %cst_55 : f32 to vector<4x1xf32>
    %168 = arith.mulf %166, %167 : vector<4x1xf32>
    %c16_i32_56 = arith.constant 16 : i32
    %169 = vector.broadcast %c16_i32_56 : i32 to vector<4x32xi32>
    %170 = arith.cmpi slt, %16, %169 : vector<4x32xi32>
    %171 = vector.shape_cast %163 : vector<4x1xf32> to vector<4x1xf32>
    %172 = vector.broadcast %171 : vector<4x1xf32> to vector<4x32xf32>
    %173 = vector.shape_cast %168 : vector<4x1xf32> to vector<4x1xf32>
    %174 = vector.broadcast %173 : vector<4x1xf32> to vector<4x32xf32>
    %175 = arith.select %170, %172, %174 : vector<4x32xi1>, vector<4x32xf32>
    %176 = arith.mulf %158, %175 : vector<4x32xf32>
    %177 = math.log %176 : vector<4x32xf32>
    %cst_57 = arith.constant 2.000000e-01 : f32
    %178 = vector.broadcast %cst_57 : f32 to vector<4x32xf32>
    %179 = arith.mulf %178, %177 : vector<4x32xf32>
    %180 = math.exp %179 : vector<4x32xf32>
    %cst_58 = arith.constant 9.99999996E-13 : f32
    %181 = vector.broadcast %cst_58 : f32 to vector<4x32xf32>
    %182 = arith.maximumf %180, %181 : vector<4x32xf32>
    %183 = tpu.reciprocal %182 {approx = true} : vector<4x32xf32> -> vector<4x32xf32>
    %cst_59 = arith.constant 2.500000e-01 : f32
    %184 = vector.broadcast %cst_59 : f32 to vector<4x32xf32>
    %185 = arith.mulf %184, %183 : vector<4x32xf32>
    %186 = arith.mulf %147, %185 : vector<4x32xf32>
    %187 = arith.mulf %186, %148 : vector<4x32xf32>
    %cst_60 = arith.constant dense<0.000000e+00> : vector<4x128xf32>
    %188 = tpu.matmul %187, %8, %cst_60 {dimension_numbers = #tpu.dot_dimension_numbers<[1], [0], [0], [1], [0, 0, 1, 1], [], []>, precision = #tpu.contract_precision<fp32>} : vector<4x32xf32>, vector<32x128xf32>, vector<4x128xf32> -> vector<4x128xf32>
    %189 = arith.mulf %188, %149 : vector<4x128xf32>
    %190 = vector.extract_strided_slice %189 {offsets = [0, 0], sizes = [4, 64], strides = [1, 1]} : vector<4x128xf32> to vector<4x64xf32>
    %191 = arith.addf %134, %190 : vector<4x64xf32>
    %192 = vector.extract_strided_slice %189 {offsets = [0, 64], sizes = [4, 64], strides = [1, 1]} : vector<4x128xf32> to vector<4x64xf32>
    %193 = arith.subf %191, %192 : vector<4x64xf32>
    %cst_61 = arith.constant dense<0.000000e+00> : vector<4x32xf32>
    %194 = tpu.matmul %142, %2, %cst_61 {dimension_numbers = #tpu.dot_dimension_numbers<[1], [0], [0], [1], [0, 0, 1, 1], [], []>} : vector<4x32xf32>, vector<32x32xf32>, vector<4x32xf32> -> vector<4x32xf32>
    %cst_62 = arith.constant dense<0.000000e+00> : vector<4x32xf32>
    %195 = tpu.matmul %193, %4, %cst_62 {dimension_numbers = #tpu.dot_dimension_numbers<[1], [0], [0], [1], [0, 0, 1, 1], [], []>} : vector<4x64xf32>, vector<64x32xf32>, vector<4x32xf32> -> vector<4x32xf32>
    %196 = arith.addf %194, %195 : vector<4x32xf32>
    %c3 = arith.constant 3 : index
    %c0_63 = arith.constant 0 : index
    %c0_64 = arith.constant 0 : index
    %197 = vector.load %arg1[%c3, %c0_63, %c0_64] : memref<8x4x32xf32, #tpu.memory_space<vmem>>, vector<1x4x32xf32>
    %198 = vector.shape_cast %197 : vector<1x4x32xf32> to vector<4x32xf32>
    %199 = arith.addf %196, %198 : vector<4x32xf32>
    %cst_65 = arith.constant 0.000000e+00 : f32
    %200 = vector.broadcast %cst_65 : f32 to vector<4x32xf32>
    %201 = arith.maximumf %199, %200 : vector<4x32xf32>
    %cst_66 = arith.constant dense<0.000000e+00> : vector<4x192xf32>
    %202 = tpu.matmul %201, %3, %cst_66 {dimension_numbers = #tpu.dot_dimension_numbers<[1], [0], [0], [1], [0, 0, 1, 1], [], []>} : vector<4x32xf32>, vector<32x192xf32>, vector<4x192xf32> -> vector<4x192xf32>
    %cst_67 = arith.constant dense<0.000000e+00> : vector<4x192xf32>
    %203 = tpu.matmul %193, %5, %cst_67 {dimension_numbers = #tpu.dot_dimension_numbers<[1], [0], [0], [1], [0, 0, 1, 1], [], []>} : vector<4x64xf32>, vector<64x192xf32>, vector<4x192xf32> -> vector<4x192xf32>
    %204 = arith.addf %202, %203 : vector<4x192xf32>
    %205 = arith.addf %204, %11 : vector<4x192xf32>
    %206 = vector.extract_strided_slice %205 {offsets = [0, 0], sizes = [4, 32], strides = [1, 1]} : vector<4x192xf32> to vector<4x32xf32>
    %207 = vector.extract_strided_slice %205 {offsets = [0, 32], sizes = [4, 32], strides = [1, 1]} : vector<4x192xf32> to vector<4x32xf32>
    %208 = vector.extract_strided_slice %205 {offsets = [0, 64], sizes = [4, 128], strides = [1, 1]} : vector<4x192xf32> to vector<4x128xf32>
    %209 = math.absf %207 : vector<4x32xf32>
    %210 = arith.mulf %209, %209 : vector<4x32xf32>
    %211 = arith.mulf %210, %210 : vector<4x32xf32>
    %212 = arith.mulf %211, %209 : vector<4x32xf32>
    %213 = math.absf %208 : vector<4x128xf32>
    %214 = arith.mulf %213, %213 : vector<4x128xf32>
    %215 = arith.mulf %214, %214 : vector<4x128xf32>
    %216 = arith.mulf %215, %213 : vector<4x128xf32>
    %cst_68 = arith.constant dense<0.000000e+00> : vector<4x32xf32>
    %217 = tpu.matmul %212, %7, %cst_68 {dimension_numbers = #tpu.dot_dimension_numbers<[1], [0], [0], [1], [0, 0, 1, 1], [], []>, precision = #tpu.contract_precision<fp32>} : vector<4x32xf32>, vector<32x32xf32>, vector<4x32xf32> -> vector<4x32xf32>
    %218 = vector.extract_strided_slice %216 {offsets = [0, 0], sizes = [4, 64], strides = [1, 1]} : vector<4x128xf32> to vector<4x64xf32>
    %cst_69 = arith.constant dense<0.000000e+00> : vector<4xf32>
    %219 = vector.multi_reduction <add>, %218, %cst_69 [1] : vector<4x64xf32> to vector<4xf32>
    %220 = vector.shape_cast %219 : vector<4xf32> to vector<4x1xf32>
    %cst_70 = arith.constant 2.500000e-01 : f32
    %221 = vector.broadcast %cst_70 : f32 to vector<4x1xf32>
    %222 = arith.mulf %220, %221 : vector<4x1xf32>
    %223 = vector.extract_strided_slice %216 {offsets = [0, 64], sizes = [4, 64], strides = [1, 1]} : vector<4x128xf32> to vector<4x64xf32>
    %cst_71 = arith.constant dense<0.000000e+00> : vector<4xf32>
    %224 = vector.multi_reduction <add>, %223, %cst_71 [1] : vector<4x64xf32> to vector<4xf32>
    %225 = vector.shape_cast %224 : vector<4xf32> to vector<4x1xf32>
    %cst_72 = arith.constant 2.500000e-01 : f32
    %226 = vector.broadcast %cst_72 : f32 to vector<4x1xf32>
    %227 = arith.mulf %225, %226 : vector<4x1xf32>
    %c16_i32_73 = arith.constant 16 : i32
    %228 = vector.broadcast %c16_i32_73 : i32 to vector<4x32xi32>
    %229 = arith.cmpi slt, %16, %228 : vector<4x32xi32>
    %230 = vector.shape_cast %222 : vector<4x1xf32> to vector<4x1xf32>
    %231 = vector.broadcast %230 : vector<4x1xf32> to vector<4x32xf32>
    %232 = vector.shape_cast %227 : vector<4x1xf32> to vector<4x1xf32>
    %233 = vector.broadcast %232 : vector<4x1xf32> to vector<4x32xf32>
    %234 = arith.select %229, %231, %233 : vector<4x32xi1>, vector<4x32xf32>
    %235 = arith.mulf %217, %234 : vector<4x32xf32>
    %236 = math.log %235 : vector<4x32xf32>
    %cst_74 = arith.constant 2.000000e-01 : f32
    %237 = vector.broadcast %cst_74 : f32 to vector<4x32xf32>
    %238 = arith.mulf %237, %236 : vector<4x32xf32>
    %239 = math.exp %238 : vector<4x32xf32>
    %cst_75 = arith.constant 9.99999996E-13 : f32
    %240 = vector.broadcast %cst_75 : f32 to vector<4x32xf32>
    %241 = arith.maximumf %239, %240 : vector<4x32xf32>
    %242 = tpu.reciprocal %241 {approx = true} : vector<4x32xf32> -> vector<4x32xf32>
    %cst_76 = arith.constant 2.500000e-01 : f32
    %243 = vector.broadcast %cst_76 : f32 to vector<4x32xf32>
    %244 = arith.mulf %243, %242 : vector<4x32xf32>
    %245 = arith.mulf %206, %244 : vector<4x32xf32>
    %246 = arith.mulf %245, %207 : vector<4x32xf32>
    %cst_77 = arith.constant dense<0.000000e+00> : vector<4x128xf32>
    %247 = tpu.matmul %246, %8, %cst_77 {dimension_numbers = #tpu.dot_dimension_numbers<[1], [0], [0], [1], [0, 0, 1, 1], [], []>, precision = #tpu.contract_precision<fp32>} : vector<4x32xf32>, vector<32x128xf32>, vector<4x128xf32> -> vector<4x128xf32>
    %248 = arith.mulf %247, %208 : vector<4x128xf32>
    %249 = vector.extract_strided_slice %248 {offsets = [0, 0], sizes = [4, 64], strides = [1, 1]} : vector<4x128xf32> to vector<4x64xf32>
    %250 = arith.addf %193, %249 : vector<4x64xf32>
    %251 = vector.extract_strided_slice %248 {offsets = [0, 64], sizes = [4, 64], strides = [1, 1]} : vector<4x128xf32> to vector<4x64xf32>
    %252 = arith.subf %250, %251 : vector<4x64xf32>
    %cst_78 = arith.constant dense<0.000000e+00> : vector<4x32xf32>
    %253 = tpu.matmul %201, %2, %cst_78 {dimension_numbers = #tpu.dot_dimension_numbers<[1], [0], [0], [1], [0, 0, 1, 1], [], []>} : vector<4x32xf32>, vector<32x32xf32>, vector<4x32xf32> -> vector<4x32xf32>
    %cst_79 = arith.constant dense<0.000000e+00> : vector<4x32xf32>
    %254 = tpu.matmul %252, %4, %cst_79 {dimension_numbers = #tpu.dot_dimension_numbers<[1], [0], [0], [1], [0, 0, 1, 1], [], []>} : vector<4x64xf32>, vector<64x32xf32>, vector<4x32xf32> -> vector<4x32xf32>
    %255 = arith.addf %253, %254 : vector<4x32xf32>
    %c4 = arith.constant 4 : index
    %c0_80 = arith.constant 0 : index
    %c0_81 = arith.constant 0 : index
    %256 = vector.load %arg1[%c4, %c0_80, %c0_81] : memref<8x4x32xf32, #tpu.memory_space<vmem>>, vector<1x4x32xf32>
    %257 = vector.shape_cast %256 : vector<1x4x32xf32> to vector<4x32xf32>
    %258 = arith.addf %255, %257 : vector<4x32xf32>
    %cst_82 = arith.constant 0.000000e+00 : f32
    %259 = vector.broadcast %cst_82 : f32 to vector<4x32xf32>
    %260 = arith.maximumf %258, %259 : vector<4x32xf32>
    %cst_83 = arith.constant dense<0.000000e+00> : vector<4x192xf32>
    %261 = tpu.matmul %260, %3, %cst_83 {dimension_numbers = #tpu.dot_dimension_numbers<[1], [0], [0], [1], [0, 0, 1, 1], [], []>} : vector<4x32xf32>, vector<32x192xf32>, vector<4x192xf32> -> vector<4x192xf32>
    %cst_84 = arith.constant dense<0.000000e+00> : vector<4x192xf32>
    %262 = tpu.matmul %252, %5, %cst_84 {dimension_numbers = #tpu.dot_dimension_numbers<[1], [0], [0], [1], [0, 0, 1, 1], [], []>} : vector<4x64xf32>, vector<64x192xf32>, vector<4x192xf32> -> vector<4x192xf32>
    %263 = arith.addf %261, %262 : vector<4x192xf32>
    %264 = arith.addf %263, %11 : vector<4x192xf32>
    %265 = vector.extract_strided_slice %264 {offsets = [0, 0], sizes = [4, 32], strides = [1, 1]} : vector<4x192xf32> to vector<4x32xf32>
    %266 = vector.extract_strided_slice %264 {offsets = [0, 32], sizes = [4, 32], strides = [1, 1]} : vector<4x192xf32> to vector<4x32xf32>
    %267 = vector.extract_strided_slice %264 {offsets = [0, 64], sizes = [4, 128], strides = [1, 1]} : vector<4x192xf32> to vector<4x128xf32>
    %268 = math.absf %266 : vector<4x32xf32>
    %269 = arith.mulf %268, %268 : vector<4x32xf32>
    %270 = arith.mulf %269, %269 : vector<4x32xf32>
    %271 = arith.mulf %270, %268 : vector<4x32xf32>
    %272 = math.absf %267 : vector<4x128xf32>
    %273 = arith.mulf %272, %272 : vector<4x128xf32>
    %274 = arith.mulf %273, %273 : vector<4x128xf32>
    %275 = arith.mulf %274, %272 : vector<4x128xf32>
    %cst_85 = arith.constant dense<0.000000e+00> : vector<4x32xf32>
    %276 = tpu.matmul %271, %7, %cst_85 {dimension_numbers = #tpu.dot_dimension_numbers<[1], [0], [0], [1], [0, 0, 1, 1], [], []>, precision = #tpu.contract_precision<fp32>} : vector<4x32xf32>, vector<32x32xf32>, vector<4x32xf32> -> vector<4x32xf32>
    %277 = vector.extract_strided_slice %275 {offsets = [0, 0], sizes = [4, 64], strides = [1, 1]} : vector<4x128xf32> to vector<4x64xf32>
    %cst_86 = arith.constant dense<0.000000e+00> : vector<4xf32>
    %278 = vector.multi_reduction <add>, %277, %cst_86 [1] : vector<4x64xf32> to vector<4xf32>
    %279 = vector.shape_cast %278 : vector<4xf32> to vector<4x1xf32>
    %cst_87 = arith.constant 2.500000e-01 : f32
    %280 = vector.broadcast %cst_87 : f32 to vector<4x1xf32>
    %281 = arith.mulf %279, %280 : vector<4x1xf32>
    %282 = vector.extract_strided_slice %275 {offsets = [0, 64], sizes = [4, 64], strides = [1, 1]} : vector<4x128xf32> to vector<4x64xf32>
    %cst_88 = arith.constant dense<0.000000e+00> : vector<4xf32>
    %283 = vector.multi_reduction <add>, %282, %cst_88 [1] : vector<4x64xf32> to vector<4xf32>
    %284 = vector.shape_cast %283 : vector<4xf32> to vector<4x1xf32>
    %cst_89 = arith.constant 2.500000e-01 : f32
    %285 = vector.broadcast %cst_89 : f32 to vector<4x1xf32>
    %286 = arith.mulf %284, %285 : vector<4x1xf32>
    %c16_i32_90 = arith.constant 16 : i32
    %287 = vector.broadcast %c16_i32_90 : i32 to vector<4x32xi32>
    %288 = arith.cmpi slt, %16, %287 : vector<4x32xi32>
    %289 = vector.shape_cast %281 : vector<4x1xf32> to vector<4x1xf32>
    %290 = vector.broadcast %289 : vector<4x1xf32> to vector<4x32xf32>
    %291 = vector.shape_cast %286 : vector<4x1xf32> to vector<4x1xf32>
    %292 = vector.broadcast %291 : vector<4x1xf32> to vector<4x32xf32>
    %293 = arith.select %288, %290, %292 : vector<4x32xi1>, vector<4x32xf32>
    %294 = arith.mulf %276, %293 : vector<4x32xf32>
    %295 = math.log %294 : vector<4x32xf32>
    %cst_91 = arith.constant 2.000000e-01 : f32
    %296 = vector.broadcast %cst_91 : f32 to vector<4x32xf32>
    %297 = arith.mulf %296, %295 : vector<4x32xf32>
    %298 = math.exp %297 : vector<4x32xf32>
    %cst_92 = arith.constant 9.99999996E-13 : f32
    %299 = vector.broadcast %cst_92 : f32 to vector<4x32xf32>
    %300 = arith.maximumf %298, %299 : vector<4x32xf32>
    %301 = tpu.reciprocal %300 {approx = true} : vector<4x32xf32> -> vector<4x32xf32>
    %cst_93 = arith.constant 2.500000e-01 : f32
    %302 = vector.broadcast %cst_93 : f32 to vector<4x32xf32>
    %303 = arith.mulf %302, %301 : vector<4x32xf32>
    %304 = arith.mulf %265, %303 : vector<4x32xf32>
    %305 = arith.mulf %304, %266 : vector<4x32xf32>
    %cst_94 = arith.constant dense<0.000000e+00> : vector<4x128xf32>
    %306 = tpu.matmul %305, %8, %cst_94 {dimension_numbers = #tpu.dot_dimension_numbers<[1], [0], [0], [1], [0, 0, 1, 1], [], []>, precision = #tpu.contract_precision<fp32>} : vector<4x32xf32>, vector<32x128xf32>, vector<4x128xf32> -> vector<4x128xf32>
    %307 = arith.mulf %306, %267 : vector<4x128xf32>
    %308 = vector.extract_strided_slice %307 {offsets = [0, 0], sizes = [4, 64], strides = [1, 1]} : vector<4x128xf32> to vector<4x64xf32>
    %309 = arith.addf %252, %308 : vector<4x64xf32>
    %310 = vector.extract_strided_slice %307 {offsets = [0, 64], sizes = [4, 64], strides = [1, 1]} : vector<4x128xf32> to vector<4x64xf32>
    %311 = arith.subf %309, %310 : vector<4x64xf32>
    %cst_95 = arith.constant dense<0.000000e+00> : vector<4x32xf32>
    %312 = tpu.matmul %260, %2, %cst_95 {dimension_numbers = #tpu.dot_dimension_numbers<[1], [0], [0], [1], [0, 0, 1, 1], [], []>} : vector<4x32xf32>, vector<32x32xf32>, vector<4x32xf32> -> vector<4x32xf32>
    %cst_96 = arith.constant dense<0.000000e+00> : vector<4x32xf32>
    %313 = tpu.matmul %311, %4, %cst_96 {dimension_numbers = #tpu.dot_dimension_numbers<[1], [0], [0], [1], [0, 0, 1, 1], [], []>} : vector<4x64xf32>, vector<64x32xf32>, vector<4x32xf32> -> vector<4x32xf32>
    %314 = arith.addf %312, %313 : vector<4x32xf32>
    %c5 = arith.constant 5 : index
    %c0_97 = arith.constant 0 : index
    %c0_98 = arith.constant 0 : index
    %315 = vector.load %arg1[%c5, %c0_97, %c0_98] : memref<8x4x32xf32, #tpu.memory_space<vmem>>, vector<1x4x32xf32>
    %316 = vector.shape_cast %315 : vector<1x4x32xf32> to vector<4x32xf32>
    %317 = arith.addf %314, %316 : vector<4x32xf32>
    %cst_99 = arith.constant 0.000000e+00 : f32
    %318 = vector.broadcast %cst_99 : f32 to vector<4x32xf32>
    %319 = arith.maximumf %317, %318 : vector<4x32xf32>
    %cst_100 = arith.constant dense<0.000000e+00> : vector<4x192xf32>
    %320 = tpu.matmul %319, %3, %cst_100 {dimension_numbers = #tpu.dot_dimension_numbers<[1], [0], [0], [1], [0, 0, 1, 1], [], []>} : vector<4x32xf32>, vector<32x192xf32>, vector<4x192xf32> -> vector<4x192xf32>
    %cst_101 = arith.constant dense<0.000000e+00> : vector<4x192xf32>
    %321 = tpu.matmul %311, %5, %cst_101 {dimension_numbers = #tpu.dot_dimension_numbers<[1], [0], [0], [1], [0, 0, 1, 1], [], []>} : vector<4x64xf32>, vector<64x192xf32>, vector<4x192xf32> -> vector<4x192xf32>
    %322 = arith.addf %320, %321 : vector<4x192xf32>
    %323 = arith.addf %322, %11 : vector<4x192xf32>
    %324 = vector.extract_strided_slice %323 {offsets = [0, 0], sizes = [4, 32], strides = [1, 1]} : vector<4x192xf32> to vector<4x32xf32>
    %325 = vector.extract_strided_slice %323 {offsets = [0, 32], sizes = [4, 32], strides = [1, 1]} : vector<4x192xf32> to vector<4x32xf32>
    %326 = vector.extract_strided_slice %323 {offsets = [0, 64], sizes = [4, 128], strides = [1, 1]} : vector<4x192xf32> to vector<4x128xf32>
    %327 = math.absf %325 : vector<4x32xf32>
    %328 = arith.mulf %327, %327 : vector<4x32xf32>
    %329 = arith.mulf %328, %328 : vector<4x32xf32>
    %330 = arith.mulf %329, %327 : vector<4x32xf32>
    %331 = math.absf %326 : vector<4x128xf32>
    %332 = arith.mulf %331, %331 : vector<4x128xf32>
    %333 = arith.mulf %332, %332 : vector<4x128xf32>
    %334 = arith.mulf %333, %331 : vector<4x128xf32>
    %cst_102 = arith.constant dense<0.000000e+00> : vector<4x32xf32>
    %335 = tpu.matmul %330, %7, %cst_102 {dimension_numbers = #tpu.dot_dimension_numbers<[1], [0], [0], [1], [0, 0, 1, 1], [], []>, precision = #tpu.contract_precision<fp32>} : vector<4x32xf32>, vector<32x32xf32>, vector<4x32xf32> -> vector<4x32xf32>
    %336 = vector.extract_strided_slice %334 {offsets = [0, 0], sizes = [4, 64], strides = [1, 1]} : vector<4x128xf32> to vector<4x64xf32>
    %cst_103 = arith.constant dense<0.000000e+00> : vector<4xf32>
    %337 = vector.multi_reduction <add>, %336, %cst_103 [1] : vector<4x64xf32> to vector<4xf32>
    %338 = vector.shape_cast %337 : vector<4xf32> to vector<4x1xf32>
    %cst_104 = arith.constant 2.500000e-01 : f32
    %339 = vector.broadcast %cst_104 : f32 to vector<4x1xf32>
    %340 = arith.mulf %338, %339 : vector<4x1xf32>
    %341 = vector.extract_strided_slice %334 {offsets = [0, 64], sizes = [4, 64], strides = [1, 1]} : vector<4x128xf32> to vector<4x64xf32>
    %cst_105 = arith.constant dense<0.000000e+00> : vector<4xf32>
    %342 = vector.multi_reduction <add>, %341, %cst_105 [1] : vector<4x64xf32> to vector<4xf32>
    %343 = vector.shape_cast %342 : vector<4xf32> to vector<4x1xf32>
    %cst_106 = arith.constant 2.500000e-01 : f32
    %344 = vector.broadcast %cst_106 : f32 to vector<4x1xf32>
    %345 = arith.mulf %343, %344 : vector<4x1xf32>
    %c16_i32_107 = arith.constant 16 : i32
    %346 = vector.broadcast %c16_i32_107 : i32 to vector<4x32xi32>
    %347 = arith.cmpi slt, %16, %346 : vector<4x32xi32>
    %348 = vector.shape_cast %340 : vector<4x1xf32> to vector<4x1xf32>
    %349 = vector.broadcast %348 : vector<4x1xf32> to vector<4x32xf32>
    %350 = vector.shape_cast %345 : vector<4x1xf32> to vector<4x1xf32>
    %351 = vector.broadcast %350 : vector<4x1xf32> to vector<4x32xf32>
    %352 = arith.select %347, %349, %351 : vector<4x32xi1>, vector<4x32xf32>
    %353 = arith.mulf %335, %352 : vector<4x32xf32>
    %354 = math.log %353 : vector<4x32xf32>
    %cst_108 = arith.constant 2.000000e-01 : f32
    %355 = vector.broadcast %cst_108 : f32 to vector<4x32xf32>
    %356 = arith.mulf %355, %354 : vector<4x32xf32>
    %357 = math.exp %356 : vector<4x32xf32>
    %cst_109 = arith.constant 9.99999996E-13 : f32
    %358 = vector.broadcast %cst_109 : f32 to vector<4x32xf32>
    %359 = arith.maximumf %357, %358 : vector<4x32xf32>
    %360 = tpu.reciprocal %359 {approx = true} : vector<4x32xf32> -> vector<4x32xf32>
    %cst_110 = arith.constant 2.500000e-01 : f32
    %361 = vector.broadcast %cst_110 : f32 to vector<4x32xf32>
    %362 = arith.mulf %361, %360 : vector<4x32xf32>
    %363 = arith.mulf %324, %362 : vector<4x32xf32>
    %364 = arith.mulf %363, %325 : vector<4x32xf32>
    %cst_111 = arith.constant dense<0.000000e+00> : vector<4x128xf32>
    %365 = tpu.matmul %364, %8, %cst_111 {dimension_numbers = #tpu.dot_dimension_numbers<[1], [0], [0], [1], [0, 0, 1, 1], [], []>, precision = #tpu.contract_precision<fp32>} : vector<4x32xf32>, vector<32x128xf32>, vector<4x128xf32> -> vector<4x128xf32>
    %366 = arith.mulf %365, %326 : vector<4x128xf32>
    %367 = vector.extract_strided_slice %366 {offsets = [0, 0], sizes = [4, 64], strides = [1, 1]} : vector<4x128xf32> to vector<4x64xf32>
    %368 = arith.addf %311, %367 : vector<4x64xf32>
    %369 = vector.extract_strided_slice %366 {offsets = [0, 64], sizes = [4, 64], strides = [1, 1]} : vector<4x128xf32> to vector<4x64xf32>
    %370 = arith.subf %368, %369 : vector<4x64xf32>
    %cst_112 = arith.constant dense<0.000000e+00> : vector<4x32xf32>
    %371 = tpu.matmul %319, %2, %cst_112 {dimension_numbers = #tpu.dot_dimension_numbers<[1], [0], [0], [1], [0, 0, 1, 1], [], []>} : vector<4x32xf32>, vector<32x32xf32>, vector<4x32xf32> -> vector<4x32xf32>
    %cst_113 = arith.constant dense<0.000000e+00> : vector<4x32xf32>
    %372 = tpu.matmul %370, %4, %cst_113 {dimension_numbers = #tpu.dot_dimension_numbers<[1], [0], [0], [1], [0, 0, 1, 1], [], []>} : vector<4x64xf32>, vector<64x32xf32>, vector<4x32xf32> -> vector<4x32xf32>
    %373 = arith.addf %371, %372 : vector<4x32xf32>
    %c6 = arith.constant 6 : index
    %c0_114 = arith.constant 0 : index
    %c0_115 = arith.constant 0 : index
    %374 = vector.load %arg1[%c6, %c0_114, %c0_115] : memref<8x4x32xf32, #tpu.memory_space<vmem>>, vector<1x4x32xf32>
    %375 = vector.shape_cast %374 : vector<1x4x32xf32> to vector<4x32xf32>
    %376 = arith.addf %373, %375 : vector<4x32xf32>
    %cst_116 = arith.constant 0.000000e+00 : f32
    %377 = vector.broadcast %cst_116 : f32 to vector<4x32xf32>
    %378 = arith.maximumf %376, %377 : vector<4x32xf32>
    %cst_117 = arith.constant dense<0.000000e+00> : vector<4x192xf32>
    %379 = tpu.matmul %378, %3, %cst_117 {dimension_numbers = #tpu.dot_dimension_numbers<[1], [0], [0], [1], [0, 0, 1, 1], [], []>} : vector<4x32xf32>, vector<32x192xf32>, vector<4x192xf32> -> vector<4x192xf32>
    %cst_118 = arith.constant dense<0.000000e+00> : vector<4x192xf32>
    %380 = tpu.matmul %370, %5, %cst_118 {dimension_numbers = #tpu.dot_dimension_numbers<[1], [0], [0], [1], [0, 0, 1, 1], [], []>} : vector<4x64xf32>, vector<64x192xf32>, vector<4x192xf32> -> vector<4x192xf32>
    %381 = arith.addf %379, %380 : vector<4x192xf32>
    %382 = arith.addf %381, %11 : vector<4x192xf32>
    %383 = vector.extract_strided_slice %382 {offsets = [0, 0], sizes = [4, 32], strides = [1, 1]} : vector<4x192xf32> to vector<4x32xf32>
    %384 = vector.extract_strided_slice %382 {offsets = [0, 32], sizes = [4, 32], strides = [1, 1]} : vector<4x192xf32> to vector<4x32xf32>
    %385 = vector.extract_strided_slice %382 {offsets = [0, 64], sizes = [4, 128], strides = [1, 1]} : vector<4x192xf32> to vector<4x128xf32>
    %386 = math.absf %384 : vector<4x32xf32>
    %387 = arith.mulf %386, %386 : vector<4x32xf32>
    %388 = arith.mulf %387, %387 : vector<4x32xf32>
    %389 = arith.mulf %388, %386 : vector<4x32xf32>
    %390 = math.absf %385 : vector<4x128xf32>
    %391 = arith.mulf %390, %390 : vector<4x128xf32>
    %392 = arith.mulf %391, %391 : vector<4x128xf32>
    %393 = arith.mulf %392, %390 : vector<4x128xf32>
    %cst_119 = arith.constant dense<0.000000e+00> : vector<4x32xf32>
    %394 = tpu.matmul %389, %7, %cst_119 {dimension_numbers = #tpu.dot_dimension_numbers<[1], [0], [0], [1], [0, 0, 1, 1], [], []>, precision = #tpu.contract_precision<fp32>} : vector<4x32xf32>, vector<32x32xf32>, vector<4x32xf32> -> vector<4x32xf32>
    %395 = vector.extract_strided_slice %393 {offsets = [0, 0], sizes = [4, 64], strides = [1, 1]} : vector<4x128xf32> to vector<4x64xf32>
    %cst_120 = arith.constant dense<0.000000e+00> : vector<4xf32>
    %396 = vector.multi_reduction <add>, %395, %cst_120 [1] : vector<4x64xf32> to vector<4xf32>
    %397 = vector.shape_cast %396 : vector<4xf32> to vector<4x1xf32>
    %cst_121 = arith.constant 2.500000e-01 : f32
    %398 = vector.broadcast %cst_121 : f32 to vector<4x1xf32>
    %399 = arith.mulf %397, %398 : vector<4x1xf32>
    %400 = vector.extract_strided_slice %393 {offsets = [0, 64], sizes = [4, 64], strides = [1, 1]} : vector<4x128xf32> to vector<4x64xf32>
    %cst_122 = arith.constant dense<0.000000e+00> : vector<4xf32>
    %401 = vector.multi_reduction <add>, %400, %cst_122 [1] : vector<4x64xf32> to vector<4xf32>
    %402 = vector.shape_cast %401 : vector<4xf32> to vector<4x1xf32>
    %cst_123 = arith.constant 2.500000e-01 : f32
    %403 = vector.broadcast %cst_123 : f32 to vector<4x1xf32>
    %404 = arith.mulf %402, %403 : vector<4x1xf32>
    %c16_i32_124 = arith.constant 16 : i32
    %405 = vector.broadcast %c16_i32_124 : i32 to vector<4x32xi32>
    %406 = arith.cmpi slt, %16, %405 : vector<4x32xi32>
    %407 = vector.shape_cast %399 : vector<4x1xf32> to vector<4x1xf32>
    %408 = vector.broadcast %407 : vector<4x1xf32> to vector<4x32xf32>
    %409 = vector.shape_cast %404 : vector<4x1xf32> to vector<4x1xf32>
    %410 = vector.broadcast %409 : vector<4x1xf32> to vector<4x32xf32>
    %411 = arith.select %406, %408, %410 : vector<4x32xi1>, vector<4x32xf32>
    %412 = arith.mulf %394, %411 : vector<4x32xf32>
    %413 = math.log %412 : vector<4x32xf32>
    %cst_125 = arith.constant 2.000000e-01 : f32
    %414 = vector.broadcast %cst_125 : f32 to vector<4x32xf32>
    %415 = arith.mulf %414, %413 : vector<4x32xf32>
    %416 = math.exp %415 : vector<4x32xf32>
    %cst_126 = arith.constant 9.99999996E-13 : f32
    %417 = vector.broadcast %cst_126 : f32 to vector<4x32xf32>
    %418 = arith.maximumf %416, %417 : vector<4x32xf32>
    %419 = tpu.reciprocal %418 {approx = true} : vector<4x32xf32> -> vector<4x32xf32>
    %cst_127 = arith.constant 2.500000e-01 : f32
    %420 = vector.broadcast %cst_127 : f32 to vector<4x32xf32>
    %421 = arith.mulf %420, %419 : vector<4x32xf32>
    %422 = arith.mulf %383, %421 : vector<4x32xf32>
    %423 = arith.mulf %422, %384 : vector<4x32xf32>
    %cst_128 = arith.constant dense<0.000000e+00> : vector<4x128xf32>
    %424 = tpu.matmul %423, %8, %cst_128 {dimension_numbers = #tpu.dot_dimension_numbers<[1], [0], [0], [1], [0, 0, 1, 1], [], []>, precision = #tpu.contract_precision<fp32>} : vector<4x32xf32>, vector<32x128xf32>, vector<4x128xf32> -> vector<4x128xf32>
    %425 = arith.mulf %424, %385 : vector<4x128xf32>
    %426 = vector.extract_strided_slice %425 {offsets = [0, 0], sizes = [4, 64], strides = [1, 1]} : vector<4x128xf32> to vector<4x64xf32>
    %427 = arith.addf %370, %426 : vector<4x64xf32>
    %428 = vector.extract_strided_slice %425 {offsets = [0, 64], sizes = [4, 64], strides = [1, 1]} : vector<4x128xf32> to vector<4x64xf32>
    %429 = arith.subf %427, %428 : vector<4x64xf32>
    %cst_129 = arith.constant dense<0.000000e+00> : vector<4x32xf32>
    %430 = tpu.matmul %378, %2, %cst_129 {dimension_numbers = #tpu.dot_dimension_numbers<[1], [0], [0], [1], [0, 0, 1, 1], [], []>} : vector<4x32xf32>, vector<32x32xf32>, vector<4x32xf32> -> vector<4x32xf32>
    %cst_130 = arith.constant dense<0.000000e+00> : vector<4x32xf32>
    %431 = tpu.matmul %429, %4, %cst_130 {dimension_numbers = #tpu.dot_dimension_numbers<[1], [0], [0], [1], [0, 0, 1, 1], [], []>} : vector<4x64xf32>, vector<64x32xf32>, vector<4x32xf32> -> vector<4x32xf32>
    %432 = arith.addf %430, %431 : vector<4x32xf32>
    %c7 = arith.constant 7 : index
    %c0_131 = arith.constant 0 : index
    %c0_132 = arith.constant 0 : index
    %433 = vector.load %arg1[%c7, %c0_131, %c0_132] : memref<8x4x32xf32, #tpu.memory_space<vmem>>, vector<1x4x32xf32>
    %434 = vector.shape_cast %433 : vector<1x4x32xf32> to vector<4x32xf32>
    %435 = arith.addf %432, %434 : vector<4x32xf32>
    %cst_133 = arith.constant 0.000000e+00 : f32
    %436 = vector.broadcast %cst_133 : f32 to vector<4x32xf32>
    %437 = arith.maximumf %435, %436 : vector<4x32xf32>
    %438 = vector.extract_strided_slice %15 {offsets = [0, 0], sizes = [32, 10], strides = [1, 1]} : vector<33x10xf32> to vector<32x10xf32>
    %cst_134 = arith.constant dense<0.000000e+00> : vector<4x10xf32>
    %439 = tpu.matmul %437, %438, %cst_134 {dimension_numbers = #tpu.dot_dimension_numbers<[1], [0], [0], [1], [0, 0, 1, 1], [], []>} : vector<4x32xf32>, vector<32x10xf32>, vector<4x10xf32> -> vector<4x10xf32>
    %440 = vector.extract_strided_slice %15 {offsets = [32, 0], sizes = [1, 10], strides = [1, 1]} : vector<33x10xf32> to vector<1x10xf32>
    %441 = vector.broadcast %440 : vector<1x10xf32> to vector<4x10xf32>
    %442 = arith.addf %439, %441 : vector<4x10xf32>
    %c0_135 = arith.constant 0 : index
    %c0_136 = arith.constant 0 : index
    %443 = vector.load %arg8[%c0_135, %c0_136] : memref<4x10xf32, #tpu.memory_space<vmem>>, vector<4x10xf32>
    tpu.vector_store %arg8[%c0_135, %c0_136], %442 {strides = array<i32>} : memref<4x10xf32, #tpu.memory_space<vmem>>, vector<4x10xf32>,
    return
  }
  func.func @transform_0(%arg0: i32) -> (i32, i32, i32) {
    %c0_i32 = arith.constant 0 : i32
    %c0_i32_0 = arith.constant 0 : i32
    %c0_i32_1 = arith.constant 0 : i32
    %c0_i32_2 = arith.constant 0 : i32
    return %c0_i32, %c0_i32_0, %c0_i32_1 : i32, i32, i32
  }
  func.func @transform_1(%arg0: i32) -> (i32, i32) {
    %c0_i32 = arith.constant 0 : i32
    %c0_i32_0 = arith.constant 0 : i32
    %c0_i32_1 = arith.constant 0 : i32
    return %c0_i32, %c0_i32_0 : i32, i32
  }
  func.func @transform_2(%arg0: i32) -> (i32, i32) {
    %c0_i32 = arith.constant 0 : i32
    %c0_i32_0 = arith.constant 0 : i32
    %c0_i32_1 = arith.constant 0 : i32
    return %c0_i32, %c0_i32_0 : i32, i32
  }
  func.func @transform_3(%arg0: i32) -> (i32, i32) {
    %c0_i32 = arith.constant 0 : i32
    %c0_i32_0 = arith.constant 0 : i32
    %c0_i32_1 = arith.constant 0 : i32
    return %c0_i32, %c0_i32_0 : i32, i32
  }
  func.func @transform_4(%arg0: i32) -> (i32, i32) {
    %c0_i32 = arith.constant 0 : i32
    %c0_i32_0 = arith.constant 0 : i32
    %c0_i32_1 = arith.constant 0 : i32
    return %c0_i32, %c0_i32_0 : i32, i32
  }
  func.func @transform_5(%arg0: i32) -> (i32, i32) {
    %c0_i32 = arith.constant 0 : i32
    %c0_i32_0 = arith.constant 0 : i32
    %c0_i32_1 = arith.constant 0 : i32
    return %c0_i32, %c0_i32_0 : i32, i32
  }
  func.func @transform_6(%arg0: i32) -> (i32, i32) {
    %c0_i32 = arith.constant 0 : i32
    %c0_i32_0 = arith.constant 0 : i32
    %c0_i32_1 = arith.constant 0 : i32
    return %c0_i32, %c0_i32_0 : i32, i32
  }
  func.func @transform_7(%arg0: i32) -> (i32, i32) {
    %c0_i32 = arith.constant 0 : i32
    %c0_i32_0 = arith.constant 0 : i32
    %c0_i32_1 = arith.constant 0 : i32
    return %c0_i32, %c0_i32_0 : i32, i32
  }
}

</mosaic_0001>

<llo_original>
// kernel: nru_forward.1
$region0: #{nru_forward.1}
  #allocation0 [shape = 'u32[]', space=smem, size = 0x4, offset = 0x4, fixed_abs, tag = 'smem constant byte address 0x4 - core index']
  #allocation1 [shape = 'u32[72,128]{1,0:T(1,128)}', space=vmem, size = 0x9000, scoped, tag = 'internal scratch']
  %s0 = inlined_call_operand.vmem [shape: f32[8,4,32], index: 0, kind: input, shape index: {}]
  %s1 = inlined_call_operand.vmem [shape: f32[4,96], index: 1, kind: input, shape index: {}]
  %s2 = inlined_call_operand.vmem [shape: f32[32,224], index: 2, kind: input, shape index: {}]
  %s3 = inlined_call_operand.vmem [shape: f32[64,224], index: 3, kind: input, shape index: {}]
  %s4 = inlined_call_operand.vmem [shape: f32[32,160], index: 4, kind: input, shape index: {}]
  %s5 = inlined_call_operand.vmem [shape: f32[1,192], index: 5, kind: input, shape index: {}]
  %s6 = inlined_call_operand.vmem [shape: f32[33,10], index: 6, kind: input, shape index: {}]
  %s7 = inlined_call_operand.hbm [shape: f32[4,10], index: 7, kind: output, shape index: {}]
  %s8 = sld [smem:[#allocation0]]
  $region38: #{nru_forward.1} parent=0
    _
  %s10 = ssub.s32 1, %s8
  %s11 = scalar_select 0, %s10, %s8
  $region1: #{nru_forward.1} parent=0
    #allocation2 [shape = 'u8[2048]{0}', space=vmem, size = 0x800, scoped, tag = 'output window, operand 0, single buffered']
    #allocation3 [shape = 's32[1]{0}', space=sflag, size = 0x4, scoped, tag = 'scoped memory for nru_forward.1']
    %12 = vsyncpa [#allocation3], 0
    // Predicated region
    $region2: #{nru_forward.1} parent=1 // pred_check
      _
    $region3: #{nru_forward.1} parent=1 // pred_check_branch
      %14 = sbr.rel (0) target = $region5
    $region4: #{nru_forward.1} parent=1 // pred_region
      _
    $region5: #{nru_forward.1} parent=1 // pred_fallthru
      _
    // Predicated region
    $region6: #{nru_forward.1} parent=1 // pred_check
      _
    $region7: #{nru_forward.1} parent=1 // pred_check_branch
      %16 = sbr.rel (0) target = $region9
    $region8: #{nru_forward.1} parent=1 // pred_region
      _
    $region9: #{nru_forward.1} parent=1 // pred_fallthru
      _
    // Predicated region
    $region10: #{nru_forward.1} parent=1 // pred_check
      _
    $region11: #{nru_forward.1} parent=1 // pred_check_branch
      %18 = sbr.rel (0) target = $region13
    $region12: #{nru_forward.1} parent=1 // pred_region
      _
    $region13: #{nru_forward.1} parent=1 // pred_fallthru
      _
    // Predicated region
    $region14: #{nru_forward.1} parent=1 // pred_check
      _
    $region15: #{nru_forward.1} parent=1 // pred_check_branch
      %20 = sbr.rel (0) target = $region17
    $region16: #{nru_forward.1} parent=1 // pred_region
      _
    $region17: #{nru_forward.1} parent=1 // pred_fallthru
      _
    // Predicated region
    $region18: #{nru_forward.1} parent=1 // pred_check
      _
    $region19: #{nru_forward.1} parent=1 // pred_check_branch
      %22 = sbr.rel (0) target = $region21
    $region20: #{nru_forward.1} parent=1 // pred_region
      _
    $region21: #{nru_forward.1} parent=1 // pred_fallthru
      _
    // Predicated region
    $region22: #{nru_forward.1} parent=1 // pred_check
      _
    $region23: #{nru_forward.1} parent=1 // pred_check_branch
      %24 = sbr.rel (0) target = $region25
    $region24: #{nru_forward.1} parent=1 // pred_region
      _
    $region25: #{nru_forward.1} parent=1 // pred_fallthru
      _
    // Predicated region
    $region26: #{nru_forward.1} parent=1 // pred_check
      _
    $region27: #{nru_forward.1} parent=1 // pred_check_branch
      %26 = sbr.rel (0) target = $region29
    $region28: #{nru_forward.1} parent=1 // pred_region
      _
    $region29: #{nru_forward.1} parent=1 // pred_fallthru
      _
    %v27 = vld [vmem:[%s2] sm:$0xff]
    %v28 = vld [vmem:[%s2 + $0x8] sm:$0xff]
    %v29 = vld [vmem:[%s2 + $0x10] sm:$0xff]
    %v30 = vld [vmem:[%s2 + $0x18] sm:$0xff]
    %v31 = vld [vmem:[%s2 + $0x20] sm:$0xff]
    %v32 = vld [vmem:[%s2 + $0x28] sm:$0xff]
    %v33 = vld [vmem:[%s2 + $0x30] sm:$0xff]
    %v34 = vld [vmem:[%s2 + $0x38] sm:$0xff]
    %v35 = vld [vmem:[%s3] sm:$0xff]
    %v36 = vld [vmem:[%s3 + $0x8] sm:$0xff]
    %v37 = vld [vmem:[%s3 + $0x10] sm:$0xff]
    %v38 = vld [vmem:[%s3 + $0x18] sm:$0xff]
    %v39 = vld [vmem:[%s3 + $0x20] sm:$0xff]
    %v40 = vld [vmem:[%s3 + $0x28] sm:$0xff]
    %v41 = vld [vmem:[%s3 + $0x30] sm:$0xff]
    %v42 = vld [vmem:[%s3 + $0x38] sm:$0xff]
    %v43 = vld [vmem:[%s3 + $0x40] sm:$0xff]
    %v44 = vld [vmem:[%s3 + $0x48] sm:$0xff]
    %v45 = vld [vmem:[%s3 + $0x50] sm:$0xff]
    %v46 = vld [vmem:[%s3 + $0x58] sm:$0xff]
    %v47 = vld [vmem:[%s3 + $0x60] sm:$0xff]
    %v48 = vld [vmem:[%s3 + $0x68] sm:$0xff]
    %v49 = vld [vmem:[%s3 + $0x70] sm:$0xff]
    %v50 = vld [vmem:[%s3 + $0x78] sm:$0xff]
    %v51 = vld [vmem:[%s4] sm:$0xff]
    %v52 = vld [vmem:[%s4 + $0x8] sm:$0xff]
    %v53 = vld [vmem:[%s4 + $0x10] sm:$0xff]
    %v54 = vld [vmem:[%s4 + $0x18] sm:$0xff]
    %v55 = vld [vmem:[%s4 + $0x20] sm:$0xff]
    %v56 = vld [vmem:[%s4 + $0x28] sm:$0xff]
    %v57 = vld [vmem:[%s4 + $0x30] sm:$0xff]
    %v58 = vld [vmem:[%s4 + $0x38] sm:$0xff]
    %v59 = vld [vmem:[%s5] sm:$0x3]
    %v61 = vperm.slane %v59, 0
    %v62 = vperm.slane %v59, 1
    %v65 = vld [vmem:[%s1] sm:$0xf]
    %v66 = vld [vmem:[%s6] sm:$0xff]
    %v67 = vld [vmem:[%s6 + $0x8] sm:$0xff]
    %v68 = vld [vmem:[%s6 + $0x10] sm:$0xff]
    %v69 = vld [vmem:[%s6 + $0x18] sm:$0xff]
    %v70 = vld [vmem:[%s6 + $0x20] sm:$0x1]
    %v71 = vlaneseq
    %v72 = vand.u32 %v71, 127
    %74 = vrot.lane.b32.xlu0 %v65, 96
    %v75 = vpop.permute.xlu0 %74
    %vm76 = vcmask 523264
    %v77 = vsel %vm76, %v75, 0
    %79 = vmatpush.msra.mxu0 0.0
    %80 = vmatpush.msra.mxu0 0.0
    %81 = vmatpush.msra.mxu0 0.0
    %82 = vmatpush.msra.mxu0 0.0
    %83 = vmatpush.msra.mxu0 0.0
    %84 = vmatpush.msra.mxu0 0.0
    %85 = vmatpush.msra.mxu0 0.0
    %86 = vmatpush.msra.mxu0 0.0
    %87 = vmatpush.msra.mxu0 %v49
    %88 = vmatpush.msra.mxu0 %v47
    %89 = vmatpush.msra.mxu0 %v45
    %90 = vmatpush.msra.mxu0 %v43
    %91 = vmatpush.msra.mxu0 %v41
    %92 = vmatpush.msra.mxu0 %v39
    %93 = vmatpush.msra.mxu0 %v37
    %94 = vmatpush.msra.mxu0 %v35
    %95 = vmatmul.f32.gmra.mxu0 %v77
    %v96 = vpop.f32.mrf.mxu0
    %v97 = vadd.f32 0.0, %v96
    %98 = vdwg.mxu0
    %vm99 = vcmask 261120
    %v100 = vsel %vm99, %v65, 0
    %102 = vmatpush.msra.mxu0 0.0
    %103 = vmatpush.msra.mxu0 0.0
    %104 = vmatpush.msra.mxu0 0.0
    %105 = vmatpush.msra.mxu0 0.0
    %106 = vmatpush.msra.mxu0 0.0
    %107 = vmatpush.msra.mxu0 0.0
    %108 = vmatpush.msra.mxu0 0.0
    %109 = vmatpush.msra.mxu0 0.0
    %110 = vmatpush.msra.mxu0 0.0
    %111 = vmatpush.msra.mxu0 0.0
    %112 = vmatpush.msra.mxu0 0.0
    %113 = vmatpush.msra.mxu0 0.0
    %114 = vmatpush.msra.mxu0 %v33
    %115 = vmatpush.msra.mxu0 %v31
    %116 = vmatpush.msra.mxu0 %v29
    %117 = vmatpush.msra.mxu0 %v27
    %118 = vmatmul.f32.gmra.mxu0 %v100
    %v119 = vpop.f32.mrf.mxu0
    %v120 = vadd.f32 %v97, %v119
    %121 = vdwg.mxu0
    %v122 = vld [vmem:[%s0] sm:$0xf]
    %v123 = vadd.f32 %v120, %v122
    %v124 = vmax.f32 %v123, 0.0
    %141 = vrot.lane.b32.xlu0 %v35, 96
    %v142 = vpop.permute.xlu0 %141
    %143 = vrot.lane.b32.xlu0 %v36, 96
    %v144 = vpop.permute.xlu0 %143
    %145 = vrot.lane.b32.xlu0 %v37, 96
    %v146 = vpop.permute.xlu0 %145
    %147 = vrot.lane.b32.xlu0 %v38, 96
    %v148 = vpop.permute.xlu0 %147
    %149 = vrot.lane.b32.xlu0 %v39, 96
    %v150 = vpop.permute.xlu0 %149
    %151 = vrot.lane.b32.xlu0 %v40, 96
    %v152 = vpop.permute.xlu0 %151
    %153 = vrot.lane.b32.xlu0 %v41, 96
    %v154 = vpop.permute.xlu0 %153
    %155 = vrot.lane.b32.xlu0 %v42, 96
    %v156 = vpop.permute.xlu0 %155
    %157 = vrot.lane.b32.xlu0 %v43, 96
    %v158 = vpop.permute.xlu0 %157
    %159 = vrot.lane.b32.xlu0 %v44, 96
    %v160 = vpop.permute.xlu0 %159
    %161 = vrot.lane.b32.xlu0 %v45, 96
    %v162 = vpop.permute.xlu0 %161
    %163 = vrot.lane.b32.xlu0 %v46, 96
    %v164 = vpop.permute.xlu0 %163
    %165 = vrot.lane.b32.xlu0 %v47, 96
    %v166 = vpop.permute.xlu0 %165
    %167 = vrot.lane.b32.xlu0 %v48, 96
    %v168 = vpop.permute.xlu0 %167
    %169 = vrot.lane.b32.xlu0 %v49, 96
    %v170 = vpop.permute.xlu0 %169
    %171 = vrot.lane.b32.xlu0 %v50, 96
    %v172 = vpop.permute.xlu0 %171
    %vm173 = vcmask 785408
    %v174 = vsel %vm173, %v142, %v144
    %v175 = vsel %vm173, %v146, %v148
    %v176 = vsel %vm173, %v150, %v152
    %v177 = vsel %vm173, %v154, %v156
    %v178 = vsel %vm173, %v158, %v160
    %v179 = vsel %vm173, %v162, %v164
    %v180 = vsel %vm173, %v166, %v168
    %v181 = vsel %vm173, %v170, %v172
    %198 = vmatpush.msra.mxu0 0.0
    %199 = vmatpush.msra.mxu0 0.0
    %200 = vmatpush.msra.mxu0 0.0
    %201 = vmatpush.msra.mxu0 0.0
    %202 = vmatpush.msra.mxu0 0.0
    %203 = vmatpush.msra.mxu0 0.0
    %204 = vmatpush.msra.mxu0 0.0
    %205 = vmatpush.msra.mxu0 0.0
    %206 = vmatpush.msra.mxu0 %v181
    %207 = vmatpush.msra.mxu0 %v180
    %208 = vmatpush.msra.mxu0 %v179
    %209 = vmatpush.msra.mxu0 %v178
    %210 = vmatpush.msra.mxu0 %v177
    %211 = vmatpush.msra.mxu0 %v176
    %212 = vmatpush.msra.mxu0 %v175
    %213 = vmatpush.msra.mxu0 %v174
    %214 = vmatmul.f32.gmra.mxu0 %v77
    %v215 = vpop.f32.mrf.mxu0
    %v216 = vadd.f32 0.0, %v215
    %217 = vdwg.mxu0
    %218 = vmatpush.msra.mxu0 0.0
    %219 = vmatpush.msra.mxu0 0.0
    %220 = vmatpush.msra.mxu0 0.0
    %221 = vmatpush.msra.mxu0 0.0
    %222 = vmatpush.msra.mxu0 0.0
    %223 = vmatpush.msra.mxu0 0.0
    %224 = vmatpush.msra.mxu0 0.0
    %225 = vmatpush.msra.mxu0 0.0
    %226 = vmatpush.msra.mxu0 %v172
    %227 = vmatpush.msra.mxu0 %v168
    %228 = vmatpush.msra.mxu0 %v164
    %229 = vmatpush.msra.mxu0 %v160
    %230 = vmatpush.msra.mxu0 %v156
    %231 = vmatpush.msra.mxu0 %v152
    %232 = vmatpush.msra.mxu0 %v148
    %233 = vmatpush.msra.mxu0 %v144
    %234 = vmatmul.f32.gmra.mxu0 %v77
    %v235 = vpop.f32.mrf.mxu0
    %v236 = vadd.f32 0.0, %v235
    %237 = vdwg.mxu0
    %246 = vrot.lane.b32.xlu0 %v27, 96
    %v247 = vpop.permute.xlu0 %246
    %248 = vrot.lane.b32.xlu0 %v28, 96
    %v249 = vpop.permute.xlu0 %248
    %250 = vrot.lane.b32.xlu0 %v29, 96
    %v251 = vpop.permute.xlu0 %250
    %252 = vrot.lane.b32.xlu0 %v30, 96
    %v253 = vpop.permute.xlu0 %252
    %254 = vrot.lane.b32.xlu0 %v31, 96
    %v255 = vpop.permute.xlu0 %254
    %256 = vrot.lane.b32.xlu0 %v32, 96
    %v257 = vpop.permute.xlu0 %256
    %258 = vrot.lane.b32.xlu0 %v33, 96
    %v259 = vpop.permute.xlu0 %258
    %260 = vrot.lane.b32.xlu0 %v34, 96
    %v261 = vpop.permute.xlu0 %260
    %v262 = vsel %vm173, %v247, %v249
    %v263 = vsel %vm173, %v251, %v253
    %v264 = vsel %vm173, %v255, %v257
    %v265 = vsel %vm173, %v259, %v261
    %v275 = vsel %vm99, %v124, 0
    %277 = vmatpush.msra.mxu0 0.0
    %278 = vmatpush.msra.mxu0 0.0
    %279 = vmatpush.msra.mxu0 0.0
    %280 = vmatpush.msra.mxu0 0.0
    %281 = vmatpush.msra.mxu0 0.0
    %282 = vmatpush.msra.mxu0 0.0
    %283 = vmatpush.msra.mxu0 0.0
    %284 = vmatpush.msra.mxu0 0.0
    %285 = vmatpush.msra.mxu0 0.0
    %286 = vmatpush.msra.mxu0 0.0
    %287 = vmatpush.msra.mxu0 0.0
    %288 = vmatpush.msra.mxu0 0.0
    %289 = vmatpush.msra.mxu0 %v265
    %290 = vmatpush.msra.mxu0 %v264
    %291 = vmatpush.msra.mxu0 %v263
    %292 = vmatpush.msra.mxu0 %v262
    %293 = vmatmul.f32.gmra.mxu0 %v275
    %v294 = vpop.f32.mrf.mxu0
    %v295 = vadd.f32 %v216, %v294
    %296 = vdwg.mxu0
    %297 = vmatpush.msra.mxu0 0.0
    %298 = vmatpush.msra.mxu0 0.0
    %299 = vmatpush.msra.mxu0 0.0
    %300 = vmatpush.msra.mxu0 0.0
    %301 = vmatpush.msra.mxu0 0.0
    %302 = vmatpush.msra.mxu0 0.0
    %303 = vmatpush.msra.mxu0 0.0
    %304 = vmatpush.msra.mxu0 0.0
    %305 = vmatpush.msra.mxu0 0.0
    %306 = vmatpush.msra.mxu0 0.0
    %307 = vmatpush.msra.mxu0 0.0
    %308 = vmatpush.msra.mxu0 0.0
    %309 = vmatpush.msra.mxu0 %v261
    %310 = vmatpush.msra.mxu0 %v257
    %311 = vmatpush.msra.mxu0 %v253
    %312 = vmatpush.msra.mxu0 %v249
    %313 = vmatmul.f32.gmra.mxu0 %v275
    %v314 = vpop.f32.mrf.mxu0
    %v315 = vadd.f32 %v236, %v314
    %316 = vdwg.mxu0
    %v317 = vadd.f32 %v295, %v61
    %v318 = vadd.f32 %v315, %v62
    %v319 = vand.u32 2147483647, %v317
    %v320 = vmul.f32 %v319, %v319
    %v321 = vmul.f32 %v320, %v320
    %v322 = vmul.f32 %v321, %v319
    %v323 = vand.u32 2147483647, %v318
    %v324 = vmul.f32 %v323, %v323
    %v325 = vmul.f32 %v324, %v324
    %v326 = vmul.f32 %v325, %v323
    %328 = vrot.lane.b32.xlu0 %v322, 96
    %v329 = vpop.permute.xlu0 %328
    %v330 = vsel %vm99, %v329, 0
    %332 = vmatpush.msra.mxu0 0.0
    %333 = vmatpush.msra.mxu0 0.0
    %334 = vmatpush.msra.mxu0 0.0
    %335 = vmatpush.msra.mxu0 0.0
    %336 = vmatpush.msra.mxu0 0.0
    %337 = vmatpush.msra.mxu0 0.0
    %338 = vmatpush.msra.mxu0 0.0
    %339 = vmatpush.msra.mxu0 0.0
    %340 = vmatpush.msra.mxu0 0.0
    %341 = vmatpush.msra.mxu0 0.0
    %342 = vmatpush.msra.mxu0 0.0
    %343 = vmatpush.msra.mxu0 0.0
    %v344 = vand.u32 %v57, 4294901760
    %345 = vmatpush.msra.mxu0 %v344
    %v346 = vand.u32 %v55, 4294901760
    %347 = vmatpush.msra.mxu0 %v346
    %v348 = vand.u32 %v53, 4294901760
    %349 = vmatpush.msra.mxu0 %v348
    %v350 = vand.u32 %v51, 4294901760
    %351 = vmatpush.msra.mxu0 %v350
    %v352 = vand.u32 %v330, 4294901760
    %v353 = vsub.f32 %v330, %v352
    %v354 = vand.u32 %v353, 4294901760
    %v355 = vsub.f32 %v353, %v354
    %v356 = vand.u32 %v355, 4294901760
    %357 = vmatmul.f32.gmra.mxu0 %v356
    %v358 = vpop.f32.mrf.mxu0
    %v359 = vadd.f32 0.0, %v358
    %360 = vdwg.mxu0
    %361 = vmatpush.msra.mxu0 0.0
    %362 = vmatpush.msra.mxu0 0.0
    %363 = vmatpush.msra.mxu0 0.0
    %364 = vmatpush.msra.mxu0 0.0
    %365 = vmatpush.msra.mxu0 0.0
    %366 = vmatpush.msra.mxu0 0.0
    %367 = vmatpush.msra.mxu0 0.0
    %368 = vmatpush.msra.mxu0 0.0
    %369 = vmatpush.msra.mxu0 0.0
    %370 = vmatpush.msra.mxu0 0.0
    %371 = vmatpush.msra.mxu0 0.0
    %372 = vmatpush.msra.mxu0 0.0
    %v373 = vand.u32 %v57, 4294901760
    %v374 = vsub.f32 %v57, %v373
    %v375 = vand.u32 %v374, 4294901760
    %v376 = vsub.f32 %v374, %v375
    %v377 = vand.u32 %v376, 4294901760
    %378 = vmatpush.msra.mxu0 %v377
    %v379 = vand.u32 %v55, 4294901760
    %v380 = vsub.f32 %v55, %v379
    %v381 = vand.u32 %v380, 4294901760
    %v382 = vsub.f32 %v380, %v381
    %v383 = vand.u32 %v382, 4294901760
    %384 = vmatpush.msra.mxu0 %v383
    %v385 = vand.u32 %v53, 4294901760
    %v386 = vsub.f32 %v53, %v385
    %v387 = vand.u32 %v386, 4294901760
    %v388 = vsub.f32 %v386, %v387
    %v389 = vand.u32 %v388, 4294901760
    %390 = vmatpush.msra.mxu0 %v389
    %v391 = vand.u32 %v51, 4294901760
    %v392 = vsub.f32 %v51, %v391
    %v393 = vand.u32 %v392, 4294901760
    %v394 = vsub.f32 %v392, %v393
    %v395 = vand.u32 %v394, 4294901760
    %396 = vmatpush.msra.mxu0 %v395
    %v397 = vand.u32 %v330, 4294901760
    %398 = vmatmul.f32.gmra.mxu0 %v397
    %v399 = vpop.f32.mrf.mxu0
    %v400 = vadd.f32 %v359, %v399
    %401 = vdwg.mxu0
    %402 = vmatpush.msra.mxu0 0.0
    %403 = vmatpush.msra.mxu0 0.0
    %404 = vmatpush.msra.mxu0 0.0
    %405 = vmatpush.msra.mxu0 0.0
    %406 = vmatpush.msra.mxu0 0.0
    %407 = vmatpush.msra.mxu0 0.0
    %408 = vmatpush.msra.mxu0 0.0
    %409 = vmatpush.msra.mxu0 0.0
    %410 = vmatpush.msra.mxu0 0.0
    %411 = vmatpush.msra.mxu0 0.0
    %412 = vmatpush.msra.mxu0 0.0
    %413 = vmatpush.msra.mxu0 0.0
    %v414 = vand.u32 %v57, 4294901760
    %v415 = vsub.f32 %v57, %v414
    %416 = vmatpush.msra.mxu0 %v415
    %v417 = vand.u32 %v55, 4294901760
    %v418 = vsub.f32 %v55, %v417
    %419 = vmatpush.msra.mxu0 %v418
    %v420 = vand.u32 %v53, 4294901760
    %v421 = vsub.f32 %v53, %v420
    %422 = vmatpush.msra.mxu0 %v421
    %v423 = vand.u32 %v51, 4294901760
    %v424 = vsub.f32 %v51, %v423
    %425 = vmatpush.msra.mxu0 %v424
    %v426 = vand.u32 %v330, 4294901760
    %v427 = vsub.f32 %v330, %v426
    %428 = vmatmul.f32.gmra.mxu0 %v427
    %v429 = vpop.f32.mrf.mxu0
    %v430 = vadd.f32 %v400, %v429
    %431 = vdwg.mxu0
    %432 = vmatpush.msra.mxu0 0.0
    %433 = vmatpush.msra.mxu0 0.0
    %434 = vmatpush.msra.mxu0 0.0
    %435 = vmatpush.msra.mxu0 0.0
    %436 = vmatpush.msra.mxu0 0.0
    %437 = vmatpush.msra.mxu0 0.0
    %438 = vmatpush.msra.mxu0 0.0
    %439 = vmatpush.msra.mxu0 0.0
    %440 = vmatpush.msra.mxu0 0.0
    %441 = vmatpush.msra.mxu0 0.0
    %442 = vmatpush.msra.mxu0 0.0
    %443 = vmatpush.msra.mxu0 0.0
    %v444 = vand.u32 %v57, 4294901760
    %445 = vmatpush.msra.mxu0 %v444
    %v446 = vand.u32 %v55, 4294901760
    %447 = vmatpush.msra.mxu0 %v446
    %v448 = vand.u32 %v53, 4294901760
    %449 = vmatpush.msra.mxu0 %v448
    %v450 = vand.u32 %v51, 4294901760
    %451 = vmatpush.msra.mxu0 %v450
    %v452 = vand.u32 %v330, 4294901760
    %v453 = vsub.f32 %v330, %v452
    %v454 = vand.u32 %v453, 4294901760
    %455 = vmatmul.f32.gmra.mxu0 %v454
    %v456 = vpop.f32.mrf.mxu0
    %v457 = vadd.f32 %v430, %v456
    %458 = vdwg.mxu0
    %459 = vmatpush.msra.mxu0 0.0
    %460 = vmatpush.msra.mxu0 0.0
    %461 = vmatpush.msra.mxu0 0.0
    %462 = vmatpush.msra.mxu0 0.0
    %463 = vmatpush.msra.mxu0 0.0
    %464 = vmatpush.msra.mxu0 0.0
    %465 = vmatpush.msra.mxu0 0.0
    %466 = vmatpush.msra.mxu0 0.0
    %467 = vmatpush.msra.mxu0 0.0
    %468 = vmatpush.msra.mxu0 0.0
    %469 = vmatpush.msra.mxu0 0.0
    %470 = vmatpush.msra.mxu0 0.0
    %v471 = vand.u32 %v57, 4294901760
    %v472 = vsub.f32 %v57, %v471
    %v473 = vand.u32 %v472, 4294901760
    %474 = vmatpush.msra.mxu0 %v473
    %v475 = vand.u32 %v55, 4294901760
    %v476 = vsub.f32 %v55, %v475
    %v477 = vand.u32 %v476, 4294901760
    %478 = vmatpush.msra.mxu0 %v477
    %v479 = vand.u32 %v53, 4294901760
    %v480 = vsub.f32 %v53, %v479
    %v481 = vand.u32 %v480, 4294901760
    %482 = vmatpush.msra.mxu0 %v481
    %v483 = vand.u32 %v51, 4294901760
    %v484 = vsub.f32 %v51, %v483
    %v485 = vand.u32 %v484, 4294901760
    %486 = vmatpush.msra.mxu0 %v485
    %v487 = vand.u32 %v330, 4294901760
    %488 = vmatmul.f32.gmra.mxu0 %v487
    %v489 = vpop.f32.mrf.mxu0
    %v490 = vadd.f32 %v457, %v489
    %491 = vdwg.mxu0
    %492 = vmatpush.msra.mxu0 0.0
    %493 = vmatpush.msra.mxu0 0.0
    %494 = vmatpush.msra.mxu0 0.0
    %495 = vmatpush.msra.mxu0 0.0
    %496 = vmatpush.msra.mxu0 0.0
    %497 = vmatpush.msra.mxu0 0.0
    %498 = vmatpush.msra.mxu0 0.0
    %499 = vmatpush.msra.mxu0 0.0
    %500 = vmatpush.msra.mxu0 0.0
    %501 = vmatpush.msra.mxu0 0.0
    %502 = vmatpush.msra.mxu0 0.0
    %503 = vmatpush.msra.mxu0 0.0
    %v504 = vand.u32 %v57, 4294901760
    %505 = vmatpush.msra.mxu0 %v504
    %v506 = vand.u32 %v55, 4294901760
    %507 = vmatpush.msra.mxu0 %v506
    %v508 = vand.u32 %v53, 4294901760
    %509 = vmatpush.msra.mxu0 %v508
    %v510 = vand.u32 %v51, 4294901760
    %511 = vmatpush.msra.mxu0 %v510
    %v512 = vand.u32 %v330, 4294901760
    %513 = vmatmul.f32.gmra.mxu0 %v512
    %v514 = vpop.f32.mrf.mxu0
    %v515 = vadd.f32 %v490, %v514
    %516 = vdwg.mxu0
    %517 = vrot.lane.b32.xlu0 %v322, 64
    %v518 = vpop.permute.xlu0 %517
    %vm520 = vcmask 519168
    %v521 = vsel %vm520, %v518, 0.0
    %522 = vadd.xlane.f32.xlu0 %v521
    %v523 = vpop.xlane.xlu0 %522
    %v524 = vmul.f32 %v523, 0.25
    %v525 = vsel %vm520, %v326, 0.0
    %526 = vadd.xlane.f32.xlu0 %v525
    %v527 = vpop.xlane.xlu0 %526
    %v528 = vmul.f32 %v527, 0.25
    %vm529 = vcmp.lt.s32.totalorder %v72, 16
    %v530 = vsel %vm529, %v524, %v528
    %v531 = vmul.f32 %v515, %v530
    %v532 = vlog2.pop %v531
    %v533 = vmul.f32 %v532, 0.6931472
    %v534 = vmul.f32 %v533, 0.2
    %v535 = vmul.f32 %v534, 1.442695
    %v536 = vpow.pop %v535
    %v537 = vmax.f32 %v536, 1e-12
    %v538 = vrcp.pop %v537
    %v539 = vmul.f32 %v538, 0.25
    %v540 = vmul.f32 %v317, %v539
    %542 = vrot.lane.b32.xlu0 %v317, 96
    %v543 = vpop.permute.xlu0 %542
    %v545 = vmul.f32 %v540, %v543
    %554 = vrot.lane.b32.xlu0 %v51, 96
    %v555 = vpop.permute.xlu0 %554
    %556 = vrot.lane.b32.xlu0 %v52, 96
    %v557 = vpop.permute.xlu0 %556
    %558 = vrot.lane.b32.xlu0 %v53, 96
    %v559 = vpop.permute.xlu0 %558
    %560 = vrot.lane.b32.xlu0 %v54, 96
    %v561 = vpop.permute.xlu0 %560
    %562 = vrot.lane.b32.xlu0 %v55, 96
    %v563 = vpop.permute.xlu0 %562
    %564 = vrot.lane.b32.xlu0 %v56, 96
    %v565 = vpop.permute.xlu0 %564
    %566 = vrot.lane.b32.xlu0 %v57, 96
    %v567 = vpop.permute.xlu0 %566
    %568 = vrot.lane.b32.xlu0 %v58, 96
    %v569 = vpop.permute.xlu0 %568
    %v570 = vsel %vm173, %v555, %v557
    %v571 = vsel %vm173, %v559, %v561
    %v572 = vsel %vm173, %v563, %v565
    %v573 = vsel %vm173, %v567, %v569
    %v579 = vsel %vm99, %v545, 0
    %581 = vmatpush.msra.mxu0 0.0
    %582 = vmatpush.msra.mxu0 0.0
    %583 = vmatpush.msra.mxu0 0.0
    %584 = vmatpush.msra.mxu0 0.0
    %585 = vmatpush.msra.mxu0 0.0
    %586 = vmatpush.msra.mxu0 0.0
    %587 = vmatpush.msra.mxu0 0.0
    %588 = vmatpush.msra.mxu0 0.0
    %589 = vmatpush.msra.mxu0 0.0
    %590 = vmatpush.msra.mxu0 0.0
    %591 = vmatpush.msra.mxu0 0.0
    %592 = vmatpush.msra.mxu0 0.0
    %v593 = vand.u32 %v573, 4294901760
    %594 = vmatpush.msra.mxu0 %v593
    %v595 = vand.u32 %v572, 4294901760
    %596 = vmatpush.msra.mxu0 %v595
    %v597 = vand.u32 %v571, 4294901760
    %598 = vmatpush.msra.mxu0 %v597
    %v599 = vand.u32 %v570, 4294901760
    %600 = vmatpush.msra.mxu0 %v599
    %v601 = vand.u32 %v579, 4294901760
    %v602 = vsub.f32 %v579, %v601
    %v603 = vand.u32 %v602, 4294901760
    %v604 = vsub.f32 %v602, %v603
    %v605 = vand.u32 %v604, 4294901760
    %606 = vmatmul.f32.gmra.mxu0 %v605
    %v607 = vpop.f32.mrf.mxu0
    %v608 = vadd.f32 0.0, %v607
    %609 = vdwg.mxu0
    %610 = vmatpush.msra.mxu0 0.0
    %611 = vmatpush.msra.mxu0 0.0
    %612 = vmatpush.msra.mxu0 0.0
    %613 = vmatpush.msra.mxu0 0.0
    %614 = vmatpush.msra.mxu0 0.0
    %615 = vmatpush.msra.mxu0 0.0
    %616 = vmatpush.msra.mxu0 0.0
    %617 = vmatpush.msra.mxu0 0.0
    %618 = vmatpush.msra.mxu0 0.0
    %619 = vmatpush.msra.mxu0 0.0
    %620 = vmatpush.msra.mxu0 0.0
    %621 = vmatpush.msra.mxu0 0.0
    %v622 = vand.u32 %v573, 4294901760
    %v623 = vsub.f32 %v573, %v622
    %v624 = vand.u32 %v623, 4294901760
    %v625 = vsub.f32 %v623, %v624
    %v626 = vand.u32 %v625, 4294901760
    %627 = vmatpush.msra.mxu0 %v626
    %v628 = vand.u32 %v572, 4294901760
    %v629 = vsub.f32 %v572, %v628
    %v630 = vand.u32 %v629, 4294901760
    %v631 = vsub.f32 %v629, %v630
    %v632 = vand.u32 %v631, 4294901760
    %633 = vmatpush.msra.mxu0 %v632
    %v634 = vand.u32 %v571, 4294901760
    %v635 = vsub.f32 %v571, %v634
    %v636 = vand.u32 %v635, 4294901760
    %v637 = vsub.f32 %v635, %v636
    %v638 = vand.u32 %v637, 4294901760
    %639 = vmatpush.msra.mxu0 %v638
    %v640 = vand.u32 %v570, 4294901760
    %v641 = vsub.f32 %v570, %v640
    %v642 = vand.u32 %v641, 4294901760
    %v643 = vsub.f32 %v641, %v642
    %v644 = vand.u32 %v643, 4294901760
    %645 = vmatpush.msra.mxu0 %v644
    %v646 = vand.u32 %v579, 4294901760
    %647 = vmatmul.f32.gmra.mxu0 %v646
    %v648 = vpop.f32.mrf.mxu0
    %v649 = vadd.f32 %v608, %v648
    %650 = vdwg.mxu0
    %651 = vmatpush.msra.mxu0 0.0
    %652 = vmatpush.msra.mxu0 0.0
    %653 = vmatpush.msra.mxu0 0.0
    %654 = vmatpush.msra.mxu0 0.0
    %655 = vmatpush.msra.mxu0 0.0
    %656 = vmatpush.msra.mxu0 0.0
    %657 = vmatpush.msra.mxu0 0.0
    %658 = vmatpush.msra.mxu0 0.0
    %659 = vmatpush.msra.mxu0 0.0
    %660 = vmatpush.msra.mxu0 0.0
    %661 = vmatpush.msra.mxu0 0.0
    %662 = vmatpush.msra.mxu0 0.0
    %v663 = vand.u32 %v573, 4294901760
    %v664 = vsub.f32 %v573, %v663
    %665 = vmatpush.msra.mxu0 %v664
    %v666 = vand.u32 %v572, 4294901760
    %v667 = vsub.f32 %v572, %v666
    %668 = vmatpush.msra.mxu0 %v667
    %v669 = vand.u32 %v571, 4294901760
    %v670 = vsub.f32 %v571, %v669
    %671 = vmatpush.msra.mxu0 %v670
    %v672 = vand.u32 %v570, 4294901760
    %v673 = vsub.f32 %v570, %v672
    %674 = vmatpush.msra.mxu0 %v673
    %v675 = vand.u32 %v579, 4294901760
    %v676 = vsub.f32 %v579, %v675
    %677 = vmatmul.f32.gmra.mxu0 %v676
    %v678 = vpop.f32.mrf.mxu0
    %v679 = vadd.f32 %v649, %v678
    %680 = vdwg.mxu0
    %681 = vmatpush.msra.mxu0 0.0
    %682 = vmatpush.msra.mxu0 0.0
    %683 = vmatpush.msra.mxu0 0.0
    %684 = vmatpush.msra.mxu0 0.0
    %685 = vmatpush.msra.mxu0 0.0
    %686 = vmatpush.msra.mxu0 0.0
    %687 = vmatpush.msra.mxu0 0.0
    %688 = vmatpush.msra.mxu0 0.0
    %689 = vmatpush.msra.mxu0 0.0
    %690 = vmatpush.msra.mxu0 0.0
    %691 = vmatpush.msra.mxu0 0.0
    %692 = vmatpush.msra.mxu0 0.0
    %v693 = vand.u32 %v573, 4294901760
    %694 = vmatpush.msra.mxu0 %v693
    %v695 = vand.u32 %v572, 4294901760
    %696 = vmatpush.msra.mxu0 %v695
    %v697 = vand.u32 %v571, 4294901760
    %698 = vmatpush.msra.mxu0 %v697
    %v699 = vand.u32 %v570, 4294901760
    %700 = vmatpush.msra.mxu0 %v699
    %v701 = vand.u32 %v579, 4294901760
    %v702 = vsub.f32 %v579, %v701
    %v703 = vand.u32 %v702, 4294901760
    %704 = vmatmul.f32.gmra.mxu0 %v703
    %v705 = vpop.f32.mrf.mxu0
    %v706 = vadd.f32 %v679, %v705
    %707 = vdwg.mxu0
    %708 = vmatpush.msra.mxu0 0.0
    %709 = vmatpush.msra.mxu0 0.0
    %710 = vmatpush.msra.mxu0 0.0
    %711 = vmatpush.msra.mxu0 0.0
    %712 = vmatpush.msra.mxu0 0.0
    %713 = vmatpush.msra.mxu0 0.0
    %714 = vmatpush.msra.mxu0 0.0
    %715 = vmatpush.msra.mxu0 0.0
    %716 = vmatpush.msra.mxu0 0.0
    %717 = vmatpush.msra.mxu0 0.0
    %718 = vmatpush.msra.mxu0 0.0
    %719 = vmatpush.msra.mxu0 0.0
    %v720 = vand.u32 %v573, 4294901760
    %v721 = vsub.f32 %v573, %v720
    %v722 = vand.u32 %v721, 4294901760
    %723 = vmatpush.msra.mxu0 %v722
    %v724 = vand.u32 %v572, 4294901760
    %v725 = vsub.f32 %v572, %v724
    %v726 = vand.u32 %v725, 4294901760
    %727 = vmatpush.msra.mxu0 %v726
    %v728 = vand.u32 %v571, 4294901760
    %v729 = vsub.f32 %v571, %v728
    %v730 = vand.u32 %v729, 4294901760
    %731 = vmatpush.msra.mxu0 %v730
    %v732 = vand.u32 %v570, 4294901760
    %v733 = vsub.f32 %v570, %v732
    %v734 = vand.u32 %v733, 4294901760
    %735 = vmatpush.msra.mxu0 %v734
    %v736 = vand.u32 %v579, 4294901760
    %737 = vmatmul.f32.gmra.mxu0 %v736
    %v738 = vpop.f32.mrf.mxu0
    %v739 = vadd.f32 %v706, %v738
    %740 = vdwg.mxu0
    %741 = vmatpush.msra.mxu0 0.0
    %742 = vmatpush.msra.mxu0 0.0
    %743 = vmatpush.msra.mxu0 0.0
    %744 = vmatpush.msra.mxu0 0.0
    %745 = vmatpush.msra.mxu0 0.0
    %746 = vmatpush.msra.mxu0 0.0
    %747 = vmatpush.msra.mxu0 0.0
    %748 = vmatpush.msra.mxu0 0.0
    %749 = vmatpush.msra.mxu0 0.0
    %750 = vmatpush.msra.mxu0 0.0
    %751 = vmatpush.msra.mxu0 0.0
    %752 = vmatpush.msra.mxu0 0.0
    %v753 = vand.u32 %v573, 4294901760
    %754 = vmatpush.msra.mxu0 %v753
    %v755 = vand.u32 %v572, 4294901760
    %756 = vmatpush.msra.mxu0 %v755
    %v757 = vand.u32 %v571, 4294901760
    %758 = vmatpush.msra.mxu0 %v757
    %v759 = vand.u32 %v570, 4294901760
    %760 = vmatpush.msra.mxu0 %v759
    %v761 = vand.u32 %v579, 4294901760
    %762 = vmatmul.f32.gmra.mxu0 %v761
    %v763 = vpop.f32.mrf.mxu0
    %v764 = vadd.f32 %v739, %v763
    %765 = vdwg.mxu0
    %767 = vrot.lane.b32.xlu0 %v317, 64
    %v768 = vpop.permute.xlu0 %767
    %769 = vrot.lane.b32.xlu0 %v318, 64
    %v770 = vpop.permute.xlu0 %769
    %v771 = vsel %vm76, %v768, %v770
    %v773 = vmul.f32 %v764, %v771
    %775 = vrot.lane.b32.xlu0 %v773, 32
    %v776 = vpop.permute.xlu0 %775
    %v778 = vadd.f32 %v65, %v776
    %779 = vrot.lane.b32.xlu0 %v773, 96
    %v780 = vpop.permute.xlu0 %779
    %v782 = vsub.f32 %v778, %v780
    %784 = vrot.lane.b32.xlu0 %v782, 96
    %v785 = vpop.permute.xlu0 %784
    %v786 = vsel %vm76, %v785, 0
    %788 = vmatpush.msra.mxu0 0.0
    %789 = vmatpush.msra.mxu0 0.0
    %790 = vmatpush.msra.mxu0 0.0
    %791 = vmatpush.msra.mxu0 0.0
    %792 = vmatpush.msra.mxu0 0.0
    %793 = vmatpush.msra.mxu0 0.0
    %794 = vmatpush.msra.mxu0 0.0
    %795 = vmatpush.msra.mxu0 0.0
    %796 = vmatpush.msra.mxu0 %v49
    %797 = vmatpush.msra.mxu0 %v47
    %798 = vmatpush.msra.mxu0 %v45
    %799 = vmatpush.msra.mxu0 %v43
    %800 = vmatpush.msra.mxu0 %v41
    %801 = vmatpush.msra.mxu0 %v39
    %802 = vmatpush.msra.mxu0 %v37
    %803 = vmatpush.msra.mxu0 %v35
    %804 = vmatmul.f32.gmra.mxu0 %v786
    %v805 = vpop.f32.mrf.mxu0
    %v806 = vadd.f32 0.0, %v805
    %807 = vdwg.mxu0
    %808 = vmatpush.msra.mxu0 0.0
    %809 = vmatpush.msra.mxu0 0.0
    %810 = vmatpush.msra.mxu0 0.0
    %811 = vmatpush.msra.mxu0 0.0
    %812 = vmatpush.msra.mxu0 0.0
    %813 = vmatpush.msra.mxu0 0.0
    %814 = vmatpush.msra.mxu0 0.0
    %815 = vmatpush.msra.mxu0 0.0
    %816 = vmatpush.msra.mxu0 0.0
    %817 = vmatpush.msra.mxu0 0.0
    %818 = vmatpush.msra.mxu0 0.0
    %819 = vmatpush.msra.mxu0 0.0
    %820 = vmatpush.msra.mxu0 %v33
    %821 = vmatpush.msra.mxu0 %v31
    %822 = vmatpush.msra.mxu0 %v29
    %823 = vmatpush.msra.mxu0 %v27
    %824 = vmatmul.f32.gmra.mxu0 %v275
    %v825 = vpop.f32.mrf.mxu0
    %v826 = vadd.f32 %v806, %v825
    %827 = vdwg.mxu0
    %s828 = scalar_lea.vmem %s0, 4
    %v829 = vld [vmem:[%s828] sm:$0xf]
    %v830 = vadd.f32 %v826, %v829
    %v831 = vmax.f32 %v830, 0.0
    %832 = vmatpush.msra.mxu0 0.0
    %833 = vmatpush.msra.mxu0 0.0
    %834 = vmatpush.msra.mxu0 0.0
    %835 = vmatpush.msra.mxu0 0.0
    %836 = vmatpush.msra.mxu0 0.0
    %837 = vmatpush.msra.mxu0 0.0
    %838 = vmatpush.msra.mxu0 0.0
    %839 = vmatpush.msra.mxu0 0.0
    %840 = vmatpush.msra.mxu0 %v181
    %841 = vmatpush.msra.mxu0 %v180
    %842 = vmatpush.msra.mxu0 %v179
    %843 = vmatpush.msra.mxu0 %v178
    %844 = vmatpush.msra.mxu0 %v177
    %845 = vmatpush.msra.mxu0 %v176
    %846 = vmatpush.msra.mxu0 %v175
    %847 = vmatpush.msra.mxu0 %v174
    %848 = vmatmul.f32.gmra.mxu0 %v786
    %v849 = vpop.f32.mrf.mxu0
    %v850 = vadd.f32 0.0, %v849
    %851 = vdwg.mxu0
    %852 = vmatpush.msra.mxu0 0.0
    %853 = vmatpush.msra.mxu0 0.0
    %854 = vmatpush.msra.mxu0 0.0
    %855 = vmatpush.msra.mxu0 0.0
    %856 = vmatpush.msra.mxu0 0.0
    %857 = vmatpush.msra.mxu0 0.0
    %858 = vmatpush.msra.mxu0 0.0
    %859 = vmatpush.msra.mxu0 0.0
    %860 = vmatpush.msra.mxu0 %v172
    %861 = vmatpush.msra.mxu0 %v168
    %862 = vmatpush.msra.mxu0 %v164
    %863 = vmatpush.msra.mxu0 %v160
    %864 = vmatpush.msra.mxu0 %v156
    %865 = vmatpush.msra.mxu0 %v152
    %866 = vmatpush.msra.mxu0 %v148
    %867 = vmatpush.msra.mxu0 %v144
    %868 = vmatmul.f32.gmra.mxu0 %v786
    %v869 = vpop.f32.mrf.mxu0
    %v870 = vadd.f32 0.0, %v869
    %871 = vdwg.mxu0
    %v873 = vsel %vm99, %v831, 0
    %875 = vmatpush.msra.mxu0 0.0
    %876 = vmatpush.msra.mxu0 0.0
    %877 = vmatpush.msra.mxu0 0.0
    %878 = vmatpush.msra.mxu0 0.0
    %879 = vmatpush.msra.mxu0 0.0
    %880 = vmatpush.msra.mxu0 0.0
    %881 = vmatpush.msra.mxu0 0.0
    %882 = vmatpush.msra.mxu0 0.0
    %883 = vmatpush.msra.mxu0 0.0
    %884 = vmatpush.msra.mxu0 0.0
    %885 = vmatpush.msra.mxu0 0.0
    %886 = vmatpush.msra.mxu0 0.0
    %887 = vmatpush.msra.mxu0 %v265
    %888 = vmatpush.msra.mxu0 %v264
    %889 = vmatpush.msra.mxu0 %v263
    %890 = vmatpush.msra.mxu0 %v262
    %891 = vmatmul.f32.gmra.mxu0 %v873
    %v892 = vpop.f32.mrf.mxu0
    %v893 = vadd.f32 %v850, %v892
    %894 = vdwg.mxu0
    %895 = vmatpush.msra.mxu0 0.0
    %896 = vmatpush.msra.mxu0 0.0
    %897 = vmatpush.msra.mxu0 0.0
    %898 = vmatpush.msra.mxu0 0.0
    %899 = vmatpush.msra.mxu0 0.0
    %900 = vmatpush.msra.mxu0 0.0
    %901 = vmatpush.msra.mxu0 0.0
    %902 = vmatpush.msra.mxu0 0.0
    %903 = vmatpush.msra.mxu0 0.0
    %904 = vmatpush.msra.mxu0 0.0
    %905 = vmatpush.msra.mxu0 0.0
    %906 = vmatpush.msra.mxu0 0.0
    %907 = vmatpush.msra.mxu0 %v261
    %908 = vmatpush.msra.mxu0 %v257
    %909 = vmatpush.msra.mxu0 %v253
    %910 = vmatpush.msra.mxu0 %v249
    %911 = vmatmul.f32.gmra.mxu0 %v873
    %v912 = vpop.f32.mrf.mxu0
    %v913 = vadd.f32 %v870, %v912
    %914 = vdwg.mxu0
    %v915 = vadd.f32 %v893, %v61
    %v916 = vadd.f32 %v913, %v62
    %v917 = vand.u32 2147483647, %v915
    %v918 = vmul.f32 %v917, %v917
    %v919 = vmul.f32 %v918, %v918
    %v920 = vmul.f32 %v919, %v917
    %v921 = vand.u32 2147483647, %v916
    %v922 = vmul.f32 %v921, %v921
    %v923 = vmul.f32 %v922, %v922
    %v924 = vmul.f32 %v923, %v921
    %926 = vrot.lane.b32.xlu0 %v920, 96
    %v927 = vpop.permute.xlu0 %926
    %v928 = vsel %vm99, %v927, 0
    %930 = vmatpush.msra.mxu0 0.0
    %931 = vmatpush.msra.mxu0 0.0
    %932 = vmatpush.msra.mxu0 0.0
    %933 = vmatpush.msra.mxu0 0.0
    %934 = vmatpush.msra.mxu0 0.0
    %935 = vmatpush.msra.mxu0 0.0
    %936 = vmatpush.msra.mxu0 0.0
    %937 = vmatpush.msra.mxu0 0.0
    %938 = vmatpush.msra.mxu0 0.0
    %939 = vmatpush.msra.mxu0 0.0
    %940 = vmatpush.msra.mxu0 0.0
    %941 = vmatpush.msra.mxu0 0.0
    %v942 = vand.u32 %v57, 4294901760
    %943 = vmatpush.msra.mxu0 %v942
    %v944 = vand.u32 %v55, 4294901760
    %945 = vmatpush.msra.mxu0 %v944
    %v946 = vand.u32 %v53, 4294901760
    %947 = vmatpush.msra.mxu0 %v946
    %v948 = vand.u32 %v51, 4294901760
    %949 = vmatpush.msra.mxu0 %v948
    %v950 = vand.u32 %v928, 4294901760
    %v951 = vsub.f32 %v928, %v950
    %v952 = vand.u32 %v951, 4294901760
    %v953 = vsub.f32 %v951, %v952
    %v954 = vand.u32 %v953, 4294901760
    %955 = vmatmul.f32.gmra.mxu0 %v954
    %v956 = vpop.f32.mrf.mxu0
    %v957 = vadd.f32 0.0, %v956
    %958 = vdwg.mxu0
    %959 = vmatpush.msra.mxu0 0.0
    %960 = vmatpush.msra.mxu0 0.0
    %961 = vmatpush.msra.mxu0 0.0
    %962 = vmatpush.msra.mxu0 0.0
    %963 = vmatpush.msra.mxu0 0.0
    %964 = vmatpush.msra.mxu0 0.0
    %965 = vmatpush.msra.mxu0 0.0
    %966 = vmatpush.msra.mxu0 0.0
    %967 = vmatpush.msra.mxu0 0.0
    %968 = vmatpush.msra.mxu0 0.0
    %969 = vmatpush.msra.mxu0 0.0
    %970 = vmatpush.msra.mxu0 0.0
    %v971 = vand.u32 %v57, 4294901760
    %v972 = vsub.f32 %v57, %v971
    %v973 = vand.u32 %v972, 4294901760
    %v974 = vsub.f32 %v972, %v973
    %v975 = vand.u32 %v974, 4294901760
    %976 = vmatpush.msra.mxu0 %v975
    %v977 = vand.u32 %v55, 4294901760
    %v978 = vsub.f32 %v55, %v977
    %v979 = vand.u32 %v978, 4294901760
    %v980 = vsub.f32 %v978, %v979
    %v981 = vand.u32 %v980, 4294901760
    %982 = vmatpush.msra.mxu0 %v981
    %v983 = vand.u32 %v53, 4294901760
    %v984 = vsub.f32 %v53, %v983
    %v985 = vand.u32 %v984, 4294901760
    %v986 = vsub.f32 %v984, %v985
    %v987 = vand.u32 %v986, 4294901760
    %988 = vmatpush.msra.mxu0 %v987
    %v989 = vand.u32 %v51, 4294901760
    %v990 = vsub.f32 %v51, %v989
    %v991 = vand.u32 %v990, 4294901760
    %v992 = vsub.f32 %v990, %v991
    %v993 = vand.u32 %v992, 4294901760
    %994 = vmatpush.msra.mxu0 %v993
    %v995 = vand.u32 %v928, 4294901760
    %996 = vmatmul.f32.gmra.mxu0 %v995
    %v997 = vpop.f32.mrf.mxu0
    %v998 = vadd.f32 %v957, %v997
    %999 = vdwg.mxu0
    %1000 = vmatpush.msra.mxu0 0.0
    %1001 = vmatpush.msra.mxu0 0.0
    %1002 = vmatpush.msra.mxu0 0.0
    %1003 = vmatpush.msra.mxu0 0.0
    %1004 = vmatpush.msra.mxu0 0.0
    %1005 = vmatpush.msra.mxu0 0.0
    %1006 = vmatpush.msra.mxu0 0.0
    %1007 = vmatpush.msra.mxu0 0.0
    %1008 = vmatpush.msra.mxu0 0.0
    %1009 = vmatpush.msra.mxu0 0.0
    %1010 = vmatpush.msra.mxu0 0.0
    %1011 = vmatpush.msra.mxu0 0.0
    %v1012 = vand.u32 %v57, 4294901760
    %v1013 = vsub.f32 %v57, %v1012
    %1014 = vmatpush.msra.mxu0 %v1013
    %v1015 = vand.u32 %v55, 4294901760
    %v1016 = vsub.f32 %v55, %v1015
    %1017 = vmatpush.msra.mxu0 %v1016
    %v1018 = vand.u32 %v53, 4294901760
    %v1019 = vsub.f32 %v53, %v1018
    %1020 = vmatpush.msra.mxu0 %v1019
    %v1021 = vand.u32 %v51, 4294901760
    %v1022 = vsub.f32 %v51, %v1021
    %1023 = vmatpush.msra.mxu0 %v1022
    %v1024 = vand.u32 %v928, 4294901760
    %v1025 = vsub.f32 %v928, %v1024
    %1026 = vmatmul.f32.gmra.mxu0 %v1025
    %v1027 = vpop.f32.mrf.mxu0
    %v1028 = vadd.f32 %v998, %v1027
    %1029 = vdwg.mxu0
    %1030 = vmatpush.msra.mxu0 0.0
    %1031 = vmatpush.msra.mxu0 0.0
    %1032 = vmatpush.msra.mxu0 0.0
    %1033 = vmatpush.msra.mxu0 0.0
    %1034 = vmatpush.msra.mxu0 0.0
    %1035 = vmatpush.msra.mxu0 0.0
    %1036 = vmatpush.msra.mxu0 0.0
    %1037 = vmatpush.msra.mxu0 0.0
    %1038 = vmatpush.msra.mxu0 0.0
    %1039 = vmatpush.msra.mxu0 0.0
    %1040 = vmatpush.msra.mxu0 0.0
    %1041 = vmatpush.msra.mxu0 0.0
    %v1042 = vand.u32 %v57, 4294901760
    %1043 = vmatpush.msra.mxu0 %v1042
    %v1044 = vand.u32 %v55, 4294901760
    %1045 = vmatpush.msra.mxu0 %v1044
    %v1046 = vand.u32 %v53, 4294901760
    %1047 = vmatpush.msra.mxu0 %v1046
    %v1048 = vand.u32 %v51, 4294901760
    %1049 = vmatpush.msra.mxu0 %v1048
    %v1050 = vand.u32 %v928, 4294901760
    %v1051 = vsub.f32 %v928, %v1050
    %v1052 = vand.u32 %v1051, 4294901760
    %1053 = vmatmul.f32.gmra.mxu0 %v1052
    %v1054 = vpop.f32.mrf.mxu0
    %v1055 = vadd.f32 %v1028, %v1054
    %1056 = vdwg.mxu0
    %1057 = vmatpush.msra.mxu0 0.0
    %1058 = vmatpush.msra.mxu0 0.0
    %1059 = vmatpush.msra.mxu0 0.0
    %1060 = vmatpush.msra.mxu0 0.0
    %1061 = vmatpush.msra.mxu0 0.0
    %1062 = vmatpush.msra.mxu0 0.0
    %1063 = vmatpush.msra.mxu0 0.0
    %1064 = vmatpush.msra.mxu0 0.0
    %1065 = vmatpush.msra.mxu0 0.0
    %1066 = vmatpush.msra.mxu0 0.0
    %1067 = vmatpush.msra.mxu0 0.0
    %1068 = vmatpush.msra.mxu0 0.0
    %v1069 = vand.u32 %v57, 4294901760
    %v1070 = vsub.f32 %v57, %v1069
    %v1071 = vand.u32 %v1070, 4294901760
    %1072 = vmatpush.msra.mxu0 %v1071
    %v1073 = vand.u32 %v55, 4294901760
    %v1074 = vsub.f32 %v55, %v1073
    %v1075 = vand.u32 %v1074, 4294901760
    %1076 = vmatpush.msra.mxu0 %v1075
    %v1077 = vand.u32 %v53, 4294901760
    %v1078 = vsub.f32 %v53, %v1077
    %v1079 = vand.u32 %v1078, 4294901760
    %1080 = vmatpush.msra.mxu0 %v1079
    %v1081 = vand.u32 %v51, 4294901760
    %v1082 = vsub.f32 %v51, %v1081
    %v1083 = vand.u32 %v1082, 4294901760
    %1084 = vmatpush.msra.mxu0 %v1083
    %v1085 = vand.u32 %v928, 4294901760
    %1086 = vmatmul.f32.gmra.mxu0 %v1085
    %v1087 = vpop.f32.mrf.mxu0
    %v1088 = vadd.f32 %v1055, %v1087
    %1089 = vdwg.mxu0
    %1090 = vmatpush.msra.mxu0 0.0
    %1091 = vmatpush.msra.mxu0 0.0
    %1092 = vmatpush.msra.mxu0 0.0
    %1093 = vmatpush.msra.mxu0 0.0
    %1094 = vmatpush.msra.mxu0 0.0
    %1095 = vmatpush.msra.mxu0 0.0
    %1096 = vmatpush.msra.mxu0 0.0
    %1097 = vmatpush.msra.mxu0 0.0
    %1098 = vmatpush.msra.mxu0 0.0
    %1099 = vmatpush.msra.mxu0 0.0
    %1100 = vmatpush.msra.mxu0 0.0
    %1101 = vmatpush.msra.mxu0 0.0
    %v1102 = vand.u32 %v57, 4294901760
    %1103 = vmatpush.msra.mxu0 %v1102
    %v1104 = vand.u32 %v55, 4294901760
    %1105 = vmatpush.msra.mxu0 %v1104
    %v1106 = vand.u32 %v53, 4294901760
    %1107 = vmatpush.msra.mxu0 %v1106
    %v1108 = vand.u32 %v51, 4294901760
    %1109 = vmatpush.msra.mxu0 %v1108
    %v1110 = vand.u32 %v928, 4294901760
    %1111 = vmatmul.f32.gmra.mxu0 %v1110
    %v1112 = vpop.f32.mrf.mxu0
    %v1113 = vadd.f32 %v1088, %v1112
    %1114 = vdwg.mxu0
    %1115 = vrot.lane.b32.xlu0 %v920, 64
    %v1116 = vpop.permute.xlu0 %1115
    %v1118 = vsel %vm520, %v1116, 0.0
    %1119 = vadd.xlane.f32.xlu0 %v1118
    %v1120 = vpop.xlane.xlu0 %1119
    %v1121 = vmul.f32 %v1120, 0.25
    %v1122 = vsel %vm520, %v924, 0.0
    %1123 = vadd.xlane.f32.xlu0 %v1122
    %v1124 = vpop.xlane.xlu0 %1123
    %v1125 = vmul.f32 %v1124, 0.25
    %v1126 = vsel %vm529, %v1121, %v1125
    %v1127 = vmul.f32 %v1113, %v1126
    %v1128 = vlog2.pop %v1127
    %v1129 = vmul.f32 %v1128, 0.6931472
    %v1130 = vmul.f32 %v1129, 0.2
    %v1131 = vmul.f32 %v1130, 1.442695
    %v1132 = vpow.pop %v1131
    %v1133 = vmax.f32 %v1132, 1e-12
    %v1134 = vrcp.pop %v1133
    %v1135 = vmul.f32 %v1134, 0.25
    %v1136 = vmul.f32 %v915, %v1135
    %1138 = vrot.lane.b32.xlu0 %v915, 96
    %v1139 = vpop.permute.xlu0 %1138
    %v1141 = vmul.f32 %v1136, %v1139
    %v1143 = vsel %vm99, %v1141, 0
    %1145 = vmatpush.msra.mxu0 0.0
    %1146 = vmatpush.msra.mxu0 0.0
    %1147 = vmatpush.msra.mxu0 0.0
    %1148 = vmatpush.msra.mxu0 0.0
    %1149 = vmatpush.msra.mxu0 0.0
    %1150 = vmatpush.msra.mxu0 0.0
    %1151 = vmatpush.msra.mxu0 0.0
    %1152 = vmatpush.msra.mxu0 0.0
    %1153 = vmatpush.msra.mxu0 0.0
    %1154 = vmatpush.msra.mxu0 0.0
    %1155 = vmatpush.msra.mxu0 0.0
    %1156 = vmatpush.msra.mxu0 0.0
    %v1157 = vand.u32 %v573, 4294901760
    %1158 = vmatpush.msra.mxu0 %v1157
    %v1159 = vand.u32 %v572, 4294901760
    %1160 = vmatpush.msra.mxu0 %v1159
    %v1161 = vand.u32 %v571, 4294901760
    %1162 = vmatpush.msra.mxu0 %v1161
    %v1163 = vand.u32 %v570, 4294901760
    %1164 = vmatpush.msra.mxu0 %v1163
    %v1165 = vand.u32 %v1143, 4294901760
    %v1166 = vsub.f32 %v1143, %v1165
    %v1167 = vand.u32 %v1166, 4294901760
    %v1168 = vsub.f32 %v1166, %v1167
    %v1169 = vand.u32 %v1168, 4294901760
    %1170 = vmatmul.f32.gmra.mxu0 %v1169
    %v1171 = vpop.f32.mrf.mxu0
    %v1172 = vadd.f32 0.0, %v1171
    %1173 = vdwg.mxu0
    %1174 = vmatpush.msra.mxu0 0.0
    %1175 = vmatpush.msra.mxu0 0.0
    %1176 = vmatpush.msra.mxu0 0.0
    %1177 = vmatpush.msra.mxu0 0.0
    %1178 = vmatpush.msra.mxu0 0.0
    %1179 = vmatpush.msra.mxu0 0.0
    %1180 = vmatpush.msra.mxu0 0.0
    %1181 = vmatpush.msra.mxu0 0.0
    %1182 = vmatpush.msra.mxu0 0.0
    %1183 = vmatpush.msra.mxu0 0.0
    %1184 = vmatpush.msra.mxu0 0.0
    %1185 = vmatpush.msra.mxu0 0.0
    %v1186 = vand.u32 %v573, 4294901760
    %v1187 = vsub.f32 %v573, %v1186
    %v1188 = vand.u32 %v1187, 4294901760
    %v1189 = vsub.f32 %v1187, %v1188
    %v1190 = vand.u32 %v1189, 4294901760
    %1191 = vmatpush.msra.mxu0 %v1190
    %v1192 = vand.u32 %v572, 4294901760
    %v1193 = vsub.f32 %v572, %v1192
    %v1194 = vand.u32 %v1193, 4294901760
    %v1195 = vsub.f32 %v1193, %v1194
    %v1196 = vand.u32 %v1195, 4294901760
    %1197 = vmatpush.msra.mxu0 %v1196
    %v1198 = vand.u32 %v571, 4294901760
    %v1199 = vsub.f32 %v571, %v1198
    %v1200 = vand.u32 %v1199, 4294901760
    %v1201 = vsub.f32 %v1199, %v1200
    %v1202 = vand.u32 %v1201, 4294901760
    %1203 = vmatpush.msra.mxu0 %v1202
    %v1204 = vand.u32 %v570, 4294901760
    %v1205 = vsub.f32 %v570, %v1204
    %v1206 = vand.u32 %v1205, 4294901760
    %v1207 = vsub.f32 %v1205, %v1206
    %v1208 = vand.u32 %v1207, 4294901760
    %1209 = vmatpush.msra.mxu0 %v1208
    %v1210 = vand.u32 %v1143, 4294901760
    %1211 = vmatmul.f32.gmra.mxu0 %v1210
    %v1212 = vpop.f32.mrf.mxu0
    %v1213 = vadd.f32 %v1172, %v1212
    %1214 = vdwg.mxu0
    %1215 = vmatpush.msra.mxu0 0.0
    %1216 = vmatpush.msra.mxu0 0.0
    %1217 = vmatpush.msra.mxu0 0.0
    %1218 = vmatpush.msra.mxu0 0.0
    %1219 = vmatpush.msra.mxu0 0.0
    %1220 = vmatpush.msra.mxu0 0.0
    %1221 = vmatpush.msra.mxu0 0.0
    %1222 = vmatpush.msra.mxu0 0.0
    %1223 = vmatpush.msra.mxu0 0.0
    %1224 = vmatpush.msra.mxu0 0.0
    %1225 = vmatpush.msra.mxu0 0.0
    %1226 = vmatpush.msra.mxu0 0.0
    %v1227 = vand.u32 %v573, 4294901760
    %v1228 = vsub.f32 %v573, %v1227
    %1229 = vmatpush.msra.mxu0 %v1228
    %v1230 = vand.u32 %v572, 4294901760
    %v1231 = vsub.f32 %v572, %v1230
    %1232 = vmatpush.msra.mxu0 %v1231
    %v1233 = vand.u32 %v571, 4294901760
    %v1234 = vsub.f32 %v571, %v1233
    %1235 = vmatpush.msra.mxu0 %v1234
    %v1236 = vand.u32 %v570, 4294901760
    %v1237 = vsub.f32 %v570, %v1236
    %1238 = vmatpush.msra.mxu0 %v1237
    %v1239 = vand.u32 %v1143, 4294901760
    %v1240 = vsub.f32 %v1143, %v1239
    %1241 = vmatmul.f32.gmra.mxu0 %v1240
    %v1242 = vpop.f32.mrf.mxu0
    %v1243 = vadd.f32 %v1213, %v1242
    %1244 = vdwg.mxu0
    %1245 = vmatpush.msra.mxu0 0.0
    %1246 = vmatpush.msra.mxu0 0.0
    %1247 = vmatpush.msra.mxu0 0.0
    %1248 = vmatpush.msra.mxu0 0.0
    %1249 = vmatpush.msra.mxu0 0.0
    %1250 = vmatpush.msra.mxu0 0.0
    %1251 = vmatpush.msra.mxu0 0.0
    %1252 = vmatpush.msra.mxu0 0.0
    %1253 = vmatpush.msra.mxu0 0.0
    %1254 = vmatpush.msra.mxu0 0.0
    %1255 = vmatpush.msra.mxu0 0.0
    %1256 = vmatpush.msra.mxu0 0.0
    %v1257 = vand.u32 %v573, 4294901760
    %1258 = vmatpush.msra.mxu0 %v1257
    %v1259 = vand.u32 %v572, 4294901760
    %1260 = vmatpush.msra.mxu0 %v1259
    %v1261 = vand.u32 %v571, 4294901760
    %1262 = vmatpush.msra.mxu0 %v1261
    %v1263 = vand.u32 %v570, 4294901760
    %1264 = vmatpush.msra.mxu0 %v1263
    %v1265 = vand.u32 %v1143, 4294901760
    %v1266 = vsub.f32 %v1143, %v1265
    %v1267 = vand.u32 %v1266, 4294901760
    %1268 = vmatmul.f32.gmra.mxu0 %v1267
    %v1269 = vpop.f32.mrf.mxu0
    %v1270 = vadd.f32 %v1243, %v1269
    %1271 = vdwg.mxu0
    %1272 = vmatpush.msra.mxu0 0.0
    %1273 = vmatpush.msra.mxu0 0.0
    %1274 = vmatpush.msra.mxu0 0.0
    %1275 = vmatpush.msra.mxu0 0.0
    %1276 = vmatpush.msra.mxu0 0.0
    %1277 = vmatpush.msra.mxu0 0.0
    %1278 = vmatpush.msra.mxu0 0.0
    %1279 = vmatpush.msra.mxu0 0.0
    %1280 = vmatpush.msra.mxu0 0.0
    %1281 = vmatpush.msra.mxu0 0.0
    %1282 = vmatpush.msra.mxu0 0.0
    %1283 = vmatpush.msra.mxu0 0.0
    %v1284 = vand.u32 %v573, 4294901760
    %v1285 = vsub.f32 %v573, %v1284
    %v1286 = vand.u32 %v1285, 4294901760
    %1287 = vmatpush.msra.mxu0 %v1286
    %v1288 = vand.u32 %v572, 4294901760
    %v1289 = vsub.f32 %v572, %v1288
    %v1290 = vand.u32 %v1289, 4294901760
    %1291 = vmatpush.msra.mxu0 %v1290
    %v1292 = vand.u32 %v571, 4294901760
    %v1293 = vsub.f32 %v571, %v1292
    %v1294 = vand.u32 %v1293, 4294901760
    %1295 = vmatpush.msra.mxu0 %v1294
    %v1296 = vand.u32 %v570, 4294901760
    %v1297 = vsub.f32 %v570, %v1296
    %v1298 = vand.u32 %v1297, 4294901760
    %1299 = vmatpush.msra.mxu0 %v1298
    %v1300 = vand.u32 %v1143, 4294901760
    %1301 = vmatmul.f32.gmra.mxu0 %v1300
    %v1302 = vpop.f32.mrf.mxu0
    %v1303 = vadd.f32 %v1270, %v1302
    %1304 = vdwg.mxu0
    %1305 = vmatpush.msra.mxu0 0.0
    %1306 = vmatpush.msra.mxu0 0.0
    %1307 = vmatpush.msra.mxu0 0.0
    %1308 = vmatpush.msra.mxu0 0.0
    %1309 = vmatpush.msra.mxu0 0.0
    %1310 = vmatpush.msra.mxu0 0.0
    %1311 = vmatpush.msra.mxu0 0.0
    %1312 = vmatpush.msra.mxu0 0.0
    %1313 = vmatpush.msra.mxu0 0.0
    %1314 = vmatpush.msra.mxu0 0.0
    %1315 = vmatpush.msra.mxu0 0.0
    %1316 = vmatpush.msra.mxu0 0.0
    %v1317 = vand.u32 %v573, 4294901760
    %1318 = vmatpush.msra.mxu0 %v1317
    %v1319 = vand.u32 %v572, 4294901760
    %1320 = vmatpush.msra.mxu0 %v1319
    %v1321 = vand.u32 %v571, 4294901760
    %1322 = vmatpush.msra.mxu0 %v1321
    %v1323 = vand.u32 %v570, 4294901760
    %1324 = vmatpush.msra.mxu0 %v1323
    %v1325 = vand.u32 %v1143, 4294901760
    %1326 = vmatmul.f32.gmra.mxu0 %v1325
    %v1327 = vpop.f32.mrf.mxu0
    %v1328 = vadd.f32 %v1303, %v1327
    %1329 = vdwg.mxu0
    %1331 = vrot.lane.b32.xlu0 %v915, 64
    %v1332 = vpop.permute.xlu0 %1331
    %1333 = vrot.lane.b32.xlu0 %v916, 64
    %v1334 = vpop.permute.xlu0 %1333
    %v1335 = vsel %vm76, %v1332, %v1334
    %v1337 = vmul.f32 %v1328, %v1335
    %1339 = vrot.lane.b32.xlu0 %v1337, 32
    %v1340 = vpop.permute.xlu0 %1339
    %v1342 = vadd.f32 %v782, %v1340
    %1343 = vrot.lane.b32.xlu0 %v1337, 96
    %v1344 = vpop.permute.xlu0 %1343
    %v1346 = vsub.f32 %v1342, %v1344
    %1348 = vrot.lane.b32.xlu0 %v1346, 96
    %v1349 = vpop.permute.xlu0 %1348
    %v1350 = vsel %vm76, %v1349, 0
    %1352 = vmatpush.msra.mxu0 0.0
    %1353 = vmatpush.msra.mxu0 0.0
    %1354 = vmatpush.msra.mxu0 0.0
    %1355 = vmatpush.msra.mxu0 0.0
    %1356 = vmatpush.msra.mxu0 0.0
    %1357 = vmatpush.msra.mxu0 0.0
    %1358 = vmatpush.msra.mxu0 0.0
    %1359 = vmatpush.msra.mxu0 0.0
    %1360 = vmatpush.msra.mxu0 %v49
    %1361 = vmatpush.msra.mxu0 %v47
    %1362 = vmatpush.msra.mxu0 %v45
    %1363 = vmatpush.msra.mxu0 %v43
    %1364 = vmatpush.msra.mxu0 %v41
    %1365 = vmatpush.msra.mxu0 %v39
    %1366 = vmatpush.msra.mxu0 %v37
    %1367 = vmatpush.msra.mxu0 %v35
    %1368 = vmatmul.f32.gmra.mxu0 %v1350
    %v1369 = vpop.f32.mrf.mxu0
    %v1370 = vadd.f32 0.0, %v1369
    %1371 = vdwg.mxu0
    %1372 = vmatpush.msra.mxu0 0.0
    %1373 = vmatpush.msra.mxu0 0.0
    %1374 = vmatpush.msra.mxu0 0.0
    %1375 = vmatpush.msra.mxu0 0.0
    %1376 = vmatpush.msra.mxu0 0.0
    %1377 = vmatpush.msra.mxu0 0.0
    %1378 = vmatpush.msra.mxu0 0.0
    %1379 = vmatpush.msra.mxu0 0.0
    %1380 = vmatpush.msra.mxu0 0.0
    %1381 = vmatpush.msra.mxu0 0.0
    %1382 = vmatpush.msra.mxu0 0.0
    %1383 = vmatpush.msra.mxu0 0.0
    %1384 = vmatpush.msra.mxu0 %v33
    %1385 = vmatpush.msra.mxu0 %v31
    %1386 = vmatpush.msra.mxu0 %v29
    %1387 = vmatpush.msra.mxu0 %v27
    %1388 = vmatmul.f32.gmra.mxu0 %v873
    %v1389 = vpop.f32.mrf.mxu0
    %v1390 = vadd.f32 %v1370, %v1389
    %1391 = vdwg.mxu0
    %s1392 = scalar_lea.vmem %s0, 8
    %v1393 = vld [vmem:[%s1392] sm:$0xf]
    %v1394 = vadd.f32 %v1390, %v1393
    %v1395 = vmax.f32 %v1394, 0.0
    %1396 = vmatpush.msra.mxu0 0.0
    %1397 = vmatpush.msra.mxu0 0.0
    %1398 = vmatpush.msra.mxu0 0.0
    %1399 = vmatpush.msra.mxu0 0.0
    %1400 = vmatpush.msra.mxu0 0.0
    %1401 = vmatpush.msra.mxu0 0.0
    %1402 = vmatpush.msra.mxu0 0.0
    %1403 = vmatpush.msra.mxu0 0.0
    %1404 = vmatpush.msra.mxu0 %v181
    %1405 = vmatpush.msra.mxu0 %v180
    %1406 = vmatpush.msra.mxu0 %v179
    %1407 = vmatpush.msra.mxu0 %v178
    %1408 = vmatpush.msra.mxu0 %v177
    %1409 = vmatpush.msra.mxu0 %v176
    %1410 = vmatpush.msra.mxu0 %v175
    %1411 = vmatpush.msra.mxu0 %v174
    %1412 = vmatmul.f32.gmra.mxu0 %v1350
    %v1413 = vpop.f32.mrf.mxu0
    %v1414 = vadd.f32 0.0, %v1413
    %1415 = vdwg.mxu0
    %1416 = vmatpush.msra.mxu0 0.0
    %1417 = vmatpush.msra.mxu0 0.0
    %1418 = vmatpush.msra.mxu0 0.0
    %1419 = vmatpush.msra.mxu0 0.0
    %1420 = vmatpush.msra.mxu0 0.0
    %1421 = vmatpush.msra.mxu0 0.0
    %1422 = vmatpush.msra.mxu0 0.0
    %1423 = vmatpush.msra.mxu0 0.0
    %1424 = vmatpush.msra.mxu0 %v172
    %1425 = vmatpush.msra.mxu0 %v168
    %1426 = vmatpush.msra.mxu0 %v164
    %1427 = vmatpush.msra.mxu0 %v160
    %1428 = vmatpush.msra.mxu0 %v156
    %1429 = vmatpush.msra.mxu0 %v152
    %1430 = vmatpush.msra.mxu0 %v148
    %1431 = vmatpush.msra.mxu0 %v144
    %1432 = vmatmul.f32.gmra.mxu0 %v1350
    %v1433 = vpop.f32.mrf.mxu0
    %v1434 = vadd.f32 0.0, %v1433
    %1435 = vdwg.mxu0
    %v1437 = vsel %vm99, %v1395, 0
    %1439 = vmatpush.msra.mxu0 0.0
    %1440 = vmatpush.msra.mxu0 0.0
    %1441 = vmatpush.msra.mxu0 0.0
    %1442 = vmatpush.msra.mxu0 0.0
    %1443 = vmatpush.msra.mxu0 0.0
    %1444 = vmatpush.msra.mxu0 0.0
    %1445 = vmatpush.msra.mxu0 0.0
    %1446 = vmatpush.msra.mxu0 0.0
    %1447 = vmatpush.msra.mxu0 0.0
    %1448 = vmatpush.msra.mxu0 0.0
    %1449 = vmatpush.msra.mxu0 0.0
    %1450 = vmatpush.msra.mxu0 0.0
    %1451 = vmatpush.msra.mxu0 %v265
    %1452 = vmatpush.msra.mxu0 %v264
    %1453 = vmatpush.msra.mxu0 %v263
    %1454 = vmatpush.msra.mxu0 %v262
    %1455 = vmatmul.f32.gmra.mxu0 %v1437
    %v1456 = vpop.f32.mrf.mxu0
    %v1457 = vadd.f32 %v1414, %v1456
    %1458 = vdwg.mxu0
    %1459 = vmatpush.msra.mxu0 0.0
    %1460 = vmatpush.msra.mxu0 0.0
    %1461 = vmatpush.msra.mxu0 0.0
    %1462 = vmatpush.msra.mxu0 0.0
    %1463 = vmatpush.msra.mxu0 0.0
    %1464 = vmatpush.msra.mxu0 0.0
    %1465 = vmatpush.msra.mxu0 0.0
    %1466 = vmatpush.msra.mxu0 0.0
    %1467 = vmatpush.msra.mxu0 0.0
    %1468 = vmatpush.msra.mxu0 0.0
    %1469 = vmatpush.msra.mxu0 0.0
    %1470 = vmatpush.msra.mxu0 0.0
    %1471 = vmatpush.msra.mxu0 %v261
    %1472 = vmatpush.msra.mxu0 %v257
    %1473 = vmatpush.msra.mxu0 %v253
    %1474 = vmatpush.msra.mxu0 %v249
    %1475 = vmatmul.f32.gmra.mxu0 %v1437
    %v1476 = vpop.f32.mrf.mxu0
    %v1477 = vadd.f32 %v1434, %v1476
    %1478 = vdwg.mxu0
    %v1479 = vadd.f32 %v1457, %v61
    %v1480 = vadd.f32 %v1477, %v62
    %v1481 = vand.u32 2147483647, %v1479
    %v1482 = vmul.f32 %v1481, %v1481
    %v1483 = vmul.f32 %v1482, %v1482
    %v1484 = vmul.f32 %v1483, %v1481
    %v1485 = vand.u32 2147483647, %v1480
    %v1486 = vmul.f32 %v1485, %v1485
    %v1487 = vmul.f32 %v1486, %v1486
    %v1488 = vmul.f32 %v1487, %v1485
    %1490 = vrot.lane.b32.xlu0 %v1484, 96
    %v1491 = vpop.permute.xlu0 %1490
    %v1492 = vsel %vm99, %v1491, 0
    %1494 = vmatpush.msra.mxu0 0.0
    %1495 = vmatpush.msra.mxu0 0.0
    %1496 = vmatpush.msra.mxu0 0.0
    %1497 = vmatpush.msra.mxu0 0.0
    %1498 = vmatpush.msra.mxu0 0.0
    %1499 = vmatpush.msra.mxu0 0.0
    %1500 = vmatpush.msra.mxu0 0.0
    %1501 = vmatpush.msra.mxu0 0.0
    %1502 = vmatpush.msra.mxu0 0.0
    %1503 = vmatpush.msra.mxu0 0.0
    %1504 = vmatpush.msra.mxu0 0.0
    %1505 = vmatpush.msra.mxu0 0.0
    %v1506 = vand.u32 %v57, 4294901760
    %1507 = vmatpush.msra.mxu0 %v1506
    %v1508 = vand.u32 %v55, 4294901760
    %1509 = vmatpush.msra.mxu0 %v1508
    %v1510 = vand.u32 %v53, 4294901760
    %1511 = vmatpush.msra.mxu0 %v1510
    %v1512 = vand.u32 %v51, 4294901760
    %1513 = vmatpush.msra.mxu0 %v1512
    %v1514 = vand.u32 %v1492, 4294901760
    %v1515 = vsub.f32 %v1492, %v1514
    %v1516 = vand.u32 %v1515, 4294901760
    %v1517 = vsub.f32 %v1515, %v1516
    %v1518 = vand.u32 %v1517, 4294901760
    %1519 = vmatmul.f32.gmra.mxu0 %v1518
    %v1520 = vpop.f32.mrf.mxu0
    %v1521 = vadd.f32 0.0, %v1520
    %1522 = vdwg.mxu0
    %1523 = vmatpush.msra.mxu0 0.0
    %1524 = vmatpush.msra.mxu0 0.0
    %1525 = vmatpush.msra.mxu0 0.0
    %1526 = vmatpush.msra.mxu0 0.0
    %1527 = vmatpush.msra.mxu0 0.0
    %1528 = vmatpush.msra.mxu0 0.0
    %1529 = vmatpush.msra.mxu0 0.0
    %1530 = vmatpush.msra.mxu0 0.0
    %1531 = vmatpush.msra.mxu0 0.0
    %1532 = vmatpush.msra.mxu0 0.0
    %1533 = vmatpush.msra.mxu0 0.0
    %1534 = vmatpush.msra.mxu0 0.0
    %v1535 = vand.u32 %v57, 4294901760
    %v1536 = vsub.f32 %v57, %v1535
    %v1537 = vand.u32 %v1536, 4294901760
    %v1538 = vsub.f32 %v1536, %v1537
    %v1539 = vand.u32 %v1538, 4294901760
    %1540 = vmatpush.msra.mxu0 %v1539
    %v1541 = vand.u32 %v55, 4294901760
    %v1542 = vsub.f32 %v55, %v1541
    %v1543 = vand.u32 %v1542, 4294901760
    %v1544 = vsub.f32 %v1542, %v1543
    %v1545 = vand.u32 %v1544, 4294901760
    %1546 = vmatpush.msra.mxu0 %v1545
    %v1547 = vand.u32 %v53, 4294901760
    %v1548 = vsub.f32 %v53, %v1547
    %v1549 = vand.u32 %v1548, 4294901760
    %v1550 = vsub.f32 %v1548, %v1549
    %v1551 = vand.u32 %v1550, 4294901760
    %1552 = vmatpush.msra.mxu0 %v1551
    %v1553 = vand.u32 %v51, 4294901760
    %v1554 = vsub.f32 %v51, %v1553
    %v1555 = vand.u32 %v1554, 4294901760
    %v1556 = vsub.f32 %v1554, %v1555
    %v1557 = vand.u32 %v1556, 4294901760
    %1558 = vmatpush.msra.mxu0 %v1557
    %v1559 = vand.u32 %v1492, 4294901760
    %1560 = vmatmul.f32.gmra.mxu0 %v1559
    %v1561 = vpop.f32.mrf.mxu0
    %v1562 = vadd.f32 %v1521, %v1561
    %1563 = vdwg.mxu0
    %1564 = vmatpush.msra.mxu0 0.0
    %1565 = vmatpush.msra.mxu0 0.0
    %1566 = vmatpush.msra.mxu0 0.0
    %1567 = vmatpush.msra.mxu0 0.0
    %1568 = vmatpush.msra.mxu0 0.0
    %1569 = vmatpush.msra.mxu0 0.0
    %1570 = vmatpush.msra.mxu0 0.0
    %1571 = vmatpush.msra.mxu0 0.0
    %1572 = vmatpush.msra.mxu0 0.0
    %1573 = vmatpush.msra.mxu0 0.0
    %1574 = vmatpush.msra.mxu0 0.0
    %1575 = vmatpush.msra.mxu0 0.0
    %v1576 = vand.u32 %v57, 4294901760
    %v1577 = vsub.f32 %v57, %v1576
    %1578 = vmatpush.msra.mxu0 %v1577
    %v1579 = vand.u32 %v55, 4294901760
    %v1580 = vsub.f32 %v55, %v1579
    %1581 = vmatpush.msra.mxu0 %v1580
    %v1582 = vand.u32 %v53, 4294901760
    %v1583 = vsub.f32 %v53, %v1582
    %1584 = vmatpush.msra.mxu0 %v1583
    %v1585 = vand.u32 %v51, 4294901760
    %v1586 = vsub.f32 %v51, %v1585
    %1587 = vmatpush.msra.mxu0 %v1586
    %v1588 = vand.u32 %v1492, 4294901760
    %v1589 = vsub.f32 %v1492, %v1588
    %1590 = vmatmul.f32.gmra.mxu0 %v1589
    %v1591 = vpop.f32.mrf.mxu0
    %v1592 = vadd.f32 %v1562, %v1591
    %1593 = vdwg.mxu0
    %1594 = vmatpush.msra.mxu0 0.0
    %1595 = vmatpush.msra.mxu0 0.0
    %1596 = vmatpush.msra.mxu0 0.0
    %1597 = vmatpush.msra.mxu0 0.0
    %1598 = vmatpush.msra.mxu0 0.0
    %1599 = vmatpush.msra.mxu0 0.0
    %1600 = vmatpush.msra.mxu0 0.0
    %1601 = vmatpush.msra.mxu0 0.0
    %1602 = vmatpush.msra.mxu0 0.0
    %1603 = vmatpush.msra.mxu0 0.0
    %1604 = vmatpush.msra.mxu0 0.0
    %1605 = vmatpush.msra.mxu0 0.0
    %v1606 = vand.u32 %v57, 4294901760
    %1607 = vmatpush.msra.mxu0 %v1606
    %v1608 = vand.u32 %v55, 4294901760
    %1609 = vmatpush.msra.mxu0 %v1608
    %v1610 = vand.u32 %v53, 4294901760
    %1611 = vmatpush.msra.mxu0 %v1610
    %v1612 = vand.u32 %v51, 4294901760
    %1613 = vmatpush.msra.mxu0 %v1612
    %v1614 = vand.u32 %v1492, 4294901760
    %v1615 = vsub.f32 %v1492, %v1614
    %v1616 = vand.u32 %v1615, 4294901760
    %1617 = vmatmul.f32.gmra.mxu0 %v1616
    %v1618 = vpop.f32.mrf.mxu0
    %v1619 = vadd.f32 %v1592, %v1618
    %1620 = vdwg.mxu0
    %1621 = vmatpush.msra.mxu0 0.0
    %1622 = vmatpush.msra.mxu0 0.0
    %1623 = vmatpush.msra.mxu0 0.0
    %1624 = vmatpush.msra.mxu0 0.0
    %1625 = vmatpush.msra.mxu0 0.0
    %1626 = vmatpush.msra.mxu0 0.0
    %1627 = vmatpush.msra.mxu0 0.0
    %1628 = vmatpush.msra.mxu0 0.0
    %1629 = vmatpush.msra.mxu0 0.0
    %1630 = vmatpush.msra.mxu0 0.0
    %1631 = vmatpush.msra.mxu0 0.0
    %1632 = vmatpush.msra.mxu0 0.0
    %v1633 = vand.u32 %v57, 4294901760
    %v1634 = vsub.f32 %v57, %v1633
    %v1635 = vand.u32 %v1634, 4294901760
    %1636 = vmatpush.msra.mxu0 %v1635
    %v1637 = vand.u32 %v55, 4294901760
    %v1638 = vsub.f32 %v55, %v1637
    %v1639 = vand.u32 %v1638, 4294901760
    %1640 = vmatpush.msra.mxu0 %v1639
    %v1641 = vand.u32 %v53, 4294901760
    %v1642 = vsub.f32 %v53, %v1641
    %v1643 = vand.u32 %v1642, 4294901760
    %1644 = vmatpush.msra.mxu0 %v1643
    %v1645 = vand.u32 %v51, 4294901760
    %v1646 = vsub.f32 %v51, %v1645
    %v1647 = vand.u32 %v1646, 4294901760
    %1648 = vmatpush.msra.mxu0 %v1647
    %v1649 = vand.u32 %v1492, 4294901760
    %1650 = vmatmul.f32.gmra.mxu0 %v1649
    %v1651 = vpop.f32.mrf.mxu0
    %v1652 = vadd.f32 %v1619, %v1651
    %1653 = vdwg.mxu0
    %1654 = vmatpush.msra.mxu0 0.0
    %1655 = vmatpush.msra.mxu0 0.0
    %1656 = vmatpush.msra.mxu0 0.0
    %1657 = vmatpush.msra.mxu0 0.0
    %1658 = vmatpush.msra.mxu0 0.0
    %1659 = vmatpush.msra.mxu0 0.0
    %1660 = vmatpush.msra.mxu0 0.0
    %1661 = vmatpush.msra.mxu0 0.0
    %1662 = vmatpush.msra.mxu0 0.0
    %1663 = vmatpush.msra.mxu0 0.0
    %1664 = vmatpush.msra.mxu0 0.0
    %1665 = vmatpush.msra.mxu0 0.0
    %v1666 = vand.u32 %v57, 4294901760
    %1667 = vmatpush.msra.mxu0 %v1666
    %v1668 = vand.u32 %v55, 4294901760
    %1669 = vmatpush.msra.mxu0 %v1668
    %v1670 = vand.u32 %v53, 4294901760
    %1671 = vmatpush.msra.mxu0 %v1670
    %v1672 = vand.u32 %v51, 4294901760
    %1673 = vmatpush.msra.mxu0 %v1672
    %v1674 = vand.u32 %v1492, 4294901760
    %1675 = vmatmul.f32.gmra.mxu0 %v1674
    %v1676 = vpop.f32.mrf.mxu0
    %v1677 = vadd.f32 %v1652, %v1676
    %1678 = vdwg.mxu0
    %1679 = vrot.lane.b32.xlu0 %v1484, 64
    %v1680 = vpop.permute.xlu0 %1679
    %v1682 = vsel %vm520, %v1680, 0.0
    %1683 = vadd.xlane.f32.xlu0 %v1682
    %v1684 = vpop.xlane.xlu0 %1683
    %v1685 = vmul.f32 %v1684, 0.25
    %v1686 = vsel %vm520, %v1488, 0.0
    %1687 = vadd.xlane.f32.xlu0 %v1686
    %v1688 = vpop.xlane.xlu0 %1687
    %v1689 = vmul.f32 %v1688, 0.25
    %v1690 = vsel %vm529, %v1685, %v1689
    %v1691 = vmul.f32 %v1677, %v1690
    %v1692 = vlog2.pop %v1691
    %v1693 = vmul.f32 %v1692, 0.6931472
    %v1694 = vmul.f32 %v1693, 0.2
    %v1695 = vmul.f32 %v1694, 1.442695
    %v1696 = vpow.pop %v1695
    %v1697 = vmax.f32 %v1696, 1e-12
    %v1698 = vrcp.pop %v1697
    %v1699 = vmul.f32 %v1698, 0.25
    %v1700 = vmul.f32 %v1479, %v1699
    %1702 = vrot.lane.b32.xlu0 %v1479, 96
    %v1703 = vpop.permute.xlu0 %1702
    %v1705 = vmul.f32 %v1700, %v1703
    %v1707 = vsel %vm99, %v1705, 0
    %1709 = vmatpush.msra.mxu0 0.0
    %1710 = vmatpush.msra.mxu0 0.0
    %1711 = vmatpush.msra.mxu0 0.0
    %1712 = vmatpush.msra.mxu0 0.0
    %1713 = vmatpush.msra.mxu0 0.0
    %1714 = vmatpush.msra.mxu0 0.0
    %1715 = vmatpush.msra.mxu0 0.0
    %1716 = vmatpush.msra.mxu0 0.0
    %1717 = vmatpush.msra.mxu0 0.0
    %1718 = vmatpush.msra.mxu0 0.0
    %1719 = vmatpush.msra.mxu0 0.0
    %1720 = vmatpush.msra.mxu0 0.0
    %v1721 = vand.u32 %v573, 4294901760
    %1722 = vmatpush.msra.mxu0 %v1721
    %v1723 = vand.u32 %v572, 4294901760
    %1724 = vmatpush.msra.mxu0 %v1723
    %v1725 = vand.u32 %v571, 4294901760
    %1726 = vmatpush.msra.mxu0 %v1725
    %v1727 = vand.u32 %v570, 4294901760
    %1728 = vmatpush.msra.mxu0 %v1727
    %v1729 = vand.u32 %v1707, 4294901760
    %v1730 = vsub.f32 %v1707, %v1729
    %v1731 = vand.u32 %v1730, 4294901760
    %v1732 = vsub.f32 %v1730, %v1731
    %v1733 = vand.u32 %v1732, 4294901760
    %1734 = vmatmul.f32.gmra.mxu0 %v1733
    %v1735 = vpop.f32.mrf.mxu0
    %v1736 = vadd.f32 0.0, %v1735
    %1737 = vdwg.mxu0
    %1738 = vmatpush.msra.mxu0 0.0
    %1739 = vmatpush.msra.mxu0 0.0
    %1740 = vmatpush.msra.mxu0 0.0
    %1741 = vmatpush.msra.mxu0 0.0
    %1742 = vmatpush.msra.mxu0 0.0
    %1743 = vmatpush.msra.mxu0 0.0
    %1744 = vmatpush.msra.mxu0 0.0
    %1745 = vmatpush.msra.mxu0 0.0
    %1746 = vmatpush.msra.mxu0 0.0
    %1747 = vmatpush.msra.mxu0 0.0
    %1748 = vmatpush.msra.mxu0 0.0
    %1749 = vmatpush.msra.mxu0 0.0
    %v1750 = vand.u32 %v573, 4294901760
    %v1751 = vsub.f32 %v573, %v1750
    %v1752 = vand.u32 %v1751, 4294901760
    %v1753 = vsub.f32 %v1751, %v1752
    %v1754 = vand.u32 %v1753, 4294901760
    %1755 = vmatpush.msra.mxu0 %v1754
    %v1756 = vand.u32 %v572, 4294901760
    %v1757 = vsub.f32 %v572, %v1756
    %v1758 = vand.u32 %v1757, 4294901760
    %v1759 = vsub.f32 %v1757, %v1758
    %v1760 = vand.u32 %v1759, 4294901760
    %1761 = vmatpush.msra.mxu0 %v1760
    %v1762 = vand.u32 %v571, 4294901760
    %v1763 = vsub.f32 %v571, %v1762
    %v1764 = vand.u32 %v1763, 4294901760
    %v1765 = vsub.f32 %v1763, %v1764
    %v1766 = vand.u32 %v1765, 4294901760
    %1767 = vmatpush.msra.mxu0 %v1766
    %v1768 = vand.u32 %v570, 4294901760
    %v1769 = vsub.f32 %v570, %v1768
    %v1770 = vand.u32 %v1769, 4294901760
    %v1771 = vsub.f32 %v1769, %v1770
    %v1772 = vand.u32 %v1771, 4294901760
    %1773 = vmatpush.msra.mxu0 %v1772
    %v1774 = vand.u32 %v1707, 4294901760
    %1775 = vmatmul.f32.gmra.mxu0 %v1774
    %v1776 = vpop.f32.mrf.mxu0
    %v1777 = vadd.f32 %v1736, %v1776
    %1778 = vdwg.mxu0
    %1779 = vmatpush.msra.mxu0 0.0
    %1780 = vmatpush.msra.mxu0 0.0
    %1781 = vmatpush.msra.mxu0 0.0
    %1782 = vmatpush.msra.mxu0 0.0
    %1783 = vmatpush.msra.mxu0 0.0
    %1784 = vmatpush.msra.mxu0 0.0
    %1785 = vmatpush.msra.mxu0 0.0
    %1786 = vmatpush.msra.mxu0 0.0
    %1787 = vmatpush.msra.mxu0 0.0
    %1788 = vmatpush.msra.mxu0 0.0
    %1789 = vmatpush.msra.mxu0 0.0
    %1790 = vmatpush.msra.mxu0 0.0
    %v1791 = vand.u32 %v573, 4294901760
    %v1792 = vsub.f32 %v573, %v1791
    %1793 = vmatpush.msra.mxu0 %v1792
    %v1794 = vand.u32 %v572, 4294901760
    %v1795 = vsub.f32 %v572, %v1794
    %1796 = vmatpush.msra.mxu0 %v1795
    %v1797 = vand.u32 %v571, 4294901760
    %v1798 = vsub.f32 %v571, %v1797
    %1799 = vmatpush.msra.mxu0 %v1798
    %v1800 = vand.u32 %v570, 4294901760
    %v1801 = vsub.f32 %v570, %v1800
    %1802 = vmatpush.msra.mxu0 %v1801
    %v1803 = vand.u32 %v1707, 4294901760
    %v1804 = vsub.f32 %v1707, %v1803
    %1805 = vmatmul.f32.gmra.mxu0 %v1804
    %v1806 = vpop.f32.mrf.mxu0
    %v1807 = vadd.f32 %v1777, %v1806
    %1808 = vdwg.mxu0
    %1809 = vmatpush.msra.mxu0 0.0
    %1810 = vmatpush.msra.mxu0 0.0
    %1811 = vmatpush.msra.mxu0 0.0
    %1812 = vmatpush.msra.mxu0 0.0
    %1813 = vmatpush.msra.mxu0 0.0
    %1814 = vmatpush.msra.mxu0 0.0
    %1815 = vmatpush.msra.mxu0 0.0
    %1816 = vmatpush.msra.mxu0 0.0
    %1817 = vmatpush.msra.mxu0 0.0
    %1818 = vmatpush.msra.mxu0 0.0
    %1819 = vmatpush.msra.mxu0 0.0
    %1820 = vmatpush.msra.mxu0 0.0
    %v1821 = vand.u32 %v573, 4294901760
    %1822 = vmatpush.msra.mxu0 %v1821
    %v1823 = vand.u32 %v572, 4294901760
    %1824 = vmatpush.msra.mxu0 %v1823
    %v1825 = vand.u32 %v571, 4294901760
    %1826 = vmatpush.msra.mxu0 %v1825
    %v1827 = vand.u32 %v570, 4294901760
    %1828 = vmatpush.msra.mxu0 %v1827
    %v1829 = vand.u32 %v1707, 4294901760
    %v1830 = vsub.f32 %v1707, %v1829
    %v1831 = vand.u32 %v1830, 4294901760
    %1832 = vmatmul.f32.gmra.mxu0 %v1831
    %v1833 = vpop.f32.mrf.mxu0
    %v1834 = vadd.f32 %v1807, %v1833
    %1835 = vdwg.mxu0
    %1836 = vmatpush.msra.mxu0 0.0
    %1837 = vmatpush.msra.mxu0 0.0
    %1838 = vmatpush.msra.mxu0 0.0
    %1839 = vmatpush.msra.mxu0 0.0
    %1840 = vmatpush.msra.mxu0 0.0
    %1841 = vmatpush.msra.mxu0 0.0
    %1842 = vmatpush.msra.mxu0 0.0
    %1843 = vmatpush.msra.mxu0 0.0
    %1844 = vmatpush.msra.mxu0 0.0
    %1845 = vmatpush.msra.mxu0 0.0
    %1846 = vmatpush.msra.mxu0 0.0
    %1847 = vmatpush.msra.mxu0 0.0
    %v1848 = vand.u32 %v573, 4294901760
    %v1849 = vsub.f32 %v573, %v1848
    %v1850 = vand.u32 %v1849, 4294901760
    %1851 = vmatpush.msra.mxu0 %v1850
    %v1852 = vand.u32 %v572, 4294901760
    %v1853 = vsub.f32 %v572, %v1852
    %v1854 = vand.u32 %v1853, 4294901760
    %1855 = vmatpush.msra.mxu0 %v1854
    %v1856 = vand.u32 %v571, 4294901760
    %v1857 = vsub.f32 %v571, %v1856
    %v1858 = vand.u32 %v1857, 4294901760
    %1859 = vmatpush.msra.mxu0 %v1858
    %v1860 = vand.u32 %v570, 4294901760
    %v1861 = vsub.f32 %v570, %v1860
    %v1862 = vand.u32 %v1861, 4294901760
    %1863 = vmatpush.msra.mxu0 %v1862
    %v1864 = vand.u32 %v1707, 4294901760
    %1865 = vmatmul.f32.gmra.mxu0 %v1864
    %v1866 = vpop.f32.mrf.mxu0
    %v1867 = vadd.f32 %v1834, %v1866
    %1868 = vdwg.mxu0
    %1869 = vmatpush.msra.mxu0 0.0
    %1870 = vmatpush.msra.mxu0 0.0
    %1871 = vmatpush.msra.mxu0 0.0
    %1872 = vmatpush.msra.mxu0 0.0
    %1873 = vmatpush.msra.mxu0 0.0
    %1874 = vmatpush.msra.mxu0 0.0
    %1875 = vmatpush.msra.mxu0 0.0
    %1876 = vmatpush.msra.mxu0 0.0
    %1877 = vmatpush.msra.mxu0 0.0
    %1878 = vmatpush.msra.mxu0 0.0
    %1879 = vmatpush.msra.mxu0 0.0
    %1880 = vmatpush.msra.mxu0 0.0
    %v1881 = vand.u32 %v573, 4294901760
    %1882 = vmatpush.msra.mxu0 %v1881
    %v1883 = vand.u32 %v572, 4294901760
    %1884 = vmatpush.msra.mxu0 %v1883
    %v1885 = vand.u32 %v571, 4294901760
    %1886 = vmatpush.msra.mxu0 %v1885
    %v1887 = vand.u32 %v570, 4294901760
    %1888 = vmatpush.msra.mxu0 %v1887
    %v1889 = vand.u32 %v1707, 4294901760
    %1890 = vmatmul.f32.gmra.mxu0 %v1889
    %v1891 = vpop.f32.mrf.mxu0
    %v1892 = vadd.f32 %v1867, %v1891
    %1893 = vdwg.mxu0
    %1895 = vrot.lane.b32.xlu0 %v1479, 64
    %v1896 = vpop.permute.xlu0 %1895
    %1897 = vrot.lane.b32.xlu0 %v1480, 64
    %v1898 = vpop.permute.xlu0 %1897
    %v1899 = vsel %vm76, %v1896, %v1898
    %v1901 = vmul.f32 %v1892, %v1899
    %1903 = vrot.lane.b32.xlu0 %v1901, 32
    %v1904 = vpop.permute.xlu0 %1903
    %v1906 = vadd.f32 %v1346, %v1904
    %1907 = vrot.lane.b32.xlu0 %v1901, 96
    %v1908 = vpop.permute.xlu0 %1907
    %v1910 = vsub.f32 %v1906, %v1908
    %1912 = vrot.lane.b32.xlu0 %v1910, 96
    %v1913 = vpop.permute.xlu0 %1912
    %v1914 = vsel %vm76, %v1913, 0
    %1916 = vmatpush.msra.mxu0 0.0
    %1917 = vmatpush.msra.mxu0 0.0
    %1918 = vmatpush.msra.mxu0 0.0
    %1919 = vmatpush.msra.mxu0 0.0
    %1920 = vmatpush.msra.mxu0 0.0
    %1921 = vmatpush.msra.mxu0 0.0
    %1922 = vmatpush.msra.mxu0 0.0
    %1923 = vmatpush.msra.mxu0 0.0
    %1924 = vmatpush.msra.mxu0 %v49
    %1925 = vmatpush.msra.mxu0 %v47
    %1926 = vmatpush.msra.mxu0 %v45
    %1927 = vmatpush.msra.mxu0 %v43
    %1928 = vmatpush.msra.mxu0 %v41
    %1929 = vmatpush.msra.mxu0 %v39
    %1930 = vmatpush.msra.mxu0 %v37
    %1931 = vmatpush.msra.mxu0 %v35
    %1932 = vmatmul.f32.gmra.mxu0 %v1914
    %v1933 = vpop.f32.mrf.mxu0
    %v1934 = vadd.f32 0.0, %v1933
    %1935 = vdwg.mxu0
    %1936 = vmatpush.msra.mxu0 0.0
    %1937 = vmatpush.msra.mxu0 0.0
    %1938 = vmatpush.msra.mxu0 0.0
    %1939 = vmatpush.msra.mxu0 0.0
    %1940 = vmatpush.msra.mxu0 0.0
    %1941 = vmatpush.msra.mxu0 0.0
    %1942 = vmatpush.msra.mxu0 0.0
    %1943 = vmatpush.msra.mxu0 0.0
    %1944 = vmatpush.msra.mxu0 0.0
    %1945 = vmatpush.msra.mxu0 0.0
    %1946 = vmatpush.msra.mxu0 0.0
    %1947 = vmatpush.msra.mxu0 0.0
    %1948 = vmatpush.msra.mxu0 %v33
    %1949 = vmatpush.msra.mxu0 %v31
    %1950 = vmatpush.msra.mxu0 %v29
    %1951 = vmatpush.msra.mxu0 %v27
    %1952 = vmatmul.f32.gmra.mxu0 %v1437
    %v1953 = vpop.f32.mrf.mxu0
    %v1954 = vadd.f32 %v1934, %v1953
    %1955 = vdwg.mxu0
    %s1956 = scalar_lea.vmem %s0, 12
    %v1957 = vld [vmem:[%s1956] sm:$0xf]
    %v1958 = vadd.f32 %v1954, %v1957
    %v1959 = vmax.f32 %v1958, 0.0
    %1960 = vmatpush.msra.mxu0 0.0
    %1961 = vmatpush.msra.mxu0 0.0
    %1962 = vmatpush.msra.mxu0 0.0
    %1963 = vmatpush.msra.mxu0 0.0
    %1964 = vmatpush.msra.mxu0 0.0
    %1965 = vmatpush.msra.mxu0 0.0
    %1966 = vmatpush.msra.mxu0 0.0
    %1967 = vmatpush.msra.mxu0 0.0
    %1968 = vmatpush.msra.mxu0 %v181
    %1969 = vmatpush.msra.mxu0 %v180
    %1970 = vmatpush.msra.mxu0 %v179
    %1971 = vmatpush.msra.mxu0 %v178
    %1972 = vmatpush.msra.mxu0 %v177
    %1973 = vmatpush.msra.mxu0 %v176
    %1974 = vmatpush.msra.mxu0 %v175
    %1975 = vmatpush.msra.mxu0 %v174
    %1976 = vmatmul.f32.gmra.mxu0 %v1914
    %v1977 = vpop.f32.mrf.mxu0
    %v1978 = vadd.f32 0.0, %v1977
    %1979 = vdwg.mxu0
    %1980 = vmatpush.msra.mxu0 0.0
    %1981 = vmatpush.msra.mxu0 0.0
    %1982 = vmatpush.msra.mxu0 0.0
    %1983 = vmatpush.msra.mxu0 0.0
    %1984 = vmatpush.msra.mxu0 0.0
    %1985 = vmatpush.msra.mxu0 0.0
    %1986 = vmatpush.msra.mxu0 0.0
    %1987 = vmatpush.msra.mxu0 0.0
    %1988 = vmatpush.msra.mxu0 %v172
    %1989 = vmatpush.msra.mxu0 %v168
    %1990 = vmatpush.msra.mxu0 %v164
    %1991 = vmatpush.msra.mxu0 %v160
    %1992 = vmatpush.msra.mxu0 %v156
    %1993 = vmatpush.msra.mxu0 %v152
    %1994 = vmatpush.msra.mxu0 %v148
    %1995 = vmatpush.msra.mxu0 %v144
    %1996 = vmatmul.f32.gmra.mxu0 %v1914
    %v1997 = vpop.f32.mrf.mxu0
    %v1998 = vadd.f32 0.0, %v1997
    %1999 = vdwg.mxu0
    %v2001 = vsel %vm99, %v1959, 0
    %2003 = vmatpush.msra.mxu0 0.0
    %2004 = vmatpush.msra.mxu0 0.0
    %2005 = vmatpush.msra.mxu0 0.0
    %2006 = vmatpush.msra.mxu0 0.0
    %2007 = vmatpush.msra.mxu0 0.0
    %2008 = vmatpush.msra.mxu0 0.0
    %2009 = vmatpush.msra.mxu0 0.0
    %2010 = vmatpush.msra.mxu0 0.0
    %2011 = vmatpush.msra.mxu0 0.0
    %2012 = vmatpush.msra.mxu0 0.0
    %2013 = vmatpush.msra.mxu0 0.0
    %2014 = vmatpush.msra.mxu0 0.0
    %2015 = vmatpush.msra.mxu0 %v265
    %2016 = vmatpush.msra.mxu0 %v264
    %2017 = vmatpush.msra.mxu0 %v263
    %2018 = vmatpush.msra.mxu0 %v262
    %2019 = vmatmul.f32.gmra.mxu0 %v2001
    %v2020 = vpop.f32.mrf.mxu0
    %v2021 = vadd.f32 %v1978, %v2020
    %2022 = vdwg.mxu0
    %2023 = vmatpush.msra.mxu0 0.0
    %2024 = vmatpush.msra.mxu0 0.0
    %2025 = vmatpush.msra.mxu0 0.0
    %2026 = vmatpush.msra.mxu0 0.0
    %2027 = vmatpush.msra.mxu0 0.0
    %2028 = vmatpush.msra.mxu0 0.0
    %2029 = vmatpush.msra.mxu0 0.0
    %2030 = vmatpush.msra.mxu0 0.0
    %2031 = vmatpush.msra.mxu0 0.0
    %2032 = vmatpush.msra.mxu0 0.0
    %2033 = vmatpush.msra.mxu0 0.0
    %2034 = vmatpush.msra.mxu0 0.0
    %2035 = vmatpush.msra.mxu0 %v261
    %2036 = vmatpush.msra.mxu0 %v257
    %2037 = vmatpush.msra.mxu0 %v253
    %2038 = vmatpush.msra.mxu0 %v249
    %2039 = vmatmul.f32.gmra.mxu0 %v2001
    %v2040 = vpop.f32.mrf.mxu0
    %v2041 = vadd.f32 %v1998, %v2040
    %2042 = vdwg.mxu0
    %v2043 = vadd.f32 %v2021, %v61
    %v2044 = vadd.f32 %v2041, %v62
    %v2045 = vand.u32 2147483647, %v2043
    %v2046 = vmul.f32 %v2045, %v2045
    %v2047 = vmul.f32 %v2046, %v2046
    %v2048 = vmul.f32 %v2047, %v2045
    %v2049 = vand.u32 2147483647, %v2044
    %v2050 = vmul.f32 %v2049, %v2049
    %v2051 = vmul.f32 %v2050, %v2050
    %v2052 = vmul.f32 %v2051, %v2049
    %2054 = vrot.lane.b32.xlu0 %v2048, 96
    %v2055 = vpop.permute.xlu0 %2054
    %v2056 = vsel %vm99, %v2055, 0
    %2058 = vmatpush.msra.mxu0 0.0
    %2059 = vmatpush.msra.mxu0 0.0
    %2060 = vmatpush.msra.mxu0 0.0
    %2061 = vmatpush.msra.mxu0 0.0
    %2062 = vmatpush.msra.mxu0 0.0
    %2063 = vmatpush.msra.mxu0 0.0
    %2064 = vmatpush.msra.mxu0 0.0
    %2065 = vmatpush.msra.mxu0 0.0
    %2066 = vmatpush.msra.mxu0 0.0
    %2067 = vmatpush.msra.mxu0 0.0
    %2068 = vmatpush.msra.mxu0 0.0
    %2069 = vmatpush.msra.mxu0 0.0
    %v2070 = vand.u32 %v57, 4294901760
    %2071 = vmatpush.msra.mxu0 %v2070
    %v2072 = vand.u32 %v55, 4294901760
    %2073 = vmatpush.msra.mxu0 %v2072
    %v2074 = vand.u32 %v53, 4294901760
    %2075 = vmatpush.msra.mxu0 %v2074
    %v2076 = vand.u32 %v51, 4294901760
    %2077 = vmatpush.msra.mxu0 %v2076
    %v2078 = vand.u32 %v2056, 4294901760
    %v2079 = vsub.f32 %v2056, %v2078
    %v2080 = vand.u32 %v2079, 4294901760
    %v2081 = vsub.f32 %v2079, %v2080
    %v2082 = vand.u32 %v2081, 4294901760
    %2083 = vmatmul.f32.gmra.mxu0 %v2082
    %v2084 = vpop.f32.mrf.mxu0
    %v2085 = vadd.f32 0.0, %v2084
    %2086 = vdwg.mxu0
    %2087 = vmatpush.msra.mxu0 0.0
    %2088 = vmatpush.msra.mxu0 0.0
    %2089 = vmatpush.msra.mxu0 0.0
    %2090 = vmatpush.msra.mxu0 0.0
    %2091 = vmatpush.msra.mxu0 0.0
    %2092 = vmatpush.msra.mxu0 0.0
    %2093 = vmatpush.msra.mxu0 0.0
    %2094 = vmatpush.msra.mxu0 0.0
    %2095 = vmatpush.msra.mxu0 0.0
    %2096 = vmatpush.msra.mxu0 0.0
    %2097 = vmatpush.msra.mxu0 0.0
    %2098 = vmatpush.msra.mxu0 0.0
    %v2099 = vand.u32 %v57, 4294901760
    %v2100 = vsub.f32 %v57, %v2099
    %v2101 = vand.u32 %v2100, 4294901760
    %v2102 = vsub.f32 %v2100, %v2101
    %v2103 = vand.u32 %v2102, 4294901760
    %2104 = vmatpush.msra.mxu0 %v2103
    %v2105 = vand.u32 %v55, 4294901760
    %v2106 = vsub.f32 %v55, %v2105
    %v2107 = vand.u32 %v2106, 4294901760
    %v2108 = vsub.f32 %v2106, %v2107
    %v2109 = vand.u32 %v2108, 4294901760
    %2110 = vmatpush.msra.mxu0 %v2109
    %v2111 = vand.u32 %v53, 4294901760
    %v2112 = vsub.f32 %v53, %v2111
    %v2113 = vand.u32 %v2112, 4294901760
    %v2114 = vsub.f32 %v2112, %v2113
    %v2115 = vand.u32 %v2114, 4294901760
    %2116 = vmatpush.msra.mxu0 %v2115
    %v2117 = vand.u32 %v51, 4294901760
    %v2118 = vsub.f32 %v51, %v2117
    %v2119 = vand.u32 %v2118, 4294901760
    %v2120 = vsub.f32 %v2118, %v2119
    %v2121 = vand.u32 %v2120, 4294901760
    %2122 = vmatpush.msra.mxu0 %v2121
    %v2123 = vand.u32 %v2056, 4294901760
    %2124 = vmatmul.f32.gmra.mxu0 %v2123
    %v2125 = vpop.f32.mrf.mxu0
    %v2126 = vadd.f32 %v2085, %v2125
    %2127 = vdwg.mxu0
    %2128 = vmatpush.msra.mxu0 0.0
    %2129 = vmatpush.msra.mxu0 0.0
    %2130 = vmatpush.msra.mxu0 0.0
    %2131 = vmatpush.msra.mxu0 0.0
    %2132 = vmatpush.msra.mxu0 0.0
    %2133 = vmatpush.msra.mxu0 0.0
    %2134 = vmatpush.msra.mxu0 0.0
    %2135 = vmatpush.msra.mxu0 0.0
    %2136 = vmatpush.msra.mxu0 0.0
    %2137 = vmatpush.msra.mxu0 0.0
    %2138 = vmatpush.msra.mxu0 0.0
    %2139 = vmatpush.msra.mxu0 0.0
    %v2140 = vand.u32 %v57, 4294901760
    %v2141 = vsub.f32 %v57, %v2140
    %2142 = vmatpush.msra.mxu0 %v2141
    %v2143 = vand.u32 %v55, 4294901760
    %v2144 = vsub.f32 %v55, %v2143
    %2145 = vmatpush.msra.mxu0 %v2144
    %v2146 = vand.u32 %v53, 4294901760
    %v2147 = vsub.f32 %v53, %v2146
    %2148 = vmatpush.msra.mxu0 %v2147
    %v2149 = vand.u32 %v51, 4294901760
    %v2150 = vsub.f32 %v51, %v2149
    %2151 = vmatpush.msra.mxu0 %v2150
    %v2152 = vand.u32 %v2056, 4294901760
    %v2153 = vsub.f32 %v2056, %v2152
    %2154 = vmatmul.f32.gmra.mxu0 %v2153
    %v2155 = vpop.f32.mrf.mxu0
    %v2156 = vadd.f32 %v2126, %v2155
    %2157 = vdwg.mxu0
    %2158 = vmatpush.msra.mxu0 0.0
    %2159 = vmatpush.msra.mxu0 0.0
    %2160 = vmatpush.msra.mxu0 0.0
    %2161 = vmatpush.msra.mxu0 0.0
    %2162 = vmatpush.msra.mxu0 0.0
    %2163 = vmatpush.msra.mxu0 0.0
    %2164 = vmatpush.msra.mxu0 0.0
    %2165 = vmatpush.msra.mxu0 0.0
    %2166 = vmatpush.msra.mxu0 0.0
    %2167 = vmatpush.msra.mxu0 0.0
    %2168 = vmatpush.msra.mxu0 0.0
    %2169 = vmatpush.msra.mxu0 0.0
    %v2170 = vand.u32 %v57, 4294901760
    %2171 = vmatpush.msra.mxu0 %v2170
    %v2172 = vand.u32 %v55, 4294901760
    %2173 = vmatpush.msra.mxu0 %v2172
    %v2174 = vand.u32 %v53, 4294901760
    %2175 = vmatpush.msra.mxu0 %v2174
    %v2176 = vand.u32 %v51, 4294901760
    %2177 = vmatpush.msra.mxu0 %v2176
    %v2178 = vand.u32 %v2056, 4294901760
    %v2179 = vsub.f32 %v2056, %v2178
    %v2180 = vand.u32 %v2179, 4294901760
    %2181 = vmatmul.f32.gmra.mxu0 %v2180
    %v2182 = vpop.f32.mrf.mxu0
    %v2183 = vadd.f32 %v2156, %v2182
    %2184 = vdwg.mxu0
    %2185 = vmatpush.msra.mxu0 0.0
    %2186 = vmatpush.msra.mxu0 0.0
    %2187 = vmatpush.msra.mxu0 0.0
    %2188 = vmatpush.msra.mxu0 0.0
    %2189 = vmatpush.msra.mxu0 0.0
    %2190 = vmatpush.msra.mxu0 0.0
    %2191 = vmatpush.msra.mxu0 0.0
    %2192 = vmatpush.msra.mxu0 0.0
    %2193 = vmatpush.msra.mxu0 0.0
    %2194 = vmatpush.msra.mxu0 0.0
    %2195 = vmatpush.msra.mxu0 0.0
    %2196 = vmatpush.msra.mxu0 0.0
    %v2197 = vand.u32 %v57, 4294901760
    %v2198 = vsub.f32 %v57, %v2197
    %v2199 = vand.u32 %v2198, 4294901760
    %2200 = vmatpush.msra.mxu0 %v2199
    %v2201 = vand.u32 %v55, 4294901760
    %v2202 = vsub.f32 %v55, %v2201
    %v2203 = vand.u32 %v2202, 4294901760
    %2204 = vmatpush.msra.mxu0 %v2203
    %v2205 = vand.u32 %v53, 4294901760
    %v2206 = vsub.f32 %v53, %v2205
    %v2207 = vand.u32 %v2206, 4294901760
    %2208 = vmatpush.msra.mxu0 %v2207
    %v2209 = vand.u32 %v51, 4294901760
    %v2210 = vsub.f32 %v51, %v2209
    %v2211 = vand.u32 %v2210, 4294901760
    %2212 = vmatpush.msra.mxu0 %v2211
    %v2213 = vand.u32 %v2056, 4294901760
    %2214 = vmatmul.f32.gmra.mxu0 %v2213
    %v2215 = vpop.f32.mrf.mxu0
    %v2216 = vadd.f32 %v2183, %v2215
    %2217 = vdwg.mxu0
    %2218 = vmatpush.msra.mxu0 0.0
    %2219 = vmatpush.msra.mxu0 0.0
    %2220 = vmatpush.msra.mxu0 0.0
    %2221 = vmatpush.msra.mxu0 0.0
    %2222 = vmatpush.msra.mxu0 0.0
    %2223 = vmatpush.msra.mxu0 0.0
    %2224 = vmatpush.msra.mxu0 0.0
    %2225 = vmatpush.msra.mxu0 0.0
    %2226 = vmatpush.msra.mxu0 0.0
    %2227 = vmatpush.msra.mxu0 0.0
    %2228 = vmatpush.msra.mxu0 0.0
    %2229 = vmatpush.msra.mxu0 0.0
    %v2230 = vand.u32 %v57, 4294901760
    %2231 = vmatpush.msra.mxu0 %v2230
    %v2232 = vand.u32 %v55, 4294901760
    %2233 = vmatpush.msra.mxu0 %v2232
    %v2234 = vand.u32 %v53, 4294901760
    %2235 = vmatpush.msra.mxu0 %v2234
    %v2236 = vand.u32 %v51, 4294901760
    %2237 = vmatpush.msra.mxu0 %v2236
    %v2238 = vand.u32 %v2056, 4294901760
    %2239 = vmatmul.f32.gmra.mxu0 %v2238
    %v2240 = vpop.f32.mrf.mxu0
    %v2241 = vadd.f32 %v2216, %v2240
    %2242 = vdwg.mxu0
    %2243 = vrot.lane.b32.xlu0 %v2048, 64
    %v2244 = vpop.permute.xlu0 %2243
    %v2246 = vsel %vm520, %v2244, 0.0
    %2247 = vadd.xlane.f32.xlu0 %v2246
    %v2248 = vpop.xlane.xlu0 %2247
    %v2249 = vmul.f32 %v2248, 0.25
    %v2250 = vsel %vm520, %v2052, 0.0
    %2251 = vadd.xlane.f32.xlu0 %v2250
    %v2252 = vpop.xlane.xlu0 %2251
    %v2253 = vmul.f32 %v2252, 0.25
    %v2254 = vsel %vm529, %v2249, %v2253
    %v2255 = vmul.f32 %v2241, %v2254
    %v2256 = vlog2.pop %v2255
    %v2257 = vmul.f32 %v2256, 0.6931472
    %v2258 = vmul.f32 %v2257, 0.2
    %v2259 = vmul.f32 %v2258, 1.442695
    %v2260 = vpow.pop %v2259
    %v2261 = vmax.f32 %v2260, 1e-12
    %v2262 = vrcp.pop %v2261
    %v2263 = vmul.f32 %v2262, 0.25
    %v2264 = vmul.f32 %v2043, %v2263
    %2266 = vrot.lane.b32.xlu0 %v2043, 96
    %v2267 = vpop.permute.xlu0 %2266
    %v2269 = vmul.f32 %v2264, %v2267
    %v2271 = vsel %vm99, %v2269, 0
    %2273 = vmatpush.msra.mxu0 0.0
    %2274 = vmatpush.msra.mxu0 0.0
    %2275 = vmatpush.msra.mxu0 0.0
    %2276 = vmatpush.msra.mxu0 0.0
    %2277 = vmatpush.msra.mxu0 0.0
    %2278 = vmatpush.msra.mxu0 0.0
    %2279 = vmatpush.msra.mxu0 0.0
    %2280 = vmatpush.msra.mxu0 0.0
    %2281 = vmatpush.msra.mxu0 0.0
    %2282 = vmatpush.msra.mxu0 0.0
    %2283 = vmatpush.msra.mxu0 0.0
    %2284 = vmatpush.msra.mxu0 0.0
    %v2285 = vand.u32 %v573, 4294901760
    %2286 = vmatpush.msra.mxu0 %v2285
    %v2287 = vand.u32 %v572, 4294901760
    %2288 = vmatpush.msra.mxu0 %v2287
    %v2289 = vand.u32 %v571, 4294901760
    %2290 = vmatpush.msra.mxu0 %v2289
    %v2291 = vand.u32 %v570, 4294901760
    %2292 = vmatpush.msra.mxu0 %v2291
    %v2293 = vand.u32 %v2271, 4294901760
    %v2294 = vsub.f32 %v2271, %v2293
    %v2295 = vand.u32 %v2294, 4294901760
    %v2296 = vsub.f32 %v2294, %v2295
    %v2297 = vand.u32 %v2296, 4294901760
    %2298 = vmatmul.f32.gmra.mxu0 %v2297
    %v2299 = vpop.f32.mrf.mxu0
    %v2300 = vadd.f32 0.0, %v2299
    %2301 = vdwg.mxu0
    %2302 = vmatpush.msra.mxu0 0.0
    %2303 = vmatpush.msra.mxu0 0.0
    %2304 = vmatpush.msra.mxu0 0.0
    %2305 = vmatpush.msra.mxu0 0.0
    %2306 = vmatpush.msra.mxu0 0.0
    %2307 = vmatpush.msra.mxu0 0.0
    %2308 = vmatpush.msra.mxu0 0.0
    %2309 = vmatpush.msra.mxu0 0.0
    %2310 = vmatpush.msra.mxu0 0.0
    %2311 = vmatpush.msra.mxu0 0.0
    %2312 = vmatpush.msra.mxu0 0.0
    %2313 = vmatpush.msra.mxu0 0.0
    %v2314 = vand.u32 %v573, 4294901760
    %v2315 = vsub.f32 %v573, %v2314
    %v2316 = vand.u32 %v2315, 4294901760
    %v2317 = vsub.f32 %v2315, %v2316
    %v2318 = vand.u32 %v2317, 4294901760
    %2319 = vmatpush.msra.mxu0 %v2318
    %v2320 = vand.u32 %v572, 4294901760
    %v2321 = vsub.f32 %v572, %v2320
    %v2322 = vand.u32 %v2321, 4294901760
    %v2323 = vsub.f32 %v2321, %v2322
    %v2324 = vand.u32 %v2323, 4294901760
    %2325 = vmatpush.msra.mxu0 %v2324
    %v2326 = vand.u32 %v571, 4294901760
    %v2327 = vsub.f32 %v571, %v2326
    %v2328 = vand.u32 %v2327, 4294901760
    %v2329 = vsub.f32 %v2327, %v2328
    %v2330 = vand.u32 %v2329, 4294901760
    %2331 = vmatpush.msra.mxu0 %v2330
    %v2332 = vand.u32 %v570, 4294901760
    %v2333 = vsub.f32 %v570, %v2332
    %v2334 = vand.u32 %v2333, 4294901760
    %v2335 = vsub.f32 %v2333, %v2334
    %v2336 = vand.u32 %v2335, 4294901760
    %2337 = vmatpush.msra.mxu0 %v2336
    %v2338 = vand.u32 %v2271, 4294901760
    %2339 = vmatmul.f32.gmra.mxu0 %v2338
    %v2340 = vpop.f32.mrf.mxu0
    %v2341 = vadd.f32 %v2300, %v2340
    %2342 = vdwg.mxu0
    %2343 = vmatpush.msra.mxu0 0.0
    %2344 = vmatpush.msra.mxu0 0.0
    %2345 = vmatpush.msra.mxu0 0.0
    %2346 = vmatpush.msra.mxu0 0.0
    %2347 = vmatpush.msra.mxu0 0.0
    %2348 = vmatpush.msra.mxu0 0.0
    %2349 = vmatpush.msra.mxu0 0.0
    %2350 = vmatpush.msra.mxu0 0.0
    %2351 = vmatpush.msra.mxu0 0.0
    %2352 = vmatpush.msra.mxu0 0.0
    %2353 = vmatpush.msra.mxu0 0.0
    %2354 = vmatpush.msra.mxu0 0.0
    %v2355 = vand.u32 %v573, 4294901760
    %v2356 = vsub.f32 %v573, %v2355
    %2357 = vmatpush.msra.mxu0 %v2356
    %v2358 = vand.u32 %v572, 4294901760
    %v2359 = vsub.f32 %v572, %v2358
    %2360 = vmatpush.msra.mxu0 %v2359
    %v2361 = vand.u32 %v571, 4294901760
    %v2362 = vsub.f32 %v571, %v2361
    %2363 = vmatpush.msra.mxu0 %v2362
    %v2364 = vand.u32 %v570, 4294901760
    %v2365 = vsub.f32 %v570, %v2364
    %2366 = vmatpush.msra.mxu0 %v2365
    %v2367 = vand.u32 %v2271, 4294901760
    %v2368 = vsub.f32 %v2271, %v2367
    %2369 = vmatmul.f32.gmra.mxu0 %v2368
    %v2370 = vpop.f32.mrf.mxu0
    %v2371 = vadd.f32 %v2341, %v2370
    %2372 = vdwg.mxu0
    %2373 = vmatpush.msra.mxu0 0.0
    %2374 = vmatpush.msra.mxu0 0.0
    %2375 = vmatpush.msra.mxu0 0.0
    %2376 = vmatpush.msra.mxu0 0.0
    %2377 = vmatpush.msra.mxu0 0.0
    %2378 = vmatpush.msra.mxu0 0.0
    %2379 = vmatpush.msra.mxu0 0.0
    %2380 = vmatpush.msra.mxu0 0.0
    %2381 = vmatpush.msra.mxu0 0.0
    %2382 = vmatpush.msra.mxu0 0.0
    %2383 = vmatpush.msra.mxu0 0.0
    %2384 = vmatpush.msra.mxu0 0.0
    %v2385 = vand.u32 %v573, 4294901760
    %2386 = vmatpush.msra.mxu0 %v2385
    %v2387 = vand.u32 %v572, 4294901760
    %2388 = vmatpush.msra.mxu0 %v2387
    %v2389 = vand.u32 %v571, 4294901760
    %2390 = vmatpush.msra.mxu0 %v2389
    %v2391 = vand.u32 %v570, 4294901760
    %2392 = vmatpush.msra.mxu0 %v2391
    %v2393 = vand.u32 %v2271, 4294901760
    %v2394 = vsub.f32 %v2271, %v2393
    %v2395 = vand.u32 %v2394, 4294901760
    %2396 = vmatmul.f32.gmra.mxu0 %v2395
    %v2397 = vpop.f32.mrf.mxu0
    %v2398 = vadd.f32 %v2371, %v2397
    %2399 = vdwg.mxu0
    %2400 = vmatpush.msra.mxu0 0.0
    %2401 = vmatpush.msra.mxu0 0.0
    %2402 = vmatpush.msra.mxu0 0.0
    %2403 = vmatpush.msra.mxu0 0.0
    %2404 = vmatpush.msra.mxu0 0.0
    %2405 = vmatpush.msra.mxu0 0.0
    %2406 = vmatpush.msra.mxu0 0.0
    %2407 = vmatpush.msra.mxu0 0.0
    %2408 = vmatpush.msra.mxu0 0.0
    %2409 = vmatpush.msra.mxu0 0.0
    %2410 = vmatpush.msra.mxu0 0.0
    %2411 = vmatpush.msra.mxu0 0.0
    %v2412 = vand.u32 %v573, 4294901760
    %v2413 = vsub.f32 %v573, %v2412
    %v2414 = vand.u32 %v2413, 4294901760
    %2415 = vmatpush.msra.mxu0 %v2414
    %v2416 = vand.u32 %v572, 4294901760
    %v2417 = vsub.f32 %v572, %v2416
    %v2418 = vand.u32 %v2417, 4294901760
    %2419 = vmatpush.msra.mxu0 %v2418
    %v2420 = vand.u32 %v571, 4294901760
    %v2421 = vsub.f32 %v571, %v2420
    %v2422 = vand.u32 %v2421, 4294901760
    %2423 = vmatpush.msra.mxu0 %v2422
    %v2424 = vand.u32 %v570, 4294901760
    %v2425 = vsub.f32 %v570, %v2424
    %v2426 = vand.u32 %v2425, 4294901760
    %2427 = vmatpush.msra.mxu0 %v2426
    %v2428 = vand.u32 %v2271, 4294901760
    %2429 = vmatmul.f32.gmra.mxu0 %v2428
    %v2430 = vpop.f32.mrf.mxu0
    %v2431 = vadd.f32 %v2398, %v2430
    %2432 = vdwg.mxu0
    %2433 = vmatpush.msra.mxu0 0.0
    %2434 = vmatpush.msra.mxu0 0.0
    %2435 = vmatpush.msra.mxu0 0.0
    %2436 = vmatpush.msra.mxu0 0.0
    %2437 = vmatpush.msra.mxu0 0.0
    %2438 = vmatpush.msra.mxu0 0.0
    %2439 = vmatpush.msra.mxu0 0.0
    %2440 = vmatpush.msra.mxu0 0.0
    %2441 = vmatpush.msra.mxu0 0.0
    %2442 = vmatpush.msra.mxu0 0.0
    %2443 = vmatpush.msra.mxu0 0.0
    %2444 = vmatpush.msra.mxu0 0.0
    %v2445 = vand.u32 %v573, 4294901760
    %2446 = vmatpush.msra.mxu0 %v2445
    %v2447 = vand.u32 %v572, 4294901760
    %2448 = vmatpush.msra.mxu0 %v2447
    %v2449 = vand.u32 %v571, 4294901760
    %2450 = vmatpush.msra.mxu0 %v2449
    %v2451 = vand.u32 %v570, 4294901760
    %2452 = vmatpush.msra.mxu0 %v2451
    %v2453 = vand.u32 %v2271, 4294901760
    %2454 = vmatmul.f32.gmra.mxu0 %v2453
    %v2455 = vpop.f32.mrf.mxu0
    %v2456 = vadd.f32 %v2431, %v2455
    %2457 = vdwg.mxu0
    %2459 = vrot.lane.b32.xlu0 %v2043, 64
    %v2460 = vpop.permute.xlu0 %2459
    %2461 = vrot.lane.b32.xlu0 %v2044, 64
    %v2462 = vpop.permute.xlu0 %2461
    %v2463 = vsel %vm76, %v2460, %v2462
    %v2465 = vmul.f32 %v2456, %v2463
    %2467 = vrot.lane.b32.xlu0 %v2465, 32
    %v2468 = vpop.permute.xlu0 %2467
    %v2470 = vadd.f32 %v1910, %v2468
    %2471 = vrot.lane.b32.xlu0 %v2465, 96
    %v2472 = vpop.permute.xlu0 %2471
    %v2474 = vsub.f32 %v2470, %v2472
    %2476 = vrot.lane.b32.xlu0 %v2474, 96
    %v2477 = vpop.permute.xlu0 %2476
    %v2478 = vsel %vm76, %v2477, 0
    %2480 = vmatpush.msra.mxu0 0.0
    %2481 = vmatpush.msra.mxu0 0.0
    %2482 = vmatpush.msra.mxu0 0.0
    %2483 = vmatpush.msra.mxu0 0.0
    %2484 = vmatpush.msra.mxu0 0.0
    %2485 = vmatpush.msra.mxu0 0.0
    %2486 = vmatpush.msra.mxu0 0.0
    %2487 = vmatpush.msra.mxu0 0.0
    %2488 = vmatpush.msra.mxu0 %v49
    %2489 = vmatpush.msra.mxu0 %v47
    %2490 = vmatpush.msra.mxu0 %v45
    %2491 = vmatpush.msra.mxu0 %v43
    %2492 = vmatpush.msra.mxu0 %v41
    %2493 = vmatpush.msra.mxu0 %v39
    %2494 = vmatpush.msra.mxu0 %v37
    %2495 = vmatpush.msra.mxu0 %v35
    %2496 = vmatmul.f32.gmra.mxu0 %v2478
    %v2497 = vpop.f32.mrf.mxu0
    %v2498 = vadd.f32 0.0, %v2497
    %2499 = vdwg.mxu0
    %2500 = vmatpush.msra.mxu0 0.0
    %2501 = vmatpush.msra.mxu0 0.0
    %2502 = vmatpush.msra.mxu0 0.0
    %2503 = vmatpush.msra.mxu0 0.0
    %2504 = vmatpush.msra.mxu0 0.0
    %2505 = vmatpush.msra.mxu0 0.0
    %2506 = vmatpush.msra.mxu0 0.0
    %2507 = vmatpush.msra.mxu0 0.0
    %2508 = vmatpush.msra.mxu0 0.0
    %2509 = vmatpush.msra.mxu0 0.0
    %2510 = vmatpush.msra.mxu0 0.0
    %2511 = vmatpush.msra.mxu0 0.0
    %2512 = vmatpush.msra.mxu0 %v33
    %2513 = vmatpush.msra.mxu0 %v31
    %2514 = vmatpush.msra.mxu0 %v29
    %2515 = vmatpush.msra.mxu0 %v27
    %2516 = vmatmul.f32.gmra.mxu0 %v2001
    %v2517 = vpop.f32.mrf.mxu0
    %v2518 = vadd.f32 %v2498, %v2517
    %2519 = vdwg.mxu0
    %s2520 = scalar_lea.vmem %s0, 16
    %v2521 = vld [vmem:[%s2520] sm:$0xf]
    %v2522 = vadd.f32 %v2518, %v2521
    %v2523 = vmax.f32 %v2522, 0.0
    %2524 = vmatpush.msra.mxu0 0.0
    %2525 = vmatpush.msra.mxu0 0.0
    %2526 = vmatpush.msra.mxu0 0.0
    %2527 = vmatpush.msra.mxu0 0.0
    %2528 = vmatpush.msra.mxu0 0.0
    %2529 = vmatpush.msra.mxu0 0.0
    %2530 = vmatpush.msra.mxu0 0.0
    %2531 = vmatpush.msra.mxu0 0.0
    %2532 = vmatpush.msra.mxu0 %v181
    %2533 = vmatpush.msra.mxu0 %v180
    %2534 = vmatpush.msra.mxu0 %v179
    %2535 = vmatpush.msra.mxu0 %v178
    %2536 = vmatpush.msra.mxu0 %v177
    %2537 = vmatpush.msra.mxu0 %v176
    %2538 = vmatpush.msra.mxu0 %v175
    %2539 = vmatpush.msra.mxu0 %v174
    %2540 = vmatmul.f32.gmra.mxu0 %v2478
    %v2541 = vpop.f32.mrf.mxu0
    %v2542 = vadd.f32 0.0, %v2541
    %2543 = vdwg.mxu0
    %2544 = vmatpush.msra.mxu0 0.0
    %2545 = vmatpush.msra.mxu0 0.0
    %2546 = vmatpush.msra.mxu0 0.0
    %2547 = vmatpush.msra.mxu0 0.0
    %2548 = vmatpush.msra.mxu0 0.0
    %2549 = vmatpush.msra.mxu0 0.0
    %2550 = vmatpush.msra.mxu0 0.0
    %2551 = vmatpush.msra.mxu0 0.0
    %2552 = vmatpush.msra.mxu0 %v172
    %2553 = vmatpush.msra.mxu0 %v168
    %2554 = vmatpush.msra.mxu0 %v164
    %2555 = vmatpush.msra.mxu0 %v160
    %2556 = vmatpush.msra.mxu0 %v156
    %2557 = vmatpush.msra.mxu0 %v152
    %2558 = vmatpush.msra.mxu0 %v148
    %2559 = vmatpush.msra.mxu0 %v144
    %2560 = vmatmul.f32.gmra.mxu0 %v2478
    %v2561 = vpop.f32.mrf.mxu0
    %v2562 = vadd.f32 0.0, %v2561
    %2563 = vdwg.mxu0
    %v2565 = vsel %vm99, %v2523, 0
    %2567 = vmatpush.msra.mxu0 0.0
    %2568 = vmatpush.msra.mxu0 0.0
    %2569 = vmatpush.msra.mxu0 0.0
    %2570 = vmatpush.msra.mxu0 0.0
    %2571 = vmatpush.msra.mxu0 0.0
    %2572 = vmatpush.msra.mxu0 0.0
    %2573 = vmatpush.msra.mxu0 0.0
    %2574 = vmatpush.msra.mxu0 0.0
    %2575 = vmatpush.msra.mxu0 0.0
    %2576 = vmatpush.msra.mxu0 0.0
    %2577 = vmatpush.msra.mxu0 0.0
    %2578 = vmatpush.msra.mxu0 0.0
    %2579 = vmatpush.msra.mxu0 %v265
    %2580 = vmatpush.msra.mxu0 %v264
    %2581 = vmatpush.msra.mxu0 %v263
    %2582 = vmatpush.msra.mxu0 %v262
    %2583 = vmatmul.f32.gmra.mxu0 %v2565
    %v2584 = vpop.f32.mrf.mxu0
    %v2585 = vadd.f32 %v2542, %v2584
    %2586 = vdwg.mxu0
    %2587 = vmatpush.msra.mxu0 0.0
    %2588 = vmatpush.msra.mxu0 0.0
    %2589 = vmatpush.msra.mxu0 0.0
    %2590 = vmatpush.msra.mxu0 0.0
    %2591 = vmatpush.msra.mxu0 0.0
    %2592 = vmatpush.msra.mxu0 0.0
    %2593 = vmatpush.msra.mxu0 0.0
    %2594 = vmatpush.msra.mxu0 0.0
    %2595 = vmatpush.msra.mxu0 0.0
    %2596 = vmatpush.msra.mxu0 0.0
    %2597 = vmatpush.msra.mxu0 0.0
    %2598 = vmatpush.msra.mxu0 0.0
    %2599 = vmatpush.msra.mxu0 %v261
    %2600 = vmatpush.msra.mxu0 %v257
    %2601 = vmatpush.msra.mxu0 %v253
    %2602 = vmatpush.msra.mxu0 %v249
    %2603 = vmatmul.f32.gmra.mxu0 %v2565
    %v2604 = vpop.f32.mrf.mxu0
    %v2605 = vadd.f32 %v2562, %v2604
    %2606 = vdwg.mxu0
    %v2607 = vadd.f32 %v2585, %v61
    %v2608 = vadd.f32 %v2605, %v62
    %v2609 = vand.u32 2147483647, %v2607
    %v2610 = vmul.f32 %v2609, %v2609
    %v2611 = vmul.f32 %v2610, %v2610
    %v2612 = vmul.f32 %v2611, %v2609
    %v2613 = vand.u32 2147483647, %v2608
    %v2614 = vmul.f32 %v2613, %v2613
    %v2615 = vmul.f32 %v2614, %v2614
    %v2616 = vmul.f32 %v2615, %v2613
    %2618 = vrot.lane.b32.xlu0 %v2612, 96
    %v2619 = vpop.permute.xlu0 %2618
    %v2620 = vsel %vm99, %v2619, 0
    %2622 = vmatpush.msra.mxu0 0.0
    %2623 = vmatpush.msra.mxu0 0.0
    %2624 = vmatpush.msra.mxu0 0.0
    %2625 = vmatpush.msra.mxu0 0.0
    %2626 = vmatpush.msra.mxu0 0.0
    %2627 = vmatpush.msra.mxu0 0.0
    %2628 = vmatpush.msra.mxu0 0.0
    %2629 = vmatpush.msra.mxu0 0.0
    %2630 = vmatpush.msra.mxu0 0.0
    %2631 = vmatpush.msra.mxu0 0.0
    %2632 = vmatpush.msra.mxu0 0.0
    %2633 = vmatpush.msra.mxu0 0.0
    %v2634 = vand.u32 %v57, 4294901760
    %2635 = vmatpush.msra.mxu0 %v2634
    %v2636 = vand.u32 %v55, 4294901760
    %2637 = vmatpush.msra.mxu0 %v2636
    %v2638 = vand.u32 %v53, 4294901760
    %2639 = vmatpush.msra.mxu0 %v2638
    %v2640 = vand.u32 %v51, 4294901760
    %2641 = vmatpush.msra.mxu0 %v2640
    %v2642 = vand.u32 %v2620, 4294901760
    %v2643 = vsub.f32 %v2620, %v2642
    %v2644 = vand.u32 %v2643, 4294901760
    %v2645 = vsub.f32 %v2643, %v2644
    %v2646 = vand.u32 %v2645, 4294901760
    %2647 = vmatmul.f32.gmra.mxu0 %v2646
    %v2648 = vpop.f32.mrf.mxu0
    %v2649 = vadd.f32 0.0, %v2648
    %2650 = vdwg.mxu0
    %2651 = vmatpush.msra.mxu0 0.0
    %2652 = vmatpush.msra.mxu0 0.0
    %2653 = vmatpush.msra.mxu0 0.0
    %2654 = vmatpush.msra.mxu0 0.0
    %2655 = vmatpush.msra.mxu0 0.0
    %2656 = vmatpush.msra.mxu0 0.0
    %2657 = vmatpush.msra.mxu0 0.0
    %2658 = vmatpush.msra.mxu0 0.0
    %2659 = vmatpush.msra.mxu0 0.0
    %2660 = vmatpush.msra.mxu0 0.0
    %2661 = vmatpush.msra.mxu0 0.0
    %2662 = vmatpush.msra.mxu0 0.0
    %v2663 = vand.u32 %v57, 4294901760
    %v2664 = vsub.f32 %v57, %v2663
    %v2665 = vand.u32 %v2664, 4294901760
    %v2666 = vsub.f32 %v2664, %v2665
    %v2667 = vand.u32 %v2666, 4294901760
    %2668 = vmatpush.msra.mxu0 %v2667
    %v2669 = vand.u32 %v55, 4294901760
    %v2670 = vsub.f32 %v55, %v2669
    %v2671 = vand.u32 %v2670, 4294901760
    %v2672 = vsub.f32 %v2670, %v2671
    %v2673 = vand.u32 %v2672, 4294901760
    %2674 = vmatpush.msra.mxu0 %v2673
    %v2675 = vand.u32 %v53, 4294901760
    %v2676 = vsub.f32 %v53, %v2675
    %v2677 = vand.u32 %v2676, 4294901760
    %v2678 = vsub.f32 %v2676, %v2677
    %v2679 = vand.u32 %v2678, 4294901760
    %2680 = vmatpush.msra.mxu0 %v2679
    %v2681 = vand.u32 %v51, 4294901760
    %v2682 = vsub.f32 %v51, %v2681
    %v2683 = vand.u32 %v2682, 4294901760
    %v2684 = vsub.f32 %v2682, %v2683
    %v2685 = vand.u32 %v2684, 4294901760
    %2686 = vmatpush.msra.mxu0 %v2685
    %v2687 = vand.u32 %v2620, 4294901760
    %2688 = vmatmul.f32.gmra.mxu0 %v2687
    %v2689 = vpop.f32.mrf.mxu0
    %v2690 = vadd.f32 %v2649, %v2689
    %2691 = vdwg.mxu0
    %2692 = vmatpush.msra.mxu0 0.0
    %2693 = vmatpush.msra.mxu0 0.0
    %2694 = vmatpush.msra.mxu0 0.0
    %2695 = vmatpush.msra.mxu0 0.0
    %2696 = vmatpush.msra.mxu0 0.0
    %2697 = vmatpush.msra.mxu0 0.0
    %2698 = vmatpush.msra.mxu0 0.0
    %2699 = vmatpush.msra.mxu0 0.0
    %2700 = vmatpush.msra.mxu0 0.0
    %2701 = vmatpush.msra.mxu0 0.0
    %2702 = vmatpush.msra.mxu0 0.0
    %2703 = vmatpush.msra.mxu0 0.0
    %v2704 = vand.u32 %v57, 4294901760
    %v2705 = vsub.f32 %v57, %v2704
    %2706 = vmatpush.msra.mxu0 %v2705
    %v2707 = vand.u32 %v55, 4294901760
    %v2708 = vsub.f32 %v55, %v2707
    %2709 = vmatpush.msra.mxu0 %v2708
    %v2710 = vand.u32 %v53, 4294901760
    %v2711 = vsub.f32 %v53, %v2710
    %2712 = vmatpush.msra.mxu0 %v2711
    %v2713 = vand.u32 %v51, 4294901760
    %v2714 = vsub.f32 %v51, %v2713
    %2715 = vmatpush.msra.mxu0 %v2714
    %v2716 = vand.u32 %v2620, 4294901760
    %v2717 = vsub.f32 %v2620, %v2716
    %2718 = vmatmul.f32.gmra.mxu0 %v2717
    %v2719 = vpop.f32.mrf.mxu0
    %v2720 = vadd.f32 %v2690, %v2719
    %2721 = vdwg.mxu0
    %2722 = vmatpush.msra.mxu0 0.0
    %2723 = vmatpush.msra.mxu0 0.0
    %2724 = vmatpush.msra.mxu0 0.0
    %2725 = vmatpush.msra.mxu0 0.0
    %2726 = vmatpush.msra.mxu0 0.0
    %2727 = vmatpush.msra.mxu0 0.0
    %2728 = vmatpush.msra.mxu0 0.0
    %2729 = vmatpush.msra.mxu0 0.0
    %2730 = vmatpush.msra.mxu0 0.0
    %2731 = vmatpush.msra.mxu0 0.0
    %2732 = vmatpush.msra.mxu0 0.0
    %2733 = vmatpush.msra.mxu0 0.0
    %v2734 = vand.u32 %v57, 4294901760
    %2735 = vmatpush.msra.mxu0 %v2734
    %v2736 = vand.u32 %v55, 4294901760
    %2737 = vmatpush.msra.mxu0 %v2736
    %v2738 = vand.u32 %v53, 4294901760
    %2739 = vmatpush.msra.mxu0 %v2738
    %v2740 = vand.u32 %v51, 4294901760
    %2741 = vmatpush.msra.mxu0 %v2740
    %v2742 = vand.u32 %v2620, 4294901760
    %v2743 = vsub.f32 %v2620, %v2742
    %v2744 = vand.u32 %v2743, 4294901760
    %2745 = vmatmul.f32.gmra.mxu0 %v2744
    %v2746 = vpop.f32.mrf.mxu0
    %v2747 = vadd.f32 %v2720, %v2746
    %2748 = vdwg.mxu0
    %2749 = vmatpush.msra.mxu0 0.0
    %2750 = vmatpush.msra.mxu0 0.0
    %2751 = vmatpush.msra.mxu0 0.0
    %2752 = vmatpush.msra.mxu0 0.0
    %2753 = vmatpush.msra.mxu0 0.0
    %2754 = vmatpush.msra.mxu0 0.0
    %2755 = vmatpush.msra.mxu0 0.0
    %2756 = vmatpush.msra.mxu0 0.0
    %2757 = vmatpush.msra.mxu0 0.0
    %2758 = vmatpush.msra.mxu0 0.0
    %2759 = vmatpush.msra.mxu0 0.0
    %2760 = vmatpush.msra.mxu0 0.0
    %v2761 = vand.u32 %v57, 4294901760
    %v2762 = vsub.f32 %v57, %v2761
    %v2763 = vand.u32 %v2762, 4294901760
    %2764 = vmatpush.msra.mxu0 %v2763
    %v2765 = vand.u32 %v55, 4294901760
    %v2766 = vsub.f32 %v55, %v2765
    %v2767 = vand.u32 %v2766, 4294901760
    %2768 = vmatpush.msra.mxu0 %v2767
    %v2769 = vand.u32 %v53, 4294901760
    %v2770 = vsub.f32 %v53, %v2769
    %v2771 = vand.u32 %v2770, 4294901760
    %2772 = vmatpush.msra.mxu0 %v2771
    %v2773 = vand.u32 %v51, 4294901760
    %v2774 = vsub.f32 %v51, %v2773
    %v2775 = vand.u32 %v2774, 4294901760
    %2776 = vmatpush.msra.mxu0 %v2775
    %v2777 = vand.u32 %v2620, 4294901760
    %2778 = vmatmul.f32.gmra.mxu0 %v2777
    %v2779 = vpop.f32.mrf.mxu0
    %v2780 = vadd.f32 %v2747, %v2779
    %2781 = vdwg.mxu0
    %2782 = vmatpush.msra.mxu0 0.0
    %2783 = vmatpush.msra.mxu0 0.0
    %2784 = vmatpush.msra.mxu0 0.0
    %2785 = vmatpush.msra.mxu0 0.0
    %2786 = vmatpush.msra.mxu0 0.0
    %2787 = vmatpush.msra.mxu0 0.0
    %2788 = vmatpush.msra.mxu0 0.0
    %2789 = vmatpush.msra.mxu0 0.0
    %2790 = vmatpush.msra.mxu0 0.0
    %2791 = vmatpush.msra.mxu0 0.0
    %2792 = vmatpush.msra.mxu0 0.0
    %2793 = vmatpush.msra.mxu0 0.0
    %v2794 = vand.u32 %v57, 4294901760
    %2795 = vmatpush.msra.mxu0 %v2794
    %v2796 = vand.u32 %v55, 4294901760
    %2797 = vmatpush.msra.mxu0 %v2796
    %v2798 = vand.u32 %v53, 4294901760
    %2799 = vmatpush.msra.mxu0 %v2798
    %v2800 = vand.u32 %v51, 4294901760
    %2801 = vmatpush.msra.mxu0 %v2800
    %v2802 = vand.u32 %v2620, 4294901760
    %2803 = vmatmul.f32.gmra.mxu0 %v2802
    %v2804 = vpop.f32.mrf.mxu0
    %v2805 = vadd.f32 %v2780, %v2804
    %2806 = vdwg.mxu0
    %2807 = vrot.lane.b32.xlu0 %v2612, 64
    %v2808 = vpop.permute.xlu0 %2807
    %v2810 = vsel %vm520, %v2808, 0.0
    %2811 = vadd.xlane.f32.xlu0 %v2810
    %v2812 = vpop.xlane.xlu0 %2811
    %v2813 = vmul.f32 %v2812, 0.25
    %v2814 = vsel %vm520, %v2616, 0.0
    %2815 = vadd.xlane.f32.xlu0 %v2814
    %v2816 = vpop.xlane.xlu0 %2815
    %v2817 = vmul.f32 %v2816, 0.25
    %v2818 = vsel %vm529, %v2813, %v2817
    %v2819 = vmul.f32 %v2805, %v2818
    %v2820 = vlog2.pop %v2819
    %v2821 = vmul.f32 %v2820, 0.6931472
    %v2822 = vmul.f32 %v2821, 0.2
    %v2823 = vmul.f32 %v2822, 1.442695
    %v2824 = vpow.pop %v2823
    %v2825 = vmax.f32 %v2824, 1e-12
    %v2826 = vrcp.pop %v2825
    %v2827 = vmul.f32 %v2826, 0.25
    %v2828 = vmul.f32 %v2607, %v2827
    %2830 = vrot.lane.b32.xlu0 %v2607, 96
    %v2831 = vpop.permute.xlu0 %2830
    %v2833 = vmul.f32 %v2828, %v2831
    %v2835 = vsel %vm99, %v2833, 0
    %2837 = vmatpush.msra.mxu0 0.0
    %2838 = vmatpush.msra.mxu0 0.0
    %2839 = vmatpush.msra.mxu0 0.0
    %2840 = vmatpush.msra.mxu0 0.0
    %2841 = vmatpush.msra.mxu0 0.0
    %2842 = vmatpush.msra.mxu0 0.0
    %2843 = vmatpush.msra.mxu0 0.0
    %2844 = vmatpush.msra.mxu0 0.0
    %2845 = vmatpush.msra.mxu0 0.0
    %2846 = vmatpush.msra.mxu0 0.0
    %2847 = vmatpush.msra.mxu0 0.0
    %2848 = vmatpush.msra.mxu0 0.0
    %v2849 = vand.u32 %v573, 4294901760
    %2850 = vmatpush.msra.mxu0 %v2849
    %v2851 = vand.u32 %v572, 4294901760
    %2852 = vmatpush.msra.mxu0 %v2851
    %v2853 = vand.u32 %v571, 4294901760
    %2854 = vmatpush.msra.mxu0 %v2853
    %v2855 = vand.u32 %v570, 4294901760
    %2856 = vmatpush.msra.mxu0 %v2855
    %v2857 = vand.u32 %v2835, 4294901760
    %v2858 = vsub.f32 %v2835, %v2857
    %v2859 = vand.u32 %v2858, 4294901760
    %v2860 = vsub.f32 %v2858, %v2859
    %v2861 = vand.u32 %v2860, 4294901760
    %2862 = vmatmul.f32.gmra.mxu0 %v2861
    %v2863 = vpop.f32.mrf.mxu0
    %v2864 = vadd.f32 0.0, %v2863
    %2865 = vdwg.mxu0
    %2866 = vmatpush.msra.mxu0 0.0
    %2867 = vmatpush.msra.mxu0 0.0
    %2868 = vmatpush.msra.mxu0 0.0
    %2869 = vmatpush.msra.mxu0 0.0
    %2870 = vmatpush.msra.mxu0 0.0
    %2871 = vmatpush.msra.mxu0 0.0
    %2872 = vmatpush.msra.mxu0 0.0
    %2873 = vmatpush.msra.mxu0 0.0
    %2874 = vmatpush.msra.mxu0 0.0
    %2875 = vmatpush.msra.mxu0 0.0
    %2876 = vmatpush.msra.mxu0 0.0
    %2877 = vmatpush.msra.mxu0 0.0
    %v2878 = vand.u32 %v573, 4294901760
    %v2879 = vsub.f32 %v573, %v2878
    %v2880 = vand.u32 %v2879, 4294901760
    %v2881 = vsub.f32 %v2879, %v2880
    %v2882 = vand.u32 %v2881, 4294901760
    %2883 = vmatpush.msra.mxu0 %v2882
    %v2884 = vand.u32 %v572, 4294901760
    %v2885 = vsub.f32 %v572, %v2884
    %v2886 = vand.u32 %v2885, 4294901760
    %v2887 = vsub.f32 %v2885, %v2886
    %v2888 = vand.u32 %v2887, 4294901760
    %2889 = vmatpush.msra.mxu0 %v2888
    %v2890 = vand.u32 %v571, 4294901760
    %v2891 = vsub.f32 %v571, %v2890
    %v2892 = vand.u32 %v2891, 4294901760
    %v2893 = vsub.f32 %v2891, %v2892
    %v2894 = vand.u32 %v2893, 4294901760
    %2895 = vmatpush.msra.mxu0 %v2894
    %v2896 = vand.u32 %v570, 4294901760
    %v2897 = vsub.f32 %v570, %v2896
    %v2898 = vand.u32 %v2897, 4294901760
    %v2899 = vsub.f32 %v2897, %v2898
    %v2900 = vand.u32 %v2899, 4294901760
    %2901 = vmatpush.msra.mxu0 %v2900
    %v2902 = vand.u32 %v2835, 4294901760
    %2903 = vmatmul.f32.gmra.mxu0 %v2902
    %v2904 = vpop.f32.mrf.mxu0
    %v2905 = vadd.f32 %v2864, %v2904
    %2906 = vdwg.mxu0
    %2907 = vmatpush.msra.mxu0 0.0
    %2908 = vmatpush.msra.mxu0 0.0
    %2909 = vmatpush.msra.mxu0 0.0
    %2910 = vmatpush.msra.mxu0 0.0
    %2911 = vmatpush.msra.mxu0 0.0
    %2912 = vmatpush.msra.mxu0 0.0
    %2913 = vmatpush.msra.mxu0 0.0
    %2914 = vmatpush.msra.mxu0 0.0
    %2915 = vmatpush.msra.mxu0 0.0
    %2916 = vmatpush.msra.mxu0 0.0
    %2917 = vmatpush.msra.mxu0 0.0
    %2918 = vmatpush.msra.mxu0 0.0
    %v2919 = vand.u32 %v573, 4294901760
    %v2920 = vsub.f32 %v573, %v2919
    %2921 = vmatpush.msra.mxu0 %v2920
    %v2922 = vand.u32 %v572, 4294901760
    %v2923 = vsub.f32 %v572, %v2922
    %2924 = vmatpush.msra.mxu0 %v2923
    %v2925 = vand.u32 %v571, 4294901760
    %v2926 = vsub.f32 %v571, %v2925
    %2927 = vmatpush.msra.mxu0 %v2926
    %v2928 = vand.u32 %v570, 4294901760
    %v2929 = vsub.f32 %v570, %v2928
    %2930 = vmatpush.msra.mxu0 %v2929
    %v2931 = vand.u32 %v2835, 4294901760
    %v2932 = vsub.f32 %v2835, %v2931
    %2933 = vmatmul.f32.gmra.mxu0 %v2932
    %v2934 = vpop.f32.mrf.mxu0
    %v2935 = vadd.f32 %v2905, %v2934
    %2936 = vdwg.mxu0
    %2937 = vmatpush.msra.mxu0 0.0
    %2938 = vmatpush.msra.mxu0 0.0
    %2939 = vmatpush.msra.mxu0 0.0
    %2940 = vmatpush.msra.mxu0 0.0
    %2941 = vmatpush.msra.mxu0 0.0
    %2942 = vmatpush.msra.mxu0 0.0
    %2943 = vmatpush.msra.mxu0 0.0
    %2944 = vmatpush.msra.mxu0 0.0
    %2945 = vmatpush.msra.mxu0 0.0
    %2946 = vmatpush.msra.mxu0 0.0
    %2947 = vmatpush.msra.mxu0 0.0
    %2948 = vmatpush.msra.mxu0 0.0
    %v2949 = vand.u32 %v573, 4294901760
    %2950 = vmatpush.msra.mxu0 %v2949
    %v2951 = vand.u32 %v572, 4294901760
    %2952 = vmatpush.msra.mxu0 %v2951
    %v2953 = vand.u32 %v571, 4294901760
    %2954 = vmatpush.msra.mxu0 %v2953
    %v2955 = vand.u32 %v570, 4294901760
    %2956 = vmatpush.msra.mxu0 %v2955
    %v2957 = vand.u32 %v2835, 4294901760
    %v2958 = vsub.f32 %v2835, %v2957
    %v2959 = vand.u32 %v2958, 4294901760
    %2960 = vmatmul.f32.gmra.mxu0 %v2959
    %v2961 = vpop.f32.mrf.mxu0
    %v2962 = vadd.f32 %v2935, %v2961
    %2963 = vdwg.mxu0
    %2964 = vmatpush.msra.mxu0 0.0
    %2965 = vmatpush.msra.mxu0 0.0
    %2966 = vmatpush.msra.mxu0 0.0
    %2967 = vmatpush.msra.mxu0 0.0
    %2968 = vmatpush.msra.mxu0 0.0
    %2969 = vmatpush.msra.mxu0 0.0
    %2970 = vmatpush.msra.mxu0 0.0
    %2971 = vmatpush.msra.mxu0 0.0
    %2972 = vmatpush.msra.mxu0 0.0
    %2973 = vmatpush.msra.mxu0 0.0
    %2974 = vmatpush.msra.mxu0 0.0
    %2975 = vmatpush.msra.mxu0 0.0
    %v2976 = vand.u32 %v573, 4294901760
    %v2977 = vsub.f32 %v573, %v2976
    %v2978 = vand.u32 %v2977, 4294901760
    %2979 = vmatpush.msra.mxu0 %v2978
    %v2980 = vand.u32 %v572, 4294901760
    %v2981 = vsub.f32 %v572, %v2980
    %v2982 = vand.u32 %v2981, 4294901760
    %2983 = vmatpush.msra.mxu0 %v2982
    %v2984 = vand.u32 %v571, 4294901760
    %v2985 = vsub.f32 %v571, %v2984
    %v2986 = vand.u32 %v2985, 4294901760
    %2987 = vmatpush.msra.mxu0 %v2986
    %v2988 = vand.u32 %v570, 4294901760
    %v2989 = vsub.f32 %v570, %v2988
    %v2990 = vand.u32 %v2989, 4294901760
    %2991 = vmatpush.msra.mxu0 %v2990
    %v2992 = vand.u32 %v2835, 4294901760
    %2993 = vmatmul.f32.gmra.mxu0 %v2992
    %v2994 = vpop.f32.mrf.mxu0
    %v2995 = vadd.f32 %v2962, %v2994
    %2996 = vdwg.mxu0
    %2997 = vmatpush.msra.mxu0 0.0
    %2998 = vmatpush.msra.mxu0 0.0
    %2999 = vmatpush.msra.mxu0 0.0
    %3000 = vmatpush.msra.mxu0 0.0
    %3001 = vmatpush.msra.mxu0 0.0
    %3002 = vmatpush.msra.mxu0 0.0
    %3003 = vmatpush.msra.mxu0 0.0
    %3004 = vmatpush.msra.mxu0 0.0
    %3005 = vmatpush.msra.mxu0 0.0
    %3006 = vmatpush.msra.mxu0 0.0
    %3007 = vmatpush.msra.mxu0 0.0
    %3008 = vmatpush.msra.mxu0 0.0
    %v3009 = vand.u32 %v573, 4294901760
    %3010 = vmatpush.msra.mxu0 %v3009
    %v3011 = vand.u32 %v572, 4294901760
    %3012 = vmatpush.msra.mxu0 %v3011
    %v3013 = vand.u32 %v571, 4294901760
    %3014 = vmatpush.msra.mxu0 %v3013
    %v3015 = vand.u32 %v570, 4294901760
    %3016 = vmatpush.msra.mxu0 %v3015
    %v3017 = vand.u32 %v2835, 4294901760
    %3018 = vmatmul.f32.gmra.mxu0 %v3017
    %v3019 = vpop.f32.mrf.mxu0
    %v3020 = vadd.f32 %v2995, %v3019
    %3021 = vdwg.mxu0
    %3023 = vrot.lane.b32.xlu0 %v2607, 64
    %v3024 = vpop.permute.xlu0 %3023
    %3025 = vrot.lane.b32.xlu0 %v2608, 64
    %v3026 = vpop.permute.xlu0 %3025
    %v3027 = vsel %vm76, %v3024, %v3026
    %v3029 = vmul.f32 %v3020, %v3027
    %3031 = vrot.lane.b32.xlu0 %v3029, 32
    %v3032 = vpop.permute.xlu0 %3031
    %v3034 = vadd.f32 %v2474, %v3032
    %3035 = vrot.lane.b32.xlu0 %v3029, 96
    %v3036 = vpop.permute.xlu0 %3035
    %v3038 = vsub.f32 %v3034, %v3036
    %3040 = vrot.lane.b32.xlu0 %v3038, 96
    %v3041 = vpop.permute.xlu0 %3040
    %v3042 = vsel %vm76, %v3041, 0
    %3044 = vmatpush.msra.mxu0 0.0
    %3045 = vmatpush.msra.mxu0 0.0
    %3046 = vmatpush.msra.mxu0 0.0
    %3047 = vmatpush.msra.mxu0 0.0
    %3048 = vmatpush.msra.mxu0 0.0
    %3049 = vmatpush.msra.mxu0 0.0
    %3050 = vmatpush.msra.mxu0 0.0
    %3051 = vmatpush.msra.mxu0 0.0
    %3052 = vmatpush.msra.mxu0 %v49
    %3053 = vmatpush.msra.mxu0 %v47
    %3054 = vmatpush.msra.mxu0 %v45
    %3055 = vmatpush.msra.mxu0 %v43
    %3056 = vmatpush.msra.mxu0 %v41
    %3057 = vmatpush.msra.mxu0 %v39
    %3058 = vmatpush.msra.mxu0 %v37
    %3059 = vmatpush.msra.mxu0 %v35
    %3060 = vmatmul.f32.gmra.mxu0 %v3042
    %v3061 = vpop.f32.mrf.mxu0
    %v3062 = vadd.f32 0.0, %v3061
    %3063 = vdwg.mxu0
    %3064 = vmatpush.msra.mxu0 0.0
    %3065 = vmatpush.msra.mxu0 0.0
    %3066 = vmatpush.msra.mxu0 0.0
    %3067 = vmatpush.msra.mxu0 0.0
    %3068 = vmatpush.msra.mxu0 0.0
    %3069 = vmatpush.msra.mxu0 0.0
    %3070 = vmatpush.msra.mxu0 0.0
    %3071 = vmatpush.msra.mxu0 0.0
    %3072 = vmatpush.msra.mxu0 0.0
    %3073 = vmatpush.msra.mxu0 0.0
    %3074 = vmatpush.msra.mxu0 0.0
    %3075 = vmatpush.msra.mxu0 0.0
    %3076 = vmatpush.msra.mxu0 %v33
    %3077 = vmatpush.msra.mxu0 %v31
    %3078 = vmatpush.msra.mxu0 %v29
    %3079 = vmatpush.msra.mxu0 %v27
    %3080 = vmatmul.f32.gmra.mxu0 %v2565
    %v3081 = vpop.f32.mrf.mxu0
    %v3082 = vadd.f32 %v3062, %v3081
    %3083 = vdwg.mxu0
    %s3084 = scalar_lea.vmem %s0, 20
    %v3085 = vld [vmem:[%s3084] sm:$0xf]
    %v3086 = vadd.f32 %v3082, %v3085
    %v3087 = vmax.f32 %v3086, 0.0
    %3088 = vmatpush.msra.mxu0 0.0
    %3089 = vmatpush.msra.mxu0 0.0
    %3090 = vmatpush.msra.mxu0 0.0
    %3091 = vmatpush.msra.mxu0 0.0
    %3092 = vmatpush.msra.mxu0 0.0
    %3093 = vmatpush.msra.mxu0 0.0
    %3094 = vmatpush.msra.mxu0 0.0
    %3095 = vmatpush.msra.mxu0 0.0
    %3096 = vmatpush.msra.mxu0 %v181
    %3097 = vmatpush.msra.mxu0 %v180
    %3098 = vmatpush.msra.mxu0 %v179
    %3099 = vmatpush.msra.mxu0 %v178
    %3100 = vmatpush.msra.mxu0 %v177
    %3101 = vmatpush.msra.mxu0 %v176
    %3102 = vmatpush.msra.mxu0 %v175
    %3103 = vmatpush.msra.mxu0 %v174
    %3104 = vmatmul.f32.gmra.mxu0 %v3042
    %v3105 = vpop.f32.mrf.mxu0
    %v3106 = vadd.f32 0.0, %v3105
    %3107 = vdwg.mxu0
    %3108 = vmatpush.msra.mxu0 0.0
    %3109 = vmatpush.msra.mxu0 0.0
    %3110 = vmatpush.msra.mxu0 0.0
    %3111 = vmatpush.msra.mxu0 0.0
    %3112 = vmatpush.msra.mxu0 0.0
    %3113 = vmatpush.msra.mxu0 0.0
    %3114 = vmatpush.msra.mxu0 0.0
    %3115 = vmatpush.msra.mxu0 0.0
    %3116 = vmatpush.msra.mxu0 %v172
    %3117 = vmatpush.msra.mxu0 %v168
    %3118 = vmatpush.msra.mxu0 %v164
    %3119 = vmatpush.msra.mxu0 %v160
    %3120 = vmatpush.msra.mxu0 %v156
    %3121 = vmatpush.msra.mxu0 %v152
    %3122 = vmatpush.msra.mxu0 %v148
    %3123 = vmatpush.msra.mxu0 %v144
    %3124 = vmatmul.f32.gmra.mxu0 %v3042
    %v3125 = vpop.f32.mrf.mxu0
    %v3126 = vadd.f32 0.0, %v3125
    %3127 = vdwg.mxu0
    %v3129 = vsel %vm99, %v3087, 0
    %3131 = vmatpush.msra.mxu0 0.0
    %3132 = vmatpush.msra.mxu0 0.0
    %3133 = vmatpush.msra.mxu0 0.0
    %3134 = vmatpush.msra.mxu0 0.0
    %3135 = vmatpush.msra.mxu0 0.0
    %3136 = vmatpush.msra.mxu0 0.0
    %3137 = vmatpush.msra.mxu0 0.0
    %3138 = vmatpush.msra.mxu0 0.0
    %3139 = vmatpush.msra.mxu0 0.0
    %3140 = vmatpush.msra.mxu0 0.0
    %3141 = vmatpush.msra.mxu0 0.0
    %3142 = vmatpush.msra.mxu0 0.0
    %3143 = vmatpush.msra.mxu0 %v265
    %3144 = vmatpush.msra.mxu0 %v264
    %3145 = vmatpush.msra.mxu0 %v263
    %3146 = vmatpush.msra.mxu0 %v262
    %3147 = vmatmul.f32.gmra.mxu0 %v3129
    %v3148 = vpop.f32.mrf.mxu0
    %v3149 = vadd.f32 %v3106, %v3148
    %3150 = vdwg.mxu0
    %3151 = vmatpush.msra.mxu0 0.0
    %3152 = vmatpush.msra.mxu0 0.0
    %3153 = vmatpush.msra.mxu0 0.0
    %3154 = vmatpush.msra.mxu0 0.0
    %3155 = vmatpush.msra.mxu0 0.0
    %3156 = vmatpush.msra.mxu0 0.0
    %3157 = vmatpush.msra.mxu0 0.0
    %3158 = vmatpush.msra.mxu0 0.0
    %3159 = vmatpush.msra.mxu0 0.0
    %3160 = vmatpush.msra.mxu0 0.0
    %3161 = vmatpush.msra.mxu0 0.0
    %3162 = vmatpush.msra.mxu0 0.0
    %3163 = vmatpush.msra.mxu0 %v261
    %3164 = vmatpush.msra.mxu0 %v257
    %3165 = vmatpush.msra.mxu0 %v253
    %3166 = vmatpush.msra.mxu0 %v249
    %3167 = vmatmul.f32.gmra.mxu0 %v3129
    %v3168 = vpop.f32.mrf.mxu0
    %v3169 = vadd.f32 %v3126, %v3168
    %3170 = vdwg.mxu0
    %v3171 = vadd.f32 %v3149, %v61
    %v3172 = vadd.f32 %v3169, %v62
    %v3173 = vand.u32 2147483647, %v3171
    %v3174 = vmul.f32 %v3173, %v3173
    %v3175 = vmul.f32 %v3174, %v3174
    %v3176 = vmul.f32 %v3175, %v3173
    %v3177 = vand.u32 2147483647, %v3172
    %v3178 = vmul.f32 %v3177, %v3177
    %v3179 = vmul.f32 %v3178, %v3178
    %v3180 = vmul.f32 %v3179, %v3177
    %3182 = vrot.lane.b32.xlu0 %v3176, 96
    %v3183 = vpop.permute.xlu0 %3182
    %v3184 = vsel %vm99, %v3183, 0
    %3186 = vmatpush.msra.mxu0 0.0
    %3187 = vmatpush.msra.mxu0 0.0
    %3188 = vmatpush.msra.mxu0 0.0
    %3189 = vmatpush.msra.mxu0 0.0
    %3190 = vmatpush.msra.mxu0 0.0
    %3191 = vmatpush.msra.mxu0 0.0
    %3192 = vmatpush.msra.mxu0 0.0
    %3193 = vmatpush.msra.mxu0 0.0
    %3194 = vmatpush.msra.mxu0 0.0
    %3195 = vmatpush.msra.mxu0 0.0
    %3196 = vmatpush.msra.mxu0 0.0
    %3197 = vmatpush.msra.mxu0 0.0
    %v3198 = vand.u32 %v57, 4294901760
    %3199 = vmatpush.msra.mxu0 %v3198
    %v3200 = vand.u32 %v55, 4294901760
    %3201 = vmatpush.msra.mxu0 %v3200
    %v3202 = vand.u32 %v53, 4294901760
    %3203 = vmatpush.msra.mxu0 %v3202
    %v3204 = vand.u32 %v51, 4294901760
    %3205 = vmatpush.msra.mxu0 %v3204
    %v3206 = vand.u32 %v3184, 4294901760
    %v3207 = vsub.f32 %v3184, %v3206
    %v3208 = vand.u32 %v3207, 4294901760
    %v3209 = vsub.f32 %v3207, %v3208
    %v3210 = vand.u32 %v3209, 4294901760
    %3211 = vmatmul.f32.gmra.mxu0 %v3210
    %v3212 = vpop.f32.mrf.mxu0
    %v3213 = vadd.f32 0.0, %v3212
    %3214 = vdwg.mxu0
    %3215 = vmatpush.msra.mxu0 0.0
    %3216 = vmatpush.msra.mxu0 0.0
    %3217 = vmatpush.msra.mxu0 0.0
    %3218 = vmatpush.msra.mxu0 0.0
    %3219 = vmatpush.msra.mxu0 0.0
    %3220 = vmatpush.msra.mxu0 0.0
    %3221 = vmatpush.msra.mxu0 0.0
    %3222 = vmatpush.msra.mxu0 0.0
    %3223 = vmatpush.msra.mxu0 0.0
    %3224 = vmatpush.msra.mxu0 0.0
    %3225 = vmatpush.msra.mxu0 0.0
    %3226 = vmatpush.msra.mxu0 0.0
    %v3227 = vand.u32 %v57, 4294901760
    %v3228 = vsub.f32 %v57, %v3227
    %v3229 = vand.u32 %v3228, 4294901760
    %v3230 = vsub.f32 %v3228, %v3229
    %v3231 = vand.u32 %v3230, 4294901760
    %3232 = vmatpush.msra.mxu0 %v3231
    %v3233 = vand.u32 %v55, 4294901760
    %v3234 = vsub.f32 %v55, %v3233
    %v3235 = vand.u32 %v3234, 4294901760
    %v3236 = vsub.f32 %v3234, %v3235
    %v3237 = vand.u32 %v3236, 4294901760
    %3238 = vmatpush.msra.mxu0 %v3237
    %v3239 = vand.u32 %v53, 4294901760
    %v3240 = vsub.f32 %v53, %v3239
    %v3241 = vand.u32 %v3240, 4294901760
    %v3242 = vsub.f32 %v3240, %v3241
    %v3243 = vand.u32 %v3242, 4294901760
    %3244 = vmatpush.msra.mxu0 %v3243
    %v3245 = vand.u32 %v51, 4294901760
    %v3246 = vsub.f32 %v51, %v3245
    %v3247 = vand.u32 %v3246, 4294901760
    %v3248 = vsub.f32 %v3246, %v3247
    %v3249 = vand.u32 %v3248, 4294901760
    %3250 = vmatpush.msra.mxu0 %v3249
    %v3251 = vand.u32 %v3184, 4294901760
    %3252 = vmatmul.f32.gmra.mxu0 %v3251
    %v3253 = vpop.f32.mrf.mxu0
    %v3254 = vadd.f32 %v3213, %v3253
    %3255 = vdwg.mxu0
    %3256 = vmatpush.msra.mxu0 0.0
    %3257 = vmatpush.msra.mxu0 0.0
    %3258 = vmatpush.msra.mxu0 0.0
    %3259 = vmatpush.msra.mxu0 0.0
    %3260 = vmatpush.msra.mxu0 0.0
    %3261 = vmatpush.msra.mxu0 0.0
    %3262 = vmatpush.msra.mxu0 0.0
    %3263 = vmatpush.msra.mxu0 0.0
    %3264 = vmatpush.msra.mxu0 0.0
    %3265 = vmatpush.msra.mxu0 0.0
    %3266 = vmatpush.msra.mxu0 0.0
    %3267 = vmatpush.msra.mxu0 0.0
    %v3268 = vand.u32 %v57, 4294901760
    %v3269 = vsub.f32 %v57, %v3268
    %3270 = vmatpush.msra.mxu0 %v3269
    %v3271 = vand.u32 %v55, 4294901760
    %v3272 = vsub.f32 %v55, %v3271
    %3273 = vmatpush.msra.mxu0 %v3272
    %v3274 = vand.u32 %v53, 4294901760
    %v3275 = vsub.f32 %v53, %v3274
    %3276 = vmatpush.msra.mxu0 %v3275
    %v3277 = vand.u32 %v51, 4294901760
    %v3278 = vsub.f32 %v51, %v3277
    %3279 = vmatpush.msra.mxu0 %v3278
    %v3280 = vand.u32 %v3184, 4294901760
    %v3281 = vsub.f32 %v3184, %v3280
    %3282 = vmatmul.f32.gmra.mxu0 %v3281
    %v3283 = vpop.f32.mrf.mxu0
    %v3284 = vadd.f32 %v3254, %v3283
    %3285 = vdwg.mxu0
    %3286 = vmatpush.msra.mxu0 0.0
    %3287 = vmatpush.msra.mxu0 0.0
    %3288 = vmatpush.msra.mxu0 0.0
    %3289 = vmatpush.msra.mxu0 0.0
    %3290 = vmatpush.msra.mxu0 0.0
    %3291 = vmatpush.msra.mxu0 0.0
    %3292 = vmatpush.msra.mxu0 0.0
    %3293 = vmatpush.msra.mxu0 0.0
    %3294 = vmatpush.msra.mxu0 0.0
    %3295 = vmatpush.msra.mxu0 0.0
    %3296 = vmatpush.msra.mxu0 0.0
    %3297 = vmatpush.msra.mxu0 0.0
    %v3298 = vand.u32 %v57, 4294901760
    %3299 = vmatpush.msra.mxu0 %v3298
    %v3300 = vand.u32 %v55, 4294901760
    %3301 = vmatpush.msra.mxu0 %v3300
    %v3302 = vand.u32 %v53, 4294901760
    %3303 = vmatpush.msra.mxu0 %v3302
    %v3304 = vand.u32 %v51, 4294901760
    %3305 = vmatpush.msra.mxu0 %v3304
    %v3306 = vand.u32 %v3184, 4294901760
    %v3307 = vsub.f32 %v3184, %v3306
    %v3308 = vand.u32 %v3307, 4294901760
    %3309 = vmatmul.f32.gmra.mxu0 %v3308
    %v3310 = vpop.f32.mrf.mxu0
    %v3311 = vadd.f32 %v3284, %v3310
    %3312 = vdwg.mxu0
    %3313 = vmatpush.msra.mxu0 0.0
    %3314 = vmatpush.msra.mxu0 0.0
    %3315 = vmatpush.msra.mxu0 0.0
    %3316 = vmatpush.msra.mxu0 0.0
    %3317 = vmatpush.msra.mxu0 0.0
    %3318 = vmatpush.msra.mxu0 0.0
    %3319 = vmatpush.msra.mxu0 0.0
    %3320 = vmatpush.msra.mxu0 0.0
    %3321 = vmatpush.msra.mxu0 0.0
    %3322 = vmatpush.msra.mxu0 0.0
    %3323 = vmatpush.msra.mxu0 0.0
    %3324 = vmatpush.msra.mxu0 0.0
    %v3325 = vand.u32 %v57, 4294901760
    %v3326 = vsub.f32 %v57, %v3325
    %v3327 = vand.u32 %v3326, 4294901760
    %3328 = vmatpush.msra.mxu0 %v3327
    %v3329 = vand.u32 %v55, 4294901760
    %v3330 = vsub.f32 %v55, %v3329
    %v3331 = vand.u32 %v3330, 4294901760
    %3332 = vmatpush.msra.mxu0 %v3331
    %v3333 = vand.u32 %v53, 4294901760
    %v3334 = vsub.f32 %v53, %v3333
    %v3335 = vand.u32 %v3334, 4294901760
    %3336 = vmatpush.msra.mxu0 %v3335
    %v3337 = vand.u32 %v51, 4294901760
    %v3338 = vsub.f32 %v51, %v3337
    %v3339 = vand.u32 %v3338, 4294901760
    %3340 = vmatpush.msra.mxu0 %v3339
    %v3341 = vand.u32 %v3184, 4294901760
    %3342 = vmatmul.f32.gmra.mxu0 %v3341
    %v3343 = vpop.f32.mrf.mxu0
    %v3344 = vadd.f32 %v3311, %v3343
    %3345 = vdwg.mxu0
    %3346 = vmatpush.msra.mxu0 0.0
    %3347 = vmatpush.msra.mxu0 0.0
    %3348 = vmatpush.msra.mxu0 0.0
    %3349 = vmatpush.msra.mxu0 0.0
    %3350 = vmatpush.msra.mxu0 0.0
    %3351 = vmatpush.msra.mxu0 0.0
    %3352 = vmatpush.msra.mxu0 0.0
    %3353 = vmatpush.msra.mxu0 0.0
    %3354 = vmatpush.msra.mxu0 0.0
    %3355 = vmatpush.msra.mxu0 0.0
    %3356 = vmatpush.msra.mxu0 0.0
    %3357 = vmatpush.msra.mxu0 0.0
    %v3358 = vand.u32 %v57, 4294901760
    %3359 = vmatpush.msra.mxu0 %v3358
    %v3360 = vand.u32 %v55, 4294901760
    %3361 = vmatpush.msra.mxu0 %v3360
    %v3362 = vand.u32 %v53, 4294901760
    %3363 = vmatpush.msra.mxu0 %v3362
    %v3364 = vand.u32 %v51, 4294901760
    %3365 = vmatpush.msra.mxu0 %v3364
    %v3366 = vand.u32 %v3184, 4294901760
    %3367 = vmatmul.f32.gmra.mxu0 %v3366
    %v3368 = vpop.f32.mrf.mxu0
    %v3369 = vadd.f32 %v3344, %v3368
    %3370 = vdwg.mxu0
    %3371 = vrot.lane.b32.xlu0 %v3176, 64
    %v3372 = vpop.permute.xlu0 %3371
    %v3374 = vsel %vm520, %v3372, 0.0
    %3375 = vadd.xlane.f32.xlu0 %v3374
    %v3376 = vpop.xlane.xlu0 %3375
    %v3377 = vmul.f32 %v3376, 0.25
    %v3378 = vsel %vm520, %v3180, 0.0
    %3379 = vadd.xlane.f32.xlu0 %v3378
    %v3380 = vpop.xlane.xlu0 %3379
    %v3381 = vmul.f32 %v3380, 0.25
    %v3382 = vsel %vm529, %v3377, %v3381
    %v3383 = vmul.f32 %v3369, %v3382
    %v3384 = vlog2.pop %v3383
    %v3385 = vmul.f32 %v3384, 0.6931472
    %v3386 = vmul.f32 %v3385, 0.2
    %v3387 = vmul.f32 %v3386, 1.442695
    %v3388 = vpow.pop %v3387
    %v3389 = vmax.f32 %v3388, 1e-12
    %v3390 = vrcp.pop %v3389
    %v3391 = vmul.f32 %v3390, 0.25
    %v3392 = vmul.f32 %v3171, %v3391
    %3394 = vrot.lane.b32.xlu0 %v3171, 96
    %v3395 = vpop.permute.xlu0 %3394
    %v3397 = vmul.f32 %v3392, %v3395
    %v3399 = vsel %vm99, %v3397, 0
    %3401 = vmatpush.msra.mxu0 0.0
    %3402 = vmatpush.msra.mxu0 0.0
    %3403 = vmatpush.msra.mxu0 0.0
    %3404 = vmatpush.msra.mxu0 0.0
    %3405 = vmatpush.msra.mxu0 0.0
    %3406 = vmatpush.msra.mxu0 0.0
    %3407 = vmatpush.msra.mxu0 0.0
    %3408 = vmatpush.msra.mxu0 0.0
    %3409 = vmatpush.msra.mxu0 0.0
    %3410 = vmatpush.msra.mxu0 0.0
    %3411 = vmatpush.msra.mxu0 0.0
    %3412 = vmatpush.msra.mxu0 0.0
    %v3413 = vand.u32 %v573, 4294901760
    %3414 = vmatpush.msra.mxu0 %v3413
    %v3415 = vand.u32 %v572, 4294901760
    %3416 = vmatpush.msra.mxu0 %v3415
    %v3417 = vand.u32 %v571, 4294901760
    %3418 = vmatpush.msra.mxu0 %v3417
    %v3419 = vand.u32 %v570, 4294901760
    %3420 = vmatpush.msra.mxu0 %v3419
    %v3421 = vand.u32 %v3399, 4294901760
    %v3422 = vsub.f32 %v3399, %v3421
    %v3423 = vand.u32 %v3422, 4294901760
    %v3424 = vsub.f32 %v3422, %v3423
    %v3425 = vand.u32 %v3424, 4294901760
    %3426 = vmatmul.f32.gmra.mxu0 %v3425
    %v3427 = vpop.f32.mrf.mxu0
    %v3428 = vadd.f32 0.0, %v3427
    %3429 = vdwg.mxu0
    %3430 = vmatpush.msra.mxu0 0.0
    %3431 = vmatpush.msra.mxu0 0.0
    %3432 = vmatpush.msra.mxu0 0.0
    %3433 = vmatpush.msra.mxu0 0.0
    %3434 = vmatpush.msra.mxu0 0.0
    %3435 = vmatpush.msra.mxu0 0.0
    %3436 = vmatpush.msra.mxu0 0.0
    %3437 = vmatpush.msra.mxu0 0.0
    %3438 = vmatpush.msra.mxu0 0.0
    %3439 = vmatpush.msra.mxu0 0.0
    %3440 = vmatpush.msra.mxu0 0.0
    %3441 = vmatpush.msra.mxu0 0.0
    %v3442 = vand.u32 %v573, 4294901760
    %v3443 = vsub.f32 %v573, %v3442
    %v3444 = vand.u32 %v3443, 4294901760
    %v3445 = vsub.f32 %v3443, %v3444
    %v3446 = vand.u32 %v3445, 4294901760
    %3447 = vmatpush.msra.mxu0 %v3446
    %v3448 = vand.u32 %v572, 4294901760
    %v3449 = vsub.f32 %v572, %v3448
    %v3450 = vand.u32 %v3449, 4294901760
    %v3451 = vsub.f32 %v3449, %v3450
    %v3452 = vand.u32 %v3451, 4294901760
    %3453 = vmatpush.msra.mxu0 %v3452
    %v3454 = vand.u32 %v571, 4294901760
    %v3455 = vsub.f32 %v571, %v3454
    %v3456 = vand.u32 %v3455, 4294901760
    %v3457 = vsub.f32 %v3455, %v3456
    %v3458 = vand.u32 %v3457, 4294901760
    %3459 = vmatpush.msra.mxu0 %v3458
    %v3460 = vand.u32 %v570, 4294901760
    %v3461 = vsub.f32 %v570, %v3460
    %v3462 = vand.u32 %v3461, 4294901760
    %v3463 = vsub.f32 %v3461, %v3462
    %v3464 = vand.u32 %v3463, 4294901760
    %3465 = vmatpush.msra.mxu0 %v3464
    %v3466 = vand.u32 %v3399, 4294901760
    %3467 = vmatmul.f32.gmra.mxu0 %v3466
    %v3468 = vpop.f32.mrf.mxu0
    %v3469 = vadd.f32 %v3428, %v3468
    %3470 = vdwg.mxu0
    %3471 = vmatpush.msra.mxu0 0.0
    %3472 = vmatpush.msra.mxu0 0.0
    %3473 = vmatpush.msra.mxu0 0.0
    %3474 = vmatpush.msra.mxu0 0.0
    %3475 = vmatpush.msra.mxu0 0.0
    %3476 = vmatpush.msra.mxu0 0.0
    %3477 = vmatpush.msra.mxu0 0.0
    %3478 = vmatpush.msra.mxu0 0.0
    %3479 = vmatpush.msra.mxu0 0.0
    %3480 = vmatpush.msra.mxu0 0.0
    %3481 = vmatpush.msra.mxu0 0.0
    %3482 = vmatpush.msra.mxu0 0.0
    %v3483 = vand.u32 %v573, 4294901760
    %v3484 = vsub.f32 %v573, %v3483
    %3485 = vmatpush.msra.mxu0 %v3484
    %v3486 = vand.u32 %v572, 4294901760
    %v3487 = vsub.f32 %v572, %v3486
    %3488 = vmatpush.msra.mxu0 %v3487
    %v3489 = vand.u32 %v571, 4294901760
    %v3490 = vsub.f32 %v571, %v3489
    %3491 = vmatpush.msra.mxu0 %v3490
    %v3492 = vand.u32 %v570, 4294901760
    %v3493 = vsub.f32 %v570, %v3492
    %3494 = vmatpush.msra.mxu0 %v3493
    %v3495 = vand.u32 %v3399, 4294901760
    %v3496 = vsub.f32 %v3399, %v3495
    %3497 = vmatmul.f32.gmra.mxu0 %v3496
    %v3498 = vpop.f32.mrf.mxu0
    %v3499 = vadd.f32 %v3469, %v3498
    %3500 = vdwg.mxu0
    %3501 = vmatpush.msra.mxu0 0.0
    %3502 = vmatpush.msra.mxu0 0.0
    %3503 = vmatpush.msra.mxu0 0.0
    %3504 = vmatpush.msra.mxu0 0.0
    %3505 = vmatpush.msra.mxu0 0.0
    %3506 = vmatpush.msra.mxu0 0.0
    %3507 = vmatpush.msra.mxu0 0.0
    %3508 = vmatpush.msra.mxu0 0.0
    %3509 = vmatpush.msra.mxu0 0.0
    %3510 = vmatpush.msra.mxu0 0.0
    %3511 = vmatpush.msra.mxu0 0.0
    %3512 = vmatpush.msra.mxu0 0.0
    %v3513 = vand.u32 %v573, 4294901760
    %3514 = vmatpush.msra.mxu0 %v3513
    %v3515 = vand.u32 %v572, 4294901760
    %3516 = vmatpush.msra.mxu0 %v3515
    %v3517 = vand.u32 %v571, 4294901760
    %3518 = vmatpush.msra.mxu0 %v3517
    %v3519 = vand.u32 %v570, 4294901760
    %3520 = vmatpush.msra.mxu0 %v3519
    %v3521 = vand.u32 %v3399, 4294901760
    %v3522 = vsub.f32 %v3399, %v3521
    %v3523 = vand.u32 %v3522, 4294901760
    %3524 = vmatmul.f32.gmra.mxu0 %v3523
    %v3525 = vpop.f32.mrf.mxu0
    %v3526 = vadd.f32 %v3499, %v3525
    %3527 = vdwg.mxu0
    %3528 = vmatpush.msra.mxu0 0.0
    %3529 = vmatpush.msra.mxu0 0.0
    %3530 = vmatpush.msra.mxu0 0.0
    %3531 = vmatpush.msra.mxu0 0.0
    %3532 = vmatpush.msra.mxu0 0.0
    %3533 = vmatpush.msra.mxu0 0.0
    %3534 = vmatpush.msra.mxu0 0.0
    %3535 = vmatpush.msra.mxu0 0.0
    %3536 = vmatpush.msra.mxu0 0.0
    %3537 = vmatpush.msra.mxu0 0.0
    %3538 = vmatpush.msra.mxu0 0.0
    %3539 = vmatpush.msra.mxu0 0.0
    %v3540 = vand.u32 %v573, 4294901760
    %v3541 = vsub.f32 %v573, %v3540
    %v3542 = vand.u32 %v3541, 4294901760
    %3543 = vmatpush.msra.mxu0 %v3542
    %v3544 = vand.u32 %v572, 4294901760
    %v3545 = vsub.f32 %v572, %v3544
    %v3546 = vand.u32 %v3545, 4294901760
    %3547 = vmatpush.msra.mxu0 %v3546
    %v3548 = vand.u32 %v571, 4294901760
    %v3549 = vsub.f32 %v571, %v3548
    %v3550 = vand.u32 %v3549, 4294901760
    %3551 = vmatpush.msra.mxu0 %v3550
    %v3552 = vand.u32 %v570, 4294901760
    %v3553 = vsub.f32 %v570, %v3552
    %v3554 = vand.u32 %v3553, 4294901760
    %3555 = vmatpush.msra.mxu0 %v3554
    %v3556 = vand.u32 %v3399, 4294901760
    %3557 = vmatmul.f32.gmra.mxu0 %v3556
    %v3558 = vpop.f32.mrf.mxu0
    %v3559 = vadd.f32 %v3526, %v3558
    %3560 = vdwg.mxu0
    %3561 = vmatpush.msra.mxu0 0.0
    %3562 = vmatpush.msra.mxu0 0.0
    %3563 = vmatpush.msra.mxu0 0.0
    %3564 = vmatpush.msra.mxu0 0.0
    %3565 = vmatpush.msra.mxu0 0.0
    %3566 = vmatpush.msra.mxu0 0.0
    %3567 = vmatpush.msra.mxu0 0.0
    %3568 = vmatpush.msra.mxu0 0.0
    %3569 = vmatpush.msra.mxu0 0.0
    %3570 = vmatpush.msra.mxu0 0.0
    %3571 = vmatpush.msra.mxu0 0.0
    %3572 = vmatpush.msra.mxu0 0.0
    %v3573 = vand.u32 %v573, 4294901760
    %3574 = vmatpush.msra.mxu0 %v3573
    %v3575 = vand.u32 %v572, 4294901760
    %3576 = vmatpush.msra.mxu0 %v3575
    %v3577 = vand.u32 %v571, 4294901760
    %3578 = vmatpush.msra.mxu0 %v3577
    %v3579 = vand.u32 %v570, 4294901760
    %3580 = vmatpush.msra.mxu0 %v3579
    %v3581 = vand.u32 %v3399, 4294901760
    %3582 = vmatmul.f32.gmra.mxu0 %v3581
    %v3583 = vpop.f32.mrf.mxu0
    %v3584 = vadd.f32 %v3559, %v3583
    %3585 = vdwg.mxu0
    %3587 = vrot.lane.b32.xlu0 %v3171, 64
    %v3588 = vpop.permute.xlu0 %3587
    %3589 = vrot.lane.b32.xlu0 %v3172, 64
    %v3590 = vpop.permute.xlu0 %3589
    %v3591 = vsel %vm76, %v3588, %v3590
    %v3593 = vmul.f32 %v3584, %v3591
    %3595 = vrot.lane.b32.xlu0 %v3593, 32
    %v3596 = vpop.permute.xlu0 %3595
    %v3598 = vadd.f32 %v3038, %v3596
    %3599 = vrot.lane.b32.xlu0 %v3593, 96
    %v3600 = vpop.permute.xlu0 %3599
    %v3602 = vsub.f32 %v3598, %v3600
    %3604 = vrot.lane.b32.xlu0 %v3602, 96
    %v3605 = vpop.permute.xlu0 %3604
    %v3606 = vsel %vm76, %v3605, 0
    %3608 = vmatpush.msra.mxu0 0.0
    %3609 = vmatpush.msra.mxu0 0.0
    %3610 = vmatpush.msra.mxu0 0.0
    %3611 = vmatpush.msra.mxu0 0.0
    %3612 = vmatpush.msra.mxu0 0.0
    %3613 = vmatpush.msra.mxu0 0.0
    %3614 = vmatpush.msra.mxu0 0.0
    %3615 = vmatpush.msra.mxu0 0.0
    %3616 = vmatpush.msra.mxu0 %v49
    %3617 = vmatpush.msra.mxu0 %v47
    %3618 = vmatpush.msra.mxu0 %v45
    %3619 = vmatpush.msra.mxu0 %v43
    %3620 = vmatpush.msra.mxu0 %v41
    %3621 = vmatpush.msra.mxu0 %v39
    %3622 = vmatpush.msra.mxu0 %v37
    %3623 = vmatpush.msra.mxu0 %v35
    %3624 = vmatmul.f32.gmra.mxu0 %v3606
    %v3625 = vpop.f32.mrf.mxu0
    %v3626 = vadd.f32 0.0, %v3625
    %3627 = vdwg.mxu0
    %3628 = vmatpush.msra.mxu0 0.0
    %3629 = vmatpush.msra.mxu0 0.0
    %3630 = vmatpush.msra.mxu0 0.0
    %3631 = vmatpush.msra.mxu0 0.0
    %3632 = vmatpush.msra.mxu0 0.0
    %3633 = vmatpush.msra.mxu0 0.0
    %3634 = vmatpush.msra.mxu0 0.0
    %3635 = vmatpush.msra.mxu0 0.0
    %3636 = vmatpush.msra.mxu0 0.0
    %3637 = vmatpush.msra.mxu0 0.0
    %3638 = vmatpush.msra.mxu0 0.0
    %3639 = vmatpush.msra.mxu0 0.0
    %3640 = vmatpush.msra.mxu0 %v33
    %3641 = vmatpush.msra.mxu0 %v31
    %3642 = vmatpush.msra.mxu0 %v29
    %3643 = vmatpush.msra.mxu0 %v27
    %3644 = vmatmul.f32.gmra.mxu0 %v3129
    %v3645 = vpop.f32.mrf.mxu0
    %v3646 = vadd.f32 %v3626, %v3645
    %3647 = vdwg.mxu0
    %s3648 = scalar_lea.vmem %s0, 24
    %v3649 = vld [vmem:[%s3648] sm:$0xf]
    %v3650 = vadd.f32 %v3646, %v3649
    %v3651 = vmax.f32 %v3650, 0.0
    %3652 = vmatpush.msra.mxu0 0.0
    %3653 = vmatpush.msra.mxu0 0.0
    %3654 = vmatpush.msra.mxu0 0.0
    %3655 = vmatpush.msra.mxu0 0.0
    %3656 = vmatpush.msra.mxu0 0.0
    %3657 = vmatpush.msra.mxu0 0.0
    %3658 = vmatpush.msra.mxu0 0.0
    %3659 = vmatpush.msra.mxu0 0.0
    %3660 = vmatpush.msra.mxu0 %v181
    %3661 = vmatpush.msra.mxu0 %v180
    %3662 = vmatpush.msra.mxu0 %v179
    %3663 = vmatpush.msra.mxu0 %v178
    %3664 = vmatpush.msra.mxu0 %v177
    %3665 = vmatpush.msra.mxu0 %v176
    %3666 = vmatpush.msra.mxu0 %v175
    %3667 = vmatpush.msra.mxu0 %v174
    %3668 = vmatmul.f32.gmra.mxu0 %v3606
    %v3669 = vpop.f32.mrf.mxu0
    %v3670 = vadd.f32 0.0, %v3669
    %3671 = vdwg.mxu0
    %3672 = vmatpush.msra.mxu0 0.0
    %3673 = vmatpush.msra.mxu0 0.0
    %3674 = vmatpush.msra.mxu0 0.0
    %3675 = vmatpush.msra.mxu0 0.0
    %3676 = vmatpush.msra.mxu0 0.0
    %3677 = vmatpush.msra.mxu0 0.0
    %3678 = vmatpush.msra.mxu0 0.0
    %3679 = vmatpush.msra.mxu0 0.0
    %3680 = vmatpush.msra.mxu0 %v172
    %3681 = vmatpush.msra.mxu0 %v168
    %3682 = vmatpush.msra.mxu0 %v164
    %3683 = vmatpush.msra.mxu0 %v160
    %3684 = vmatpush.msra.mxu0 %v156
    %3685 = vmatpush.msra.mxu0 %v152
    %3686 = vmatpush.msra.mxu0 %v148
    %3687 = vmatpush.msra.mxu0 %v144
    %3688 = vmatmul.f32.gmra.mxu0 %v3606
    %v3689 = vpop.f32.mrf.mxu0
    %v3690 = vadd.f32 0.0, %v3689
    %3691 = vdwg.mxu0
    %v3693 = vsel %vm99, %v3651, 0
    %3695 = vmatpush.msra.mxu0 0.0
    %3696 = vmatpush.msra.mxu0 0.0
    %3697 = vmatpush.msra.mxu0 0.0
    %3698 = vmatpush.msra.mxu0 0.0
    %3699 = vmatpush.msra.mxu0 0.0
    %3700 = vmatpush.msra.mxu0 0.0
    %3701 = vmatpush.msra.mxu0 0.0
    %3702 = vmatpush.msra.mxu0 0.0
    %3703 = vmatpush.msra.mxu0 0.0
    %3704 = vmatpush.msra.mxu0 0.0
    %3705 = vmatpush.msra.mxu0 0.0
    %3706 = vmatpush.msra.mxu0 0.0
    %3707 = vmatpush.msra.mxu0 %v265
    %3708 = vmatpush.msra.mxu0 %v264
    %3709 = vmatpush.msra.mxu0 %v263
    %3710 = vmatpush.msra.mxu0 %v262
    %3711 = vmatmul.f32.gmra.mxu0 %v3693
    %v3712 = vpop.f32.mrf.mxu0
    %v3713 = vadd.f32 %v3670, %v3712
    %3714 = vdwg.mxu0
    %3715 = vmatpush.msra.mxu0 0.0
    %3716 = vmatpush.msra.mxu0 0.0
    %3717 = vmatpush.msra.mxu0 0.0
    %3718 = vmatpush.msra.mxu0 0.0
    %3719 = vmatpush.msra.mxu0 0.0
    %3720 = vmatpush.msra.mxu0 0.0
    %3721 = vmatpush.msra.mxu0 0.0
    %3722 = vmatpush.msra.mxu0 0.0
    %3723 = vmatpush.msra.mxu0 0.0
    %3724 = vmatpush.msra.mxu0 0.0
    %3725 = vmatpush.msra.mxu0 0.0
    %3726 = vmatpush.msra.mxu0 0.0
    %3727 = vmatpush.msra.mxu0 %v261
    %3728 = vmatpush.msra.mxu0 %v257
    %3729 = vmatpush.msra.mxu0 %v253
    %3730 = vmatpush.msra.mxu0 %v249
    %3731 = vmatmul.f32.gmra.mxu0 %v3693
    %v3732 = vpop.f32.mrf.mxu0
    %v3733 = vadd.f32 %v3690, %v3732
    %3734 = vdwg.mxu0
    %v3735 = vadd.f32 %v3713, %v61
    %v3736 = vadd.f32 %v3733, %v62
    %v3737 = vand.u32 2147483647, %v3735
    %v3738 = vmul.f32 %v3737, %v3737
    %v3739 = vmul.f32 %v3738, %v3738
    %v3740 = vmul.f32 %v3739, %v3737
    %v3741 = vand.u32 2147483647, %v3736
    %v3742 = vmul.f32 %v3741, %v3741
    %v3743 = vmul.f32 %v3742, %v3742
    %v3744 = vmul.f32 %v3743, %v3741
    %3746 = vrot.lane.b32.xlu0 %v3740, 96
    %v3747 = vpop.permute.xlu0 %3746
    %v3748 = vsel %vm99, %v3747, 0
    %3750 = vmatpush.msra.mxu0 0.0
    %3751 = vmatpush.msra.mxu0 0.0
    %3752 = vmatpush.msra.mxu0 0.0
    %3753 = vmatpush.msra.mxu0 0.0
    %3754 = vmatpush.msra.mxu0 0.0
    %3755 = vmatpush.msra.mxu0 0.0
    %3756 = vmatpush.msra.mxu0 0.0
    %3757 = vmatpush.msra.mxu0 0.0
    %3758 = vmatpush.msra.mxu0 0.0
    %3759 = vmatpush.msra.mxu0 0.0
    %3760 = vmatpush.msra.mxu0 0.0
    %3761 = vmatpush.msra.mxu0 0.0
    %v3762 = vand.u32 %v57, 4294901760
    %3763 = vmatpush.msra.mxu0 %v3762
    %v3764 = vand.u32 %v55, 4294901760
    %3765 = vmatpush.msra.mxu0 %v3764
    %v3766 = vand.u32 %v53, 4294901760
    %3767 = vmatpush.msra.mxu0 %v3766
    %v3768 = vand.u32 %v51, 4294901760
    %3769 = vmatpush.msra.mxu0 %v3768
    %v3770 = vand.u32 %v3748, 4294901760
    %v3771 = vsub.f32 %v3748, %v3770
    %v3772 = vand.u32 %v3771, 4294901760
    %v3773 = vsub.f32 %v3771, %v3772
    %v3774 = vand.u32 %v3773, 4294901760
    %3775 = vmatmul.f32.gmra.mxu0 %v3774
    %v3776 = vpop.f32.mrf.mxu0
    %v3777 = vadd.f32 0.0, %v3776
    %3778 = vdwg.mxu0
    %3779 = vmatpush.msra.mxu0 0.0
    %3780 = vmatpush.msra.mxu0 0.0
    %3781 = vmatpush.msra.mxu0 0.0
    %3782 = vmatpush.msra.mxu0 0.0
    %3783 = vmatpush.msra.mxu0 0.0
    %3784 = vmatpush.msra.mxu0 0.0
    %3785 = vmatpush.msra.mxu0 0.0
    %3786 = vmatpush.msra.mxu0 0.0
    %3787 = vmatpush.msra.mxu0 0.0
    %3788 = vmatpush.msra.mxu0 0.0
    %3789 = vmatpush.msra.mxu0 0.0
    %3790 = vmatpush.msra.mxu0 0.0
    %v3791 = vand.u32 %v57, 4294901760
    %v3792 = vsub.f32 %v57, %v3791
    %v3793 = vand.u32 %v3792, 4294901760
    %v3794 = vsub.f32 %v3792, %v3793
    %v3795 = vand.u32 %v3794, 4294901760
    %3796 = vmatpush.msra.mxu0 %v3795
    %v3797 = vand.u32 %v55, 4294901760
    %v3798 = vsub.f32 %v55, %v3797
    %v3799 = vand.u32 %v3798, 4294901760
    %v3800 = vsub.f32 %v3798, %v3799
    %v3801 = vand.u32 %v3800, 4294901760
    %3802 = vmatpush.msra.mxu0 %v3801
    %v3803 = vand.u32 %v53, 4294901760
    %v3804 = vsub.f32 %v53, %v3803
    %v3805 = vand.u32 %v3804, 4294901760
    %v3806 = vsub.f32 %v3804, %v3805
    %v3807 = vand.u32 %v3806, 4294901760
    %3808 = vmatpush.msra.mxu0 %v3807
    %v3809 = vand.u32 %v51, 4294901760
    %v3810 = vsub.f32 %v51, %v3809
    %v3811 = vand.u32 %v3810, 4294901760
    %v3812 = vsub.f32 %v3810, %v3811
    %v3813 = vand.u32 %v3812, 4294901760
    %3814 = vmatpush.msra.mxu0 %v3813
    %v3815 = vand.u32 %v3748, 4294901760
    %3816 = vmatmul.f32.gmra.mxu0 %v3815
    %v3817 = vpop.f32.mrf.mxu0
    %v3818 = vadd.f32 %v3777, %v3817
    %3819 = vdwg.mxu0
    %3820 = vmatpush.msra.mxu0 0.0
    %3821 = vmatpush.msra.mxu0 0.0
    %3822 = vmatpush.msra.mxu0 0.0
    %3823 = vmatpush.msra.mxu0 0.0
    %3824 = vmatpush.msra.mxu0 0.0
    %3825 = vmatpush.msra.mxu0 0.0
    %3826 = vmatpush.msra.mxu0 0.0
    %3827 = vmatpush.msra.mxu0 0.0
    %3828 = vmatpush.msra.mxu0 0.0
    %3829 = vmatpush.msra.mxu0 0.0
    %3830 = vmatpush.msra.mxu0 0.0
    %3831 = vmatpush.msra.mxu0 0.0
    %v3832 = vand.u32 %v57, 4294901760
    %v3833 = vsub.f32 %v57, %v3832
    %3834 = vmatpush.msra.mxu0 %v3833
    %v3835 = vand.u32 %v55, 4294901760
    %v3836 = vsub.f32 %v55, %v3835
    %3837 = vmatpush.msra.mxu0 %v3836
    %v3838 = vand.u32 %v53, 4294901760
    %v3839 = vsub.f32 %v53, %v3838
    %3840 = vmatpush.msra.mxu0 %v3839
    %v3841 = vand.u32 %v51, 4294901760
    %v3842 = vsub.f32 %v51, %v3841
    %3843 = vmatpush.msra.mxu0 %v3842
    %v3844 = vand.u32 %v3748, 4294901760
    %v3845 = vsub.f32 %v3748, %v3844
    %3846 = vmatmul.f32.gmra.mxu0 %v3845
    %v3847 = vpop.f32.mrf.mxu0
    %v3848 = vadd.f32 %v3818, %v3847
    %3849 = vdwg.mxu0
    %3850 = vmatpush.msra.mxu0 0.0
    %3851 = vmatpush.msra.mxu0 0.0
    %3852 = vmatpush.msra.mxu0 0.0
    %3853 = vmatpush.msra.mxu0 0.0
    %3854 = vmatpush.msra.mxu0 0.0
    %3855 = vmatpush.msra.mxu0 0.0
    %3856 = vmatpush.msra.mxu0 0.0
    %3857 = vmatpush.msra.mxu0 0.0
    %3858 = vmatpush.msra.mxu0 0.0
    %3859 = vmatpush.msra.mxu0 0.0
    %3860 = vmatpush.msra.mxu0 0.0
    %3861 = vmatpush.msra.mxu0 0.0
    %v3862 = vand.u32 %v57, 4294901760
    %3863 = vmatpush.msra.mxu0 %v3862
    %v3864 = vand.u32 %v55, 4294901760
    %3865 = vmatpush.msra.mxu0 %v3864
    %v3866 = vand.u32 %v53, 4294901760
    %3867 = vmatpush.msra.mxu0 %v3866
    %v3868 = vand.u32 %v51, 4294901760
    %3869 = vmatpush.msra.mxu0 %v3868
    %v3870 = vand.u32 %v3748, 4294901760
    %v3871 = vsub.f32 %v3748, %v3870
    %v3872 = vand.u32 %v3871, 4294901760
    %3873 = vmatmul.f32.gmra.mxu0 %v3872
    %v3874 = vpop.f32.mrf.mxu0
    %v3875 = vadd.f32 %v3848, %v3874
    %3876 = vdwg.mxu0
    %3877 = vmatpush.msra.mxu0 0.0
    %3878 = vmatpush.msra.mxu0 0.0
    %3879 = vmatpush.msra.mxu0 0.0
    %3880 = vmatpush.msra.mxu0 0.0
    %3881 = vmatpush.msra.mxu0 0.0
    %3882 = vmatpush.msra.mxu0 0.0
    %3883 = vmatpush.msra.mxu0 0.0
    %3884 = vmatpush.msra.mxu0 0.0
    %3885 = vmatpush.msra.mxu0 0.0
    %3886 = vmatpush.msra.mxu0 0.0
    %3887 = vmatpush.msra.mxu0 0.0
    %3888 = vmatpush.msra.mxu0 0.0
    %v3889 = vand.u32 %v57, 4294901760
    %v3890 = vsub.f32 %v57, %v3889
    %v3891 = vand.u32 %v3890, 4294901760
    %3892 = vmatpush.msra.mxu0 %v3891
    %v3893 = vand.u32 %v55, 4294901760
    %v3894 = vsub.f32 %v55, %v3893
    %v3895 = vand.u32 %v3894, 4294901760
    %3896 = vmatpush.msra.mxu0 %v3895
    %v3897 = vand.u32 %v53, 4294901760
    %v3898 = vsub.f32 %v53, %v3897
    %v3899 = vand.u32 %v3898, 4294901760
    %3900 = vmatpush.msra.mxu0 %v3899
    %v3901 = vand.u32 %v51, 4294901760
    %v3902 = vsub.f32 %v51, %v3901
    %v3903 = vand.u32 %v3902, 4294901760
    %3904 = vmatpush.msra.mxu0 %v3903
    %v3905 = vand.u32 %v3748, 4294901760
    %3906 = vmatmul.f32.gmra.mxu0 %v3905
    %v3907 = vpop.f32.mrf.mxu0
    %v3908 = vadd.f32 %v3875, %v3907
    %3909 = vdwg.mxu0
    %3910 = vmatpush.msra.mxu0 0.0
    %3911 = vmatpush.msra.mxu0 0.0
    %3912 = vmatpush.msra.mxu0 0.0
    %3913 = vmatpush.msra.mxu0 0.0
    %3914 = vmatpush.msra.mxu0 0.0
    %3915 = vmatpush.msra.mxu0 0.0
    %3916 = vmatpush.msra.mxu0 0.0
    %3917 = vmatpush.msra.mxu0 0.0
    %3918 = vmatpush.msra.mxu0 0.0
    %3919 = vmatpush.msra.mxu0 0.0
    %3920 = vmatpush.msra.mxu0 0.0
    %3921 = vmatpush.msra.mxu0 0.0
    %v3922 = vand.u32 %v57, 4294901760
    %3923 = vmatpush.msra.mxu0 %v3922
    %v3924 = vand.u32 %v55, 4294901760
    %3925 = vmatpush.msra.mxu0 %v3924
    %v3926 = vand.u32 %v53, 4294901760
    %3927 = vmatpush.msra.mxu0 %v3926
    %v3928 = vand.u32 %v51, 4294901760
    %3929 = vmatpush.msra.mxu0 %v3928
    %v3930 = vand.u32 %v3748, 4294901760
    %3931 = vmatmul.f32.gmra.mxu0 %v3930
    %v3932 = vpop.f32.mrf.mxu0
    %v3933 = vadd.f32 %v3908, %v3932
    %3934 = vdwg.mxu0
    %3935 = vrot.lane.b32.xlu0 %v3740, 64
    %v3936 = vpop.permute.xlu0 %3935
    %v3938 = vsel %vm520, %v3936, 0.0
    %3939 = vadd.xlane.f32.xlu0 %v3938
    %v3940 = vpop.xlane.xlu0 %3939
    %v3941 = vmul.f32 %v3940, 0.25
    %v3942 = vsel %vm520, %v3744, 0.0
    %3943 = vadd.xlane.f32.xlu0 %v3942
    %v3944 = vpop.xlane.xlu0 %3943
    %v3945 = vmul.f32 %v3944, 0.25
    %v3946 = vsel %vm529, %v3941, %v3945
    %v3947 = vmul.f32 %v3933, %v3946
    %v3948 = vlog2.pop %v3947
    %v3949 = vmul.f32 %v3948, 0.6931472
    %v3950 = vmul.f32 %v3949, 0.2
    %v3951 = vmul.f32 %v3950, 1.442695
    %v3952 = vpow.pop %v3951
    %v3953 = vmax.f32 %v3952, 1e-12
    %v3954 = vrcp.pop %v3953
    %v3955 = vmul.f32 %v3954, 0.25
    %v3956 = vmul.f32 %v3735, %v3955
    %3958 = vrot.lane.b32.xlu0 %v3735, 96
    %v3959 = vpop.permute.xlu0 %3958
    %v3961 = vmul.f32 %v3956, %v3959
    %v3963 = vsel %vm99, %v3961, 0
    %3965 = vmatpush.msra.mxu0 0.0
    %3966 = vmatpush.msra.mxu0 0.0
    %3967 = vmatpush.msra.mxu0 0.0
    %3968 = vmatpush.msra.mxu0 0.0
    %3969 = vmatpush.msra.mxu0 0.0
    %3970 = vmatpush.msra.mxu0 0.0
    %3971 = vmatpush.msra.mxu0 0.0
    %3972 = vmatpush.msra.mxu0 0.0
    %3973 = vmatpush.msra.mxu0 0.0
    %3974 = vmatpush.msra.mxu0 0.0
    %3975 = vmatpush.msra.mxu0 0.0
    %3976 = vmatpush.msra.mxu0 0.0
    %v3977 = vand.u32 %v573, 4294901760
    %3978 = vmatpush.msra.mxu0 %v3977
    %v3979 = vand.u32 %v572, 4294901760
    %3980 = vmatpush.msra.mxu0 %v3979
    %v3981 = vand.u32 %v571, 4294901760
    %3982 = vmatpush.msra.mxu0 %v3981
    %v3983 = vand.u32 %v570, 4294901760
    %3984 = vmatpush.msra.mxu0 %v3983
    %v3985 = vand.u32 %v3963, 4294901760
    %v3986 = vsub.f32 %v3963, %v3985
    %v3987 = vand.u32 %v3986, 4294901760
    %v3988 = vsub.f32 %v3986, %v3987
    %v3989 = vand.u32 %v3988, 4294901760
    %3990 = vmatmul.f32.gmra.mxu0 %v3989
    %v3991 = vpop.f32.mrf.mxu0
    %v3992 = vadd.f32 0.0, %v3991
    %3993 = vdwg.mxu0
    %3994 = vmatpush.msra.mxu0 0.0
    %3995 = vmatpush.msra.mxu0 0.0
    %3996 = vmatpush.msra.mxu0 0.0
    %3997 = vmatpush.msra.mxu0 0.0
    %3998 = vmatpush.msra.mxu0 0.0
    %3999 = vmatpush.msra.mxu0 0.0
    %4000 = vmatpush.msra.mxu0 0.0
    %4001 = vmatpush.msra.mxu0 0.0
    %4002 = vmatpush.msra.mxu0 0.0
    %4003 = vmatpush.msra.mxu0 0.0
    %4004 = vmatpush.msra.mxu0 0.0
    %4005 = vmatpush.msra.mxu0 0.0
    %v4006 = vand.u32 %v573, 4294901760
    %v4007 = vsub.f32 %v573, %v4006
    %v4008 = vand.u32 %v4007, 4294901760
    %v4009 = vsub.f32 %v4007, %v4008
    %v4010 = vand.u32 %v4009, 4294901760
    %4011 = vmatpush.msra.mxu0 %v4010
    %v4012 = vand.u32 %v572, 4294901760
    %v4013 = vsub.f32 %v572, %v4012
    %v4014 = vand.u32 %v4013, 4294901760
    %v4015 = vsub.f32 %v4013, %v4014
    %v4016 = vand.u32 %v4015, 4294901760
    %4017 = vmatpush.msra.mxu0 %v4016
    %v4018 = vand.u32 %v571, 4294901760
    %v4019 = vsub.f32 %v571, %v4018
    %v4020 = vand.u32 %v4019, 4294901760
    %v4021 = vsub.f32 %v4019, %v4020
    %v4022 = vand.u32 %v4021, 4294901760
    %4023 = vmatpush.msra.mxu0 %v4022
    %v4024 = vand.u32 %v570, 4294901760
    %v4025 = vsub.f32 %v570, %v4024
    %v4026 = vand.u32 %v4025, 4294901760
    %v4027 = vsub.f32 %v4025, %v4026
    %v4028 = vand.u32 %v4027, 4294901760
    %4029 = vmatpush.msra.mxu0 %v4028
    %v4030 = vand.u32 %v3963, 4294901760
    %4031 = vmatmul.f32.gmra.mxu0 %v4030
    %v4032 = vpop.f32.mrf.mxu0
    %v4033 = vadd.f32 %v3992, %v4032
    %4034 = vdwg.mxu0
    %4035 = vmatpush.msra.mxu0 0.0
    %4036 = vmatpush.msra.mxu0 0.0
    %4037 = vmatpush.msra.mxu0 0.0
    %4038 = vmatpush.msra.mxu0 0.0
    %4039 = vmatpush.msra.mxu0 0.0
    %4040 = vmatpush.msra.mxu0 0.0
    %4041 = vmatpush.msra.mxu0 0.0
    %4042 = vmatpush.msra.mxu0 0.0
    %4043 = vmatpush.msra.mxu0 0.0
    %4044 = vmatpush.msra.mxu0 0.0
    %4045 = vmatpush.msra.mxu0 0.0
    %4046 = vmatpush.msra.mxu0 0.0
    %v4047 = vand.u32 %v573, 4294901760
    %v4048 = vsub.f32 %v573, %v4047
    %4049 = vmatpush.msra.mxu0 %v4048
    %v4050 = vand.u32 %v572, 4294901760
    %v4051 = vsub.f32 %v572, %v4050
    %4052 = vmatpush.msra.mxu0 %v4051
    %v4053 = vand.u32 %v571, 4294901760
    %v4054 = vsub.f32 %v571, %v4053
    %4055 = vmatpush.msra.mxu0 %v4054
    %v4056 = vand.u32 %v570, 4294901760
    %v4057 = vsub.f32 %v570, %v4056
    %4058 = vmatpush.msra.mxu0 %v4057
    %v4059 = vand.u32 %v3963, 4294901760
    %v4060 = vsub.f32 %v3963, %v4059
    %4061 = vmatmul.f32.gmra.mxu0 %v4060
    %v4062 = vpop.f32.mrf.mxu0
    %v4063 = vadd.f32 %v4033, %v4062
    %4064 = vdwg.mxu0
    %4065 = vmatpush.msra.mxu0 0.0
    %4066 = vmatpush.msra.mxu0 0.0
    %4067 = vmatpush.msra.mxu0 0.0
    %4068 = vmatpush.msra.mxu0 0.0
    %4069 = vmatpush.msra.mxu0 0.0
    %4070 = vmatpush.msra.mxu0 0.0
    %4071 = vmatpush.msra.mxu0 0.0
    %4072 = vmatpush.msra.mxu0 0.0
    %4073 = vmatpush.msra.mxu0 0.0
    %4074 = vmatpush.msra.mxu0 0.0
    %4075 = vmatpush.msra.mxu0 0.0
    %4076 = vmatpush.msra.mxu0 0.0
    %v4077 = vand.u32 %v573, 4294901760
    %4078 = vmatpush.msra.mxu0 %v4077
    %v4079 = vand.u32 %v572, 4294901760
    %4080 = vmatpush.msra.mxu0 %v4079
    %v4081 = vand.u32 %v571, 4294901760
    %4082 = vmatpush.msra.mxu0 %v4081
    %v4083 = vand.u32 %v570, 4294901760
    %4084 = vmatpush.msra.mxu0 %v4083
    %v4085 = vand.u32 %v3963, 4294901760
    %v4086 = vsub.f32 %v3963, %v4085
    %v4087 = vand.u32 %v4086, 4294901760
    %4088 = vmatmul.f32.gmra.mxu0 %v4087
    %v4089 = vpop.f32.mrf.mxu0
    %v4090 = vadd.f32 %v4063, %v4089
    %4091 = vdwg.mxu0
    %4092 = vmatpush.msra.mxu0 0.0
    %4093 = vmatpush.msra.mxu0 0.0
    %4094 = vmatpush.msra.mxu0 0.0
    %4095 = vmatpush.msra.mxu0 0.0
    %4096 = vmatpush.msra.mxu0 0.0
    %4097 = vmatpush.msra.mxu0 0.0
    %4098 = vmatpush.msra.mxu0 0.0
    %4099 = vmatpush.msra.mxu0 0.0
    %4100 = vmatpush.msra.mxu0 0.0
    %4101 = vmatpush.msra.mxu0 0.0
    %4102 = vmatpush.msra.mxu0 0.0
    %4103 = vmatpush.msra.mxu0 0.0
    %v4104 = vand.u32 %v573, 4294901760
    %v4105 = vsub.f32 %v573, %v4104
    %v4106 = vand.u32 %v4105, 4294901760
    %4107 = vmatpush.msra.mxu0 %v4106
    %v4108 = vand.u32 %v572, 4294901760
    %v4109 = vsub.f32 %v572, %v4108
    %v4110 = vand.u32 %v4109, 4294901760
    %4111 = vmatpush.msra.mxu0 %v4110
    %v4112 = vand.u32 %v571, 4294901760
    %v4113 = vsub.f32 %v571, %v4112
    %v4114 = vand.u32 %v4113, 4294901760
    %4115 = vmatpush.msra.mxu0 %v4114
    %v4116 = vand.u32 %v570, 4294901760
    %v4117 = vsub.f32 %v570, %v4116
    %v4118 = vand.u32 %v4117, 4294901760
    %4119 = vmatpush.msra.mxu0 %v4118
    %v4120 = vand.u32 %v3963, 4294901760
    %4121 = vmatmul.f32.gmra.mxu0 %v4120
    %v4122 = vpop.f32.mrf.mxu0
    %v4123 = vadd.f32 %v4090, %v4122
    %4124 = vdwg.mxu0
    %4125 = vmatpush.msra.mxu0 0.0
    %4126 = vmatpush.msra.mxu0 0.0
    %4127 = vmatpush.msra.mxu0 0.0
    %4128 = vmatpush.msra.mxu0 0.0
    %4129 = vmatpush.msra.mxu0 0.0
    %4130 = vmatpush.msra.mxu0 0.0
    %4131 = vmatpush.msra.mxu0 0.0
    %4132 = vmatpush.msra.mxu0 0.0
    %4133 = vmatpush.msra.mxu0 0.0
    %4134 = vmatpush.msra.mxu0 0.0
    %4135 = vmatpush.msra.mxu0 0.0
    %4136 = vmatpush.msra.mxu0 0.0
    %v4137 = vand.u32 %v573, 4294901760
    %4138 = vmatpush.msra.mxu0 %v4137
    %v4139 = vand.u32 %v572, 4294901760
    %4140 = vmatpush.msra.mxu0 %v4139
    %v4141 = vand.u32 %v571, 4294901760
    %4142 = vmatpush.msra.mxu0 %v4141
    %v4143 = vand.u32 %v570, 4294901760
    %4144 = vmatpush.msra.mxu0 %v4143
    %v4145 = vand.u32 %v3963, 4294901760
    %4146 = vmatmul.f32.gmra.mxu0 %v4145
    %v4147 = vpop.f32.mrf.mxu0
    %v4148 = vadd.f32 %v4123, %v4147
    %4149 = vdwg.mxu0
    %4151 = vrot.lane.b32.xlu0 %v3735, 64
    %v4152 = vpop.permute.xlu0 %4151
    %4153 = vrot.lane.b32.xlu0 %v3736, 64
    %v4154 = vpop.permute.xlu0 %4153
    %v4155 = vsel %vm76, %v4152, %v4154
    %v4157 = vmul.f32 %v4148, %v4155
    %4159 = vrot.lane.b32.xlu0 %v4157, 32
    %v4160 = vpop.permute.xlu0 %4159
    %v4162 = vadd.f32 %v3602, %v4160
    %4163 = vrot.lane.b32.xlu0 %v4157, 96
    %v4164 = vpop.permute.xlu0 %4163
    %v4166 = vsub.f32 %v4162, %v4164
    %4168 = vrot.lane.b32.xlu0 %v4166, 96
    %v4169 = vpop.permute.xlu0 %4168
    %v4170 = vsel %vm76, %v4169, 0
    %4172 = vmatpush.msra.mxu0 0.0
    %4173 = vmatpush.msra.mxu0 0.0
    %4174 = vmatpush.msra.mxu0 0.0
    %4175 = vmatpush.msra.mxu0 0.0
    %4176 = vmatpush.msra.mxu0 0.0
    %4177 = vmatpush.msra.mxu0 0.0
    %4178 = vmatpush.msra.mxu0 0.0
    %4179 = vmatpush.msra.mxu0 0.0
    %4180 = vmatpush.msra.mxu0 %v49
    %4181 = vmatpush.msra.mxu0 %v47
    %4182 = vmatpush.msra.mxu0 %v45
    %4183 = vmatpush.msra.mxu0 %v43
    %4184 = vmatpush.msra.mxu0 %v41
    %4185 = vmatpush.msra.mxu0 %v39
    %4186 = vmatpush.msra.mxu0 %v37
    %4187 = vmatpush.msra.mxu0 %v35
    %4188 = vmatmul.f32.gmra.mxu0 %v4170
    %v4189 = vpop.f32.mrf.mxu0
    %v4190 = vadd.f32 0.0, %v4189
    %4191 = vdwg.mxu0
    %4192 = vmatpush.msra.mxu0 0.0
    %4193 = vmatpush.msra.mxu0 0.0
    %4194 = vmatpush.msra.mxu0 0.0
    %4195 = vmatpush.msra.mxu0 0.0
    %4196 = vmatpush.msra.mxu0 0.0
    %4197 = vmatpush.msra.mxu0 0.0
    %4198 = vmatpush.msra.mxu0 0.0
    %4199 = vmatpush.msra.mxu0 0.0
    %4200 = vmatpush.msra.mxu0 0.0
    %4201 = vmatpush.msra.mxu0 0.0
    %4202 = vmatpush.msra.mxu0 0.0
    %4203 = vmatpush.msra.mxu0 0.0
    %4204 = vmatpush.msra.mxu0 %v33
    %4205 = vmatpush.msra.mxu0 %v31
    %4206 = vmatpush.msra.mxu0 %v29
    %4207 = vmatpush.msra.mxu0 %v27
    %4208 = vmatmul.f32.gmra.mxu0 %v3693
    %v4209 = vpop.f32.mrf.mxu0
    %v4210 = vadd.f32 %v4190, %v4209
    %4211 = vdwg.mxu0
    %s4212 = scalar_lea.vmem %s0, 28
    %v4213 = vld [vmem:[%s4212] sm:$0xf]
    %v4214 = vadd.f32 %v4210, %v4213
    %v4215 = vmax.f32 %v4214, 0.0
    %v4216 = vperm.slane %v70, 0
    %v4218 = vsel %vm99, %v4215, 0
    %4220 = vmatpush.msra.mxu0 0.0
    %4221 = vmatpush.msra.mxu0 0.0
    %4222 = vmatpush.msra.mxu0 0.0
    %4223 = vmatpush.msra.mxu0 0.0
    %4224 = vmatpush.msra.mxu0 0.0
    %4225 = vmatpush.msra.mxu0 0.0
    %4226 = vmatpush.msra.mxu0 0.0
    %4227 = vmatpush.msra.mxu0 0.0
    %4228 = vmatpush.msra.mxu0 0.0
    %4229 = vmatpush.msra.mxu0 0.0
    %4230 = vmatpush.msra.mxu0 0.0
    %4231 = vmatpush.msra.mxu0 0.0
    %4232 = vmatpush.msra.mxu0 %v69
    %4233 = vmatpush.msra.mxu0 %v68
    %4234 = vmatpush.msra.mxu0 %v67
    %4235 = vmatpush.msra.mxu0 %v66
    %4236 = vmatmul.f32.gmra.mxu0 %v4218
    %v4237 = vpop.f32.mrf.mxu0
    %v4238 = vadd.f32 %v4216, %v4237
    %4239 = vdwg.mxu0
    %vm4240 = vcmask 76800
    %4241 = vst.msk [vmem:[#allocation2] sm:$0xf] %vm4240, %v4238
    // Predicated region
    $region30: #{nru_forward.1} parent=1 // pred_check
      _
    $region31: #{nru_forward.1} parent=1 // pred_check_branch
      %4243 = sbr.rel (0) target = $region33
    $region32: #{nru_forward.1} parent=1 // pred_region
      %4245 = vsyncadd [#allocation3], 0
      %s4247 = sshll.u32 [#allocation2], 4
      %s4248 = int_to_ptr.vmem [resolvable:$true] %s4247
      %s4249 = sshll.u32 %s7, 4
      %s4250 = int_to_ptr.hbm [resolvable:$true] %s4249
      %4252 = dma.vmem_to_hbm [thread:$0]  %s4248, 64, %s4250, [#allocation3]
    $region33: #{nru_forward.1} parent=1 // pred_fallthru
      _
    // Predicated region
    $region34: #{nru_forward.1} parent=1 // pred_check
      _
    $region35: #{nru_forward.1} parent=1 // pred_check_branch
      %4254 = sbr.rel (0) target = $region37
    $region36: #{nru_forward.1} parent=1 // pred_region
      %4256 = dma.done [#allocation3], 64
    $region37: #{nru_forward.1} parent=1 // pred_fallthru
      _
    %4257 = vsyncpa [#allocation3], 1

</llo_original>
